<compile_context>
chip_gen: v5e
topology: v5e:2x2
jax: 0.10.0
libtpu: 0.0.40
codegen_flags: <defaults>
</compile_context>

<pallas_src>
import jax
import jax.numpy as jnp
from jax.experimental import pallas as pl
from jax.experimental.pallas import tpu as pltpu

IN_FEATURES = 28 * 28   # 784
HIDDEN = 512
OUT_FEATURES = 10
N_PAD = 128             # lane-dense padded logits width; real logits live in [:, :10]


def _round_up(x, m):
    return -(-x // m) * m


def mlp_kernel(x_ref, w1_ref, b1_ref, w2_ref, b2_ref, w3_ref, b3_ref, out_ref):
    # x tile [TB, 784] f32 streamed from HBM; cast to bf16 in-kernel (removes the
    # separate XLA pad/cast pass). Weights are bf16 and VMEM-resident across all
    # grid steps (constant index_maps). MXU matmuls accumulate in f32; bias+ReLU
    # are cheap VPU filler between matmuls.
    x = x_ref[...].astype(jnp.bfloat16)                                # [TB, 784]
    h = jnp.dot(x, w1_ref[...], preferred_element_type=jnp.float32)
    h = jnp.maximum(h + b1_ref[...], 0.0).astype(jnp.bfloat16)         # [TB, 512]
    h = jnp.dot(h, w2_ref[...], preferred_element_type=jnp.float32)
    h = jnp.maximum(h + b2_ref[...], 0.0).astype(jnp.bfloat16)         # [TB, 512]
    logits = jnp.dot(h, w3_ref[...], preferred_element_type=jnp.float32)
    out_ref[...] = (logits + b3_ref[...]).astype(out_ref.dtype)        # [TB, 128] bf16


def prepare_params(params):
    """One-time weight preparation, hoisted out of the per-call forward path:
    bf16 cast of all weights + lane-dense padding of the last layer to 128 lanes.
    Call once after init / checkpoint load; reuse the result for every forward."""
    w1, b1, w2, b2, w3, b3 = params                                     # f32, [in, out]
    w1_p = w1.astype(jnp.bfloat16)                                      # [784, 512]
    w2_p = w2.astype(jnp.bfloat16)                                      # [512, 512]
    w3_p = jnp.pad(w3, ((0, 0), (0, N_PAD - OUT_FEATURES))).astype(jnp.bfloat16)
    b3_p = jnp.pad(b3, ((0, 0), (0, N_PAD - OUT_FEATURES)))             # f32 [1, 128]
    return (w1_p, b1, w2_p, b2, w3_p, b3_p)
    # TODO(synk): optional v7x-only fp8 quantization of w1/w2 (with per-tensor
    # scales folded into the f32 bias path) could further double MXU throughput.


def mlp_forward(x_nchw, prepared_params, *, max_batch_tile=1024):
    """x_nchw: [B, 1, 28, 28] float32 -> logits [B, 10] float32.
    `prepared_params` must come from prepare_params()."""
    w1_p, b1, w2_p, b2, w3_p, b3_p = prepared_params
    B = x_nchw.shape[0]
    x2d = x_nchw.reshape(B, IN_FEATURES)      # nn.Flatten(); stays f32, no extra pass

    # Batch tile: multiple of 16 (bf16 sublane packing), capped at max_batch_tile
    # (1024 amortizes the ~0.35 us/step overhead on v6e/v7x; use 512 on v5e).
    # Keep the grid at >=2 steps when the batch allows it so both v7x TCs work.
    TB = min(_round_up(max_batch_tile, 16),
             _round_up(max(-(-B // 2), 16), 16))
    Bp = _round_up(B, TB)                     # pad batch to whole tiles (no-op if aligned)
    x_p = x2d if Bp == B else jnp.pad(x2d, ((0, Bp - B), (0, 0)))

    grid = (Bp // TB,)

    def resident(shape):   # whole array, same block every grid step -> VMEM-resident
        return pl.BlockSpec(shape, lambda i: (0,) * len(shape))

    # Advisory cost estimate + an explicit VMEM budget (resident weights +
    # double-buffered x/out tiles + f32 intermediates), kept under v7x's 64 MiB.
    flops = 2 * Bp * (IN_FEATURES * HIDDEN + HIDDEN * HIDDEN + HIDDEN * N_PAD)
    param_bytes = sum(int(a.size) * a.dtype.itemsize
                      for a in (w1_p, b1, w2_p, b2, w3_p, b3_p))
    bytes_accessed = x_p.size * 4 + param_bytes + Bp * N_PAD * 2
    tile_bytes = TB * (2 * IN_FEATURES * 4 + 2 * N_PAD * 2)             # double-buffered I/O
    scratch_bytes = TB * (IN_FEATURES * 2 + 2 * HIDDEN * 4 + HIDDEN * 2 + N_PAD * 4)
    vmem_limit = min(64 << 20,
                     int(1.5 * (param_bytes + tile_bytes + scratch_bytes)) + (4 << 20))

    out_padded = pl.pallas_call(
        mlp_kernel,
        out_shape=jax.ShapeDtypeStruct((Bp, N_PAD), jnp.bfloat16),      # bf16 writeback
        grid=grid,
        in_specs=[
            # x tile: last dim 784 == full array extent, so the (8,128) rule holds.
            pl.BlockSpec((TB, IN_FEATURES), lambda i: (i, 0)),          # streamed x tile
            resident(w1_p.shape), resident(b1.shape),
            resident(w2_p.shape), resident(b2.shape),
            resident(w3_p.shape), resident(b3_p.shape),
        ],
        out_specs=pl.BlockSpec((TB, N_PAD), lambda i: (i, 0)),
        compiler_params=pltpu.CompilerParams(
            # "parallel" lets megacore split the batch axis; on v7x an A/B with
            # pltpu.CORE_PARALLEL on this axis is worth trying (changes codegen).
            dimension_semantics=("parallel",),
            vmem_limit_bytes=vmem_limit,
        ),
        cost_estimate=pl.CostEstimate(
            flops=flops, transcendentals=0, bytes_accessed=bytes_accessed),
    )(x_p, w1_p, b1, w2_p, b2, w3_p, b3_p)

    return out_padded[:B, :OUT_FEATURES].astype(jnp.float32)


def init_params(key):
    """Deterministic init matching nn.Linear shapes (stored as [in, out])."""
    k1, k2, k3, k4, k5, k6 = jax.random.split(key, 6)

    def linear(kw, kb, fan_in, fan_out):
        bound = 1.0 / jnp.sqrt(fan_in)
        w = jax.random.uniform(kw, (fan_in, fan_out), jnp.float32, -bound, bound)
        b = jax.random.uniform(kb, (1, fan_out), jnp.float32, -bound, bound)
        return w, b

    w1, b1 = linear(k1, k2, IN_FEATURES, HIDDEN)
    w2, b2 = linear(k3, k4, HIDDEN, HIDDEN)
    w3, b3 = linear(k5, k6, HIDDEN, OUT_FEATURES)
    return (w1, b1, w2, b2, w3, b3)


def ref_forward(x_nchw, params):
    """Plain-JAX reference with matching bf16 rounding of weights/activations."""
    w1, b1, w2, b2, w3, b3 = params
    bf = lambda a: a.astype(jnp.bfloat16).astype(jnp.float32)
    h = bf(x_nchw.reshape(x_nchw.shape[0], -1))
    h = jnp.maximum(h @ bf(w1) + b1, 0.0)
    h = jnp.maximum(bf(h) @ bf(w2) + b2, 0.0)
    return bf(h) @ bf(w3) + b3


if __name__ == "__main__":
    key = jax.random.PRNGKey(0)
    kx, kp = jax.random.split(key)

    B = 72  # not a multiple of 16: exercises batch padding and a 2-step grid
    x = jax.random.normal(kx, (B, 1, 28, 28), jnp.float32)
    params = init_params(kp)
    prepared = prepare_params(params)       # one-time weight prep (hoisted out of fwd)

    logits = mlp_forward(x, prepared)
    jax.block_until_ready(logits)

    ref = ref_forward(x, params)
    assert logits.shape == (B, OUT_FEATURES)
    assert jnp.allclose(logits, ref, atol=2e-2, rtol=2e-2), (
        float(jnp.max(jnp.abs(logits - ref))))

    print("KERNEL_OK")
</pallas_src>

<mosaic_0001>
module attributes {stable_mosaic.version = 11 : i64} {
  func.func @mlp_kernel(%arg0: i32, %arg1: memref<48x784xf32, #tpu.memory_space<vmem>>, %arg2: memref<784x512xbf16, #tpu.memory_space<vmem>>, %arg3: memref<1x512xf32, #tpu.memory_space<vmem>>, %arg4: memref<512x512xbf16, #tpu.memory_space<vmem>>, %arg5: memref<1x512xf32, #tpu.memory_space<vmem>>, %arg6: memref<512x128xbf16, #tpu.memory_space<vmem>>, %arg7: memref<1x128xf32, #tpu.memory_space<vmem>>, %arg8: memref<48x128xbf16, #tpu.memory_space<vmem>>) attributes {dimension_semantics = [#tpu.dimension_semantics<parallel>], iteration_bounds = array<i64: 2>, scalar_prefetch = 0 : i64, scratch_operands = 0 : i64, tpu.core_type = #tpu.core_type<tc>, window_params = [{transform_indices = @transform_0, window_bounds = array<i64: 48, 784>}, {pipeline_mode = #tpu.pipeline_mode<synchronous>, transform_indices = @transform_1, window_bounds = array<i64: 784, 512>}, {pipeline_mode = #tpu.pipeline_mode<synchronous>, transform_indices = @transform_2, window_bounds = array<i64: 1, 512>}, {pipeline_mode = #tpu.pipeline_mode<synchronous>, transform_indices = @transform_3, window_bounds = array<i64: 512, 512>}, {pipeline_mode = #tpu.pipeline_mode<synchronous>, transform_indices = @transform_4, window_bounds = array<i64: 1, 512>}, {pipeline_mode = #tpu.pipeline_mode<synchronous>, transform_indices = @transform_5, window_bounds = array<i64: 512, 128>}, {pipeline_mode = #tpu.pipeline_mode<synchronous>, transform_indices = @transform_6, window_bounds = array<i64: 1, 128>}, {transform_indices = @transform_7, window_bounds = array<i64: 48, 128>}]} {
    %c0 = arith.constant 0 : index
    %c0_0 = arith.constant 0 : index
    %0 = vector.load %arg1[%c0, %c0_0] : memref<48x784xf32, #tpu.memory_space<vmem>>, vector<48x784xf32>
    %1 = arith.truncf %0 : vector<48x784xf32> to vector<48x784xbf16>
    %c0_1 = arith.constant 0 : index
    %c0_2 = arith.constant 0 : index
    %2 = vector.load %arg2[%c0_1, %c0_2] : memref<784x512xbf16, #tpu.memory_space<vmem>>, vector<784x512xbf16>
    %cst = arith.constant dense<0.000000e+00> : vector<48x512xf32>
    %3 = tpu.matmul %1, %2, %cst {dimension_numbers = #tpu.dot_dimension_numbers<[1], [0], [0], [1], [0, 0, 1, 1], [], []>} : vector<48x784xbf16>, vector<784x512xbf16>, vector<48x512xf32> -> vector<48x512xf32>
    %c0_3 = arith.constant 0 : index
    %c0_4 = arith.constant 0 : index
    %4 = vector.load %arg3[%c0_3, %c0_4] : memref<1x512xf32, #tpu.memory_space<vmem>>, vector<1x512xf32>
    %5 = vector.broadcast %4 : vector<1x512xf32> to vector<48x512xf32>
    %6 = arith.addf %3, %5 : vector<48x512xf32>
    %cst_5 = arith.constant 0.000000e+00 : f32
    %7 = vector.broadcast %cst_5 : f32 to vector<48x512xf32>
    %8 = arith.maximumf %6, %7 : vector<48x512xf32>
    %9 = arith.truncf %8 : vector<48x512xf32> to vector<48x512xbf16>
    %c0_6 = arith.constant 0 : index
    %c0_7 = arith.constant 0 : index
    %10 = vector.load %arg4[%c0_6, %c0_7] : memref<512x512xbf16, #tpu.memory_space<vmem>>, vector<512x512xbf16>
    %cst_8 = arith.constant dense<0.000000e+00> : vector<48x512xf32>
    %11 = tpu.matmul %9, %10, %cst_8 {dimension_numbers = #tpu.dot_dimension_numbers<[1], [0], [0], [1], [0, 0, 1, 1], [], []>} : vector<48x512xbf16>, vector<512x512xbf16>, vector<48x512xf32> -> vector<48x512xf32>
    %c0_9 = arith.constant 0 : index
    %c0_10 = arith.constant 0 : index
    %12 = vector.load %arg5[%c0_9, %c0_10] : memref<1x512xf32, #tpu.memory_space<vmem>>, vector<1x512xf32>
    %13 = vector.broadcast %12 : vector<1x512xf32> to vector<48x512xf32>
    %14 = arith.addf %11, %13 : vector<48x512xf32>
    %cst_11 = arith.constant 0.000000e+00 : f32
    %15 = vector.broadcast %cst_11 : f32 to vector<48x512xf32>
    %16 = arith.maximumf %14, %15 : vector<48x512xf32>
    %17 = arith.truncf %16 : vector<48x512xf32> to vector<48x512xbf16>
    %c0_12 = arith.constant 0 : index
    %c0_13 = arith.constant 0 : index
    %18 = vector.load %arg6[%c0_12, %c0_13] : memref<512x128xbf16, #tpu.memory_space<vmem>>, vector<512x128xbf16>
    %cst_14 = arith.constant dense<0.000000e+00> : vector<48x128xf32>
    %19 = tpu.matmul %17, %18, %cst_14 {dimension_numbers = #tpu.dot_dimension_numbers<[1], [0], [0], [1], [0, 0, 1, 1], [], []>} : vector<48x512xbf16>, vector<512x128xbf16>, vector<48x128xf32> -> vector<48x128xf32>
    %c0_15 = arith.constant 0 : index
    %c0_16 = arith.constant 0 : index
    %20 = vector.load %arg7[%c0_15, %c0_16] : memref<1x128xf32, #tpu.memory_space<vmem>>, vector<1x128xf32>
    %21 = vector.broadcast %20 : vector<1x128xf32> to vector<48x128xf32>
    %22 = arith.addf %19, %21 : vector<48x128xf32>
    %23 = arith.truncf %22 : vector<48x128xf32> to vector<48x128xbf16>
    %c0_17 = arith.constant 0 : index
    %c0_18 = arith.constant 0 : index
    %24 = vector.load %arg8[%c0_17, %c0_18] : memref<48x128xbf16, #tpu.memory_space<vmem>>, vector<48x128xbf16>
    tpu.vector_store %arg8[%c0_17, %c0_18], %23 {strides = array<i32>} : memref<48x128xbf16, #tpu.memory_space<vmem>>, vector<48x128xbf16>,
    return
  }
  func.func @transform_0(%arg0: i32) -> (i32, i32) {
    %c0_i32 = arith.constant 0 : i32
    %c0_i32_0 = arith.constant 0 : i32
    return %arg0, %c0_i32 : i32, i32
  }
  func.func @transform_1(%arg0: i32) -> (i32, i32) {
    %c0_i32 = arith.constant 0 : i32
    %c0_i32_0 = arith.constant 0 : i32
    %c0_i32_1 = arith.constant 0 : i32
    return %c0_i32, %c0_i32_0 : i32, i32
  }
  func.func @transform_2(%arg0: i32) -> (i32, i32) {
    %c0_i32 = arith.constant 0 : i32
    %c0_i32_0 = arith.constant 0 : i32
    %c0_i32_1 = arith.constant 0 : i32
    return %c0_i32, %c0_i32_0 : i32, i32
  }
  func.func @transform_3(%arg0: i32) -> (i32, i32) {
    %c0_i32 = arith.constant 0 : i32
    %c0_i32_0 = arith.constant 0 : i32
    %c0_i32_1 = arith.constant 0 : i32
    return %c0_i32, %c0_i32_0 : i32, i32
  }
  func.func @transform_4(%arg0: i32) -> (i32, i32) {
    %c0_i32 = arith.constant 0 : i32
    %c0_i32_0 = arith.constant 0 : i32
    %c0_i32_1 = arith.constant 0 : i32
    return %c0_i32, %c0_i32_0 : i32, i32
  }
  func.func @transform_5(%arg0: i32) -> (i32, i32) {
    %c0_i32 = arith.constant 0 : i32
    %c0_i32_0 = arith.constant 0 : i32
    %c0_i32_1 = arith.constant 0 : i32
    return %c0_i32, %c0_i32_0 : i32, i32
  }
  func.func @transform_6(%arg0: i32) -> (i32, i32) {
    %c0_i32 = arith.constant 0 : i32
    %c0_i32_0 = arith.constant 0 : i32
    %c0_i32_1 = arith.constant 0 : i32
    return %c0_i32, %c0_i32_0 : i32, i32
  }
  func.func @transform_7(%arg0: i32) -> (i32, i32) {
    %c0_i32 = arith.constant 0 : i32
    %c0_i32_0 = arith.constant 0 : i32
    return %arg0, %c0_i32 : i32, i32
  }
}

</mosaic_0001>

<llo_original>
// kernel: tpu_custom_call.1
$region0: #{tpu_custom_call.1}
  #allocation0 [shape = 'u32[]', space=smem, size = 0x4, offset = 0x4, fixed_abs, tag = 'smem constant byte address 0x4 - core index']
  #allocation1 [shape = 'u32[72,128]{1,0:T(1,128)}', space=vmem, size = 0x9000, scoped, tag = 'internal scratch']
  %s0 = inlined_call_operand.hbm [shape: f32[96,784], index: 0, kind: input, shape index: {}]
  %s1 = inlined_call_operand.hbm [shape: bf16[784,512], index: 1, kind: input, shape index: {}]
  %s2 = inlined_call_operand.hbm [shape: f32[1,512], index: 2, kind: input, shape index: {}]
  %s3 = inlined_call_operand.hbm [shape: bf16[512,512], index: 3, kind: input, shape index: {}]
  %s4 = inlined_call_operand.hbm [shape: f32[1,512], index: 4, kind: input, shape index: {}]
  %s5 = inlined_call_operand.hbm [shape: bf16[512,128], index: 5, kind: input, shape index: {}]
  %s6 = inlined_call_operand.vmem [shape: f32[1,128], index: 6, kind: input, shape index: {}]
  %s7 = inlined_call_operand.hbm [shape: bf16[96,128], index: 7, kind: output, shape index: {}]
  %s8 = sld [smem:[#allocation0]]
  $region85: #{tpu_custom_call.1} parent=0
    _
  %s10 = ssub.s32 1, %s8
  %s11 = scalar_select 0, %s10, %s8
  $region1: #{tpu_custom_call.1} parent=0
    #allocation2 [shape = 'u8[344064]{0}', space=vmem, size = 0x54000, scoped, tag = 'input window, operand 0']
    #allocation3 [shape = 's32[2]{0}', space=sflag, size = 0x8, scoped, tag = 'scoped memory for tpu_custom_call.1']
    #allocation4 [shape = 's32[2]{0}', space=sflag, size = 0x8, scoped, tag = 'scoped memory for tpu_custom_call.1']
    #allocation5 [shape = 'u8[802816]{0}', space=vmem, size = 0xc4000, scoped, tag = 'input window, operand 1, single buffered']
    #allocation6 [shape = 's32[1]{0}', space=sflag, size = 0x4, scoped, tag = 'scoped memory for tpu_custom_call.1']
    #allocation7 [shape = 'u8[2048]{0}', space=vmem, size = 0x800, scoped, tag = 'input window, operand 2, single buffered']
    #allocation8 [shape = 'u8[524288]{0}', space=vmem, size = 0x80000, scoped, tag = 'input window, operand 3, single buffered']
    #allocation9 [shape = 's32[1]{0}', space=sflag, size = 0x4, scoped, tag = 'scoped memory for tpu_custom_call.1']
    #allocation10 [shape = 'u8[2048]{0}', space=vmem, size = 0x800, scoped, tag = 'input window, operand 4, single buffered']
    #allocation11 [shape = 'u8[131072]{0}', space=vmem, size = 0x20000, scoped, tag = 'input window, operand 5, single buffered']
    #allocation12 [shape = 's32[1]{0}', space=sflag, size = 0x4, scoped, tag = 'scoped memory for tpu_custom_call.1']
    #allocation13 [shape = 'u8[24576]{0}', space=vmem, size = 0x6000, scoped, tag = 'output window, operand 0']
    %12 = vsyncpa [#allocation3], 0
    %s13 = scalar_lea.sflag [#allocation3], 1
    %14 = vsyncpa %s13, 0
    %15 = vsyncpa [#allocation6], 0
    %16 = vsyncpa [#allocation9], 0
    %17 = vsyncpa [#allocation12], 0
    %18 = vsyncpa [#allocation4], 0
    %s19 = scalar_lea.sflag [#allocation4], 1
    %20 = vsyncpa %s19, 0
    loop: start=0, step=1, limit=4
    $region2: #{tpu_custom_call.1} parent=1 // loop_pre_header
      _
    $region3: #{tpu_custom_call.1} parent=1 // loop_header
      %s22 = sphi 0, %s26
      %p23 = scmp.ge.s32.totalorder %s22, 4
      %s32 = sphi 0, %s34
      %s35 = sphi 0, %s32
      %s36 = sphi 0, %s35
      %s52 = sphi 0, %s36
      %s56 = sphi 0, %s56
      %s58 = sphi 0, %s56
      %s59 = sphi 0, %s58
      %s73 = sphi 0, %s59
      %s77 = sphi 0, %s77
      %s79 = sphi 0, %s77
      %s80 = sphi 0, %s79
      %s94 = sphi 0, %s80
      %s98 = sphi 0, %s98
      %s100 = sphi 0, %s98
      %s101 = sphi 0, %s100
      %s115 = sphi 0, %s101
      %s119 = sphi 0, %s119
      %s121 = sphi 0, %s119
      %s122 = sphi 0, %s121
      %s136 = sphi 0, %s122
      %s140 = sphi 0, %s140
      %s142 = sphi 0, %s140
      %s143 = sphi 0, %s142
      %s157 = sphi 0, %s143
      %s161 = sphi 0, %s161
      %s163 = sphi 0, %s161
      %s164 = sphi 0, %s163
      %s178 = sphi 0, %s164
      %s184 = sphi 0, %s186
      %s187 = sphi 0, %s184
      %s188 = sphi 0, %s187
      %s204 = sphi 0, %s188
    $region4: #{tpu_custom_call.1} parent=1 // loop_header_branch
      %25 = sbr.rel (%p23) target = $region8
    $region5: #{tpu_custom_call.1} parent=1 // loop_body
      %s27 = ssub.s32 %s22, 1
      %s28 = ssub.s32 %s22, 2
      %s29 = sadd.s32 %s22, 1
      %s30 = ssub.s32 %s22, %s29
      %p31 = scmp.eq.s32.totalorder %s30, 0
      %s33 = sadd.s32 %s32, 1
      %s34 = scalar_select %p31, %s32, %s33
      %p37 = pneg %p31
      %p38 = scmp.eq.s32.totalorder %s22, 1
      %p39 = por %p37, %p38
      %p40 = scmp.ne.s32.totalorder %s32, %s35
      %p41 = scmp.eq.s32.totalorder %s22, 0
      %p42 = por %p40, %p41
      %p43 = scmp.ne.s32.totalorder %s32, %s35
      %p44 = scmp.eq.s32.totalorder %s27, 1
      %p45 = por %p43, %p44
      %p46 = scmp.ne.s32.totalorder %s35, %s36
      %p47 = scmp.eq.s32.totalorder %s27, 0
      %p48 = por %p46, %p47
      %p49 = scmp.ne.s32.totalorder %s35, %s36
      %p50 = scmp.eq.s32.totalorder %s28, 1
      %p51 = por %p49, %p50
      %p53 = scmp.ne.s32.totalorder %s36, %s52
      %p54 = scmp.eq.s32.totalorder %s28, 0
      %p55 = por %p53, %p54
      %s57 = sadd.s32 %s56, 1
      %p60 = scmp.eq.s32.totalorder %s22, 1
      %p61 = scmp.ne.s32.totalorder %s56, %s58
      %p62 = scmp.eq.s32.totalorder %s22, 0
      %p63 = por %p61, %p62
      %p64 = scmp.ne.s32.totalorder %s56, %s58
      %p65 = scmp.eq.s32.totalorder %s27, 1
      %p66 = por %p64, %p65
      %p67 = scmp.ne.s32.totalorder %s58, %s59
      %p68 = scmp.eq.s32.totalorder %s27, 0
      %p69 = por %p67, %p68
      %p70 = scmp.ne.s32.totalorder %s58, %s59
      %p71 = scmp.eq.s32.totalorder %s28, 1
      %p72 = por %p70, %p71
      %p74 = scmp.ne.s32.totalorder %s59, %s73
      %p75 = scmp.eq.s32.totalorder %s28, 0
      %p76 = por %p74, %p75
      %s78 = sadd.s32 %s77, 1
      %p81 = scmp.eq.s32.totalorder %s22, 1
      %p82 = scmp.ne.s32.totalorder %s77, %s79
      %p83 = scmp.eq.s32.totalorder %s22, 0
      %p84 = por %p82, %p83
      %p85 = scmp.ne.s32.totalorder %s77, %s79
      %p86 = scmp.eq.s32.totalorder %s27, 1
      %p87 = por %p85, %p86
      %p88 = scmp.ne.s32.totalorder %s79, %s80
      %p89 = scmp.eq.s32.totalorder %s27, 0
      %p90 = por %p88, %p89
      %p91 = scmp.ne.s32.totalorder %s79, %s80
      %p92 = scmp.eq.s32.totalorder %s28, 1
      %p93 = por %p91, %p92
      %p95 = scmp.ne.s32.totalorder %s80, %s94
      %p96 = scmp.eq.s32.totalorder %s28, 0
      %p97 = por %p95, %p96
      %s99 = sadd.s32 %s98, 1
      %p102 = scmp.eq.s32.totalorder %s22, 1
      %p103 = scmp.ne.s32.totalorder %s98, %s100
      %p104 = scmp.eq.s32.totalorder %s22, 0
      %p105 = por %p103, %p104
      %p106 = scmp.ne.s32.totalorder %s98, %s100
      %p107 = scmp.eq.s32.totalorder %s27, 1
      %p108 = por %p106, %p107
      %p109 = scmp.ne.s32.totalorder %s100, %s101
      %p110 = scmp.eq.s32.totalorder %s27, 0
      %p111 = por %p109, %p110
      %p112 = scmp.ne.s32.totalorder %s100, %s101
      %p113 = scmp.eq.s32.totalorder %s28, 1
      %p114 = por %p112, %p113
      %p116 = scmp.ne.s32.totalorder %s101, %s115
      %p117 = scmp.eq.s32.totalorder %s28, 0
      %p118 = por %p116, %p117
      %s120 = sadd.s32 %s119, 1
      %p123 = scmp.eq.s32.totalorder %s22, 1
      %p124 = scmp.ne.s32.totalorder %s119, %s121
      %p125 = scmp.eq.s32.totalorder %s22, 0
      %p126 = por %p124, %p125
      %p127 = scmp.ne.s32.totalorder %s119, %s121
      %p128 = scmp.eq.s32.totalorder %s27, 1
      %p129 = por %p127, %p128
      %p130 = scmp.ne.s32.totalorder %s121, %s122
      %p131 = scmp.eq.s32.totalorder %s27, 0
      %p132 = por %p130, %p131
      %p133 = scmp.ne.s32.totalorder %s121, %s122
      %p134 = scmp.eq.s32.totalorder %s28, 1
      %p135 = por %p133, %p134
      %p137 = scmp.ne.s32.totalorder %s122, %s136
      %p138 = scmp.eq.s32.totalorder %s28, 0
      %p139 = por %p137, %p138
      %s141 = sadd.s32 %s140, 1
      %p144 = scmp.eq.s32.totalorder %s22, 1
      %p145 = scmp.ne.s32.totalorder %s140, %s142
      %p146 = scmp.eq.s32.totalorder %s22, 0
      %p147 = por %p145, %p146
      %p148 = scmp.ne.s32.totalorder %s140, %s142
      %p149 = scmp.eq.s32.totalorder %s27, 1
      %p150 = por %p148, %p149
      %p151 = scmp.ne.s32.totalorder %s142, %s143
      %p152 = scmp.eq.s32.totalorder %s27, 0
      %p153 = por %p151, %p152
      %p154 = scmp.ne.s32.totalorder %s142, %s143
      %p155 = scmp.eq.s32.totalorder %s28, 1
      %p156 = por %p154, %p155
      %p158 = scmp.ne.s32.totalorder %s143, %s157
      %p159 = scmp.eq.s32.totalorder %s28, 0
      %p160 = por %p158, %p159
      %s162 = sadd.s32 %s161, 1
      %p165 = scmp.eq.s32.totalorder %s22, 1
      %p166 = scmp.ne.s32.totalorder %s161, %s163
      %p167 = scmp.eq.s32.totalorder %s22, 0
      %p168 = por %p166, %p167
      %p169 = scmp.ne.s32.totalorder %s161, %s163
      %p170 = scmp.eq.s32.totalorder %s27, 1
      %p171 = por %p169, %p170
      %p172 = scmp.ne.s32.totalorder %s163, %s164
      %p173 = scmp.eq.s32.totalorder %s27, 0
      %p174 = por %p172, %p173
      %p175 = scmp.ne.s32.totalorder %s163, %s164
      %p176 = scmp.eq.s32.totalorder %s28, 1
      %p177 = por %p175, %p176
      %p179 = scmp.ne.s32.totalorder %s164, %s178
      %p180 = scmp.eq.s32.totalorder %s28, 0
      %p181 = por %p179, %p180
      %s182 = ssub.s32 %s22, %s29
      %p183 = scmp.eq.s32.totalorder %s182, 0
      %s185 = sadd.s32 %s184, 1
      %s186 = scalar_select %p183, %s184, %s185
      %p189 = pneg %p183
      %p190 = scmp.eq.s32.totalorder %s22, 1
      %p191 = por %p189, %p190
      %p192 = scmp.ne.s32.totalorder %s184, %s187
      %p193 = scmp.eq.s32.totalorder %s22, 0
      %p194 = por %p192, %p193
      %p195 = scmp.ne.s32.totalorder %s184, %s187
      %p196 = scmp.eq.s32.totalorder %s27, 1
      %p197 = por %p195, %p196
      %p198 = scmp.ne.s32.totalorder %s187, %s188
      %p199 = scmp.eq.s32.totalorder %s27, 0
      %p200 = por %p198, %p199
      %p201 = scmp.ne.s32.totalorder %s187, %s188
      %p202 = scmp.eq.s32.totalorder %s28, 1
      %p203 = por %p201, %p202
      %p205 = scmp.ne.s32.totalorder %s188, %s204
      %p206 = scmp.eq.s32.totalorder %s28, 0
      %p207 = por %p205, %p206
      %p208 = scmp.le.s32.totalorder 1, %s22
      %p209 = scmp.lt.s32.totalorder %s22, 3
      %p210 = pnand %p208, %p209
      %p211 = pneg %p210
      // Predicated region
      $region9: #{tpu_custom_call.1} parent=5 // pred_check
        _
      $region10: #{tpu_custom_call.1} parent=5 // pred_check_branch
        %213 = sbr.rel (%p210) target = $region12
      $region11: #{tpu_custom_call.1} parent=5 // pred_region
        %s214 = ssub.s32 %s22, 1
        // Predicated region
        $region13: #{tpu_custom_call.1} parent=11 // pred_check
          %p215 = pneg %p69
        $region14: #{tpu_custom_call.1} parent=11 // pred_check_branch
          %217 = sbr.rel (%p215) target = $region16
        $region15: #{tpu_custom_call.1} parent=11 // pred_region
          %219 = vsyncadd [#allocation6], 0
          %s220 = sshll.u32 %s1, 4
          %s221 = int_to_ptr.hbm [resolvable:$true] %s220
          %s222 = sshll.u32 [#allocation5], 4
          %s223 = int_to_ptr.vmem [resolvable:$true] %s222
          %228 = dma.hbm_to_vmem [thread:$0]  %s221, 25088, %s223, [#allocation6], 256, 256, 16
        $region16: #{tpu_custom_call.1} parent=11 // pred_fallthru
          _
        // Predicated region
        $region17: #{tpu_custom_call.1} parent=11 // pred_check
          %p229 = pneg %p90
        $region18: #{tpu_custom_call.1} parent=11 // pred_check_branch
          %231 = sbr.rel (%p229) target = $region20
        $region19: #{tpu_custom_call.1} parent=11 // pred_region
          %233 = vsyncadd [#allocation6], 0
          %s235 = sshll.u32 %s2, 4
          %s236 = int_to_ptr.hbm [resolvable:$true] %s235
          %s237 = sshll.u32 [#allocation7], 4
          %s238 = int_to_ptr.vmem [resolvable:$true] %s237
          %240 = dma.hbm_to_vmem [thread:$0]  %s236, 64, %s238, [#allocation6]
        $region20: #{tpu_custom_call.1} parent=11 // pred_fallthru
          _
        // Predicated region
        $region21: #{tpu_custom_call.1} parent=11 // pred_check
          %p241 = pneg %p111
        $region22: #{tpu_custom_call.1} parent=11 // pred_check_branch
          %243 = sbr.rel (%p241) target = $region24
        $region23: #{tpu_custom_call.1} parent=11 // pred_region
          %245 = vsyncadd [#allocation9], 0
          %s246 = sshll.u32 %s3, 4
          %s247 = int_to_ptr.hbm [resolvable:$true] %s246
          %s248 = sshll.u32 [#allocation8], 4
          %s249 = int_to_ptr.vmem [resolvable:$true] %s248
          %254 = dma.hbm_to_vmem [thread:$0]  %s247, 16384, %s249, [#allocation9], 256, 256, 16
        $region24: #{tpu_custom_call.1} parent=11 // pred_fallthru
          _
        // Predicated region
        $region25: #{tpu_custom_call.1} parent=11 // pred_check
          %p255 = pneg %p132
        $region26: #{tpu_custom_call.1} parent=11 // pred_check_branch
          %257 = sbr.rel (%p255) target = $region28
        $region27: #{tpu_custom_call.1} parent=11 // pred_region
          %259 = vsyncadd [#allocation9], 0
          %s261 = sshll.u32 %s4, 4
          %s262 = int_to_ptr.hbm [resolvable:$true] %s261
          %s263 = sshll.u32 [#allocation10], 4
          %s264 = int_to_ptr.vmem [resolvable:$true] %s263
          %266 = dma.hbm_to_vmem [thread:$0]  %s262, 64, %s264, [#allocation9]
        $region28: #{tpu_custom_call.1} parent=11 // pred_fallthru
          _
        // Predicated region
        $region29: #{tpu_custom_call.1} parent=11 // pred_check
          %p267 = pneg %p153
        $region30: #{tpu_custom_call.1} parent=11 // pred_check_branch
          %269 = sbr.rel (%p267) target = $region32
        $region31: #{tpu_custom_call.1} parent=11 // pred_region
          %271 = vsyncadd [#allocation12], 0
          %s272 = sshll.u32 %s5, 4
          %s273 = int_to_ptr.hbm [resolvable:$true] %s272
          %s274 = sshll.u32 [#allocation11], 4
          %s275 = int_to_ptr.vmem [resolvable:$true] %s274
          %280 = dma.hbm_to_vmem [thread:$0]  %s273, 4096, %s275, [#allocation12], 64, 64, 4
        $region32: #{tpu_custom_call.1} parent=11 // pred_fallthru
          _
        // Predicated region
        $region33: #{tpu_custom_call.1} parent=11 // pred_check
          %p281 = pneg %p174
        $region34: #{tpu_custom_call.1} parent=11 // pred_check_branch
          %283 = sbr.rel (%p281) target = $region36
        $region35: #{tpu_custom_call.1} parent=11 // pred_region
          _
        $region36: #{tpu_custom_call.1} parent=11 // pred_fallthru
          _
      $region12: #{tpu_custom_call.1} parent=5 // pred_fallthru
        _
      %p284 = scmp.lt.s32.totalorder %s22, 2
      // Predicated region
      $region37: #{tpu_custom_call.1} parent=5 // pred_check
        %p285 = pneg %p284
      $region38: #{tpu_custom_call.1} parent=5 // pred_check_branch
        %287 = sbr.rel (%p285) target = $region40
      $region39: #{tpu_custom_call.1} parent=5 // pred_region
        // Predicated region
        $region41: #{tpu_custom_call.1} parent=39 // pred_check
          %p288 = pneg %p42
        $region42: #{tpu_custom_call.1} parent=39 // pred_check_branch
          %290 = sbr.rel (%p288) target = $region44
        $region43: #{tpu_custom_call.1} parent=39 // pred_region
          %s291 = sand.u32 %s32, 1
          %s292 = scalar_lea.sflag [#allocation3], %s291
          %s293 = sand.u32 %s32, 1
          %s294 = smul.addr %s293, 336
          %s295 = scalar_lea.vmem [#allocation2], %s294
          %s296 = smul.u32 6, %s22
          %298 = vsyncadd %s292, 0
          %s299 = smul.addr %s296, 7
          %s300 = smul.addr %s299, 8
          %s301 = scalar_lea.hbm %s0, %s300
          %s302 = sshll.u32 %s301, 4
          %s303 = int_to_ptr.hbm [resolvable:$true] %s302
          %s304 = sshll.u32 %s295, 4
          %s305 = int_to_ptr.vmem [resolvable:$true] %s304
          %310 = dma.hbm_to_vmem [thread:$0]  %s303, 5376, %s305, %s292, 896, 896, 56
        $region44: #{tpu_custom_call.1} parent=39 // pred_fallthru
          _
      $region40: #{tpu_custom_call.1} parent=5 // pred_fallthru
        _
      %p311 = scmp.le.s32.totalorder 1, %s22
      %p312 = scmp.lt.s32.totalorder %s22, 3
      %p313 = pnand %p311, %p312
      %p314 = pneg %p313
      // Predicated region
      $region45: #{tpu_custom_call.1} parent=5 // pred_check
        _
      $region46: #{tpu_custom_call.1} parent=5 // pred_check_branch
        %316 = sbr.rel (%p313) target = $region48
      $region47: #{tpu_custom_call.1} parent=5 // pred_region
        %s317 = ssub.s32 %s22, 1
        %s318 = sand.u32 %s35, 1
        %s319 = scalar_lea.sflag [#allocation3], %s318
        %s320 = sand.u32 %s35, 1
        %s321 = smul.addr %s320, 336
        %s322 = scalar_lea.vmem [#allocation2], %s321
        // Predicated region
        $region49: #{tpu_custom_call.1} parent=47 // pred_check
          %p323 = pneg %p48
        $region50: #{tpu_custom_call.1} parent=47 // pred_check_branch
          %325 = sbr.rel (%p323) target = $region52
        $region51: #{tpu_custom_call.1} parent=47 // pred_region
          %327 = dma.done %s319, 5376
        $region52: #{tpu_custom_call.1} parent=47 // pred_fallthru
          _
        // Predicated region
        $region53: #{tpu_custom_call.1} parent=47 // pred_check
          %p328 = pneg %p69
        $region54: #{tpu_custom_call.1} parent=47 // pred_check_branch
          %330 = sbr.rel (%p328) target = $region56
        $region55: #{tpu_custom_call.1} parent=47 // pred_region
          %332 = dma.done [#allocation6], 25088
        $region56: #{tpu_custom_call.1} parent=47 // pred_fallthru
          _
        // Predicated region
        $region57: #{tpu_custom_call.1} parent=47 // pred_check
          %p333 = pneg %p90
        $region58: #{tpu_custom_call.1} parent=47 // pred_check_branch
          %335 = sbr.rel (%p333) target = $region60
        $region59: #{tpu_custom_call.1} parent=47 // pred_region
          %337 = dma.done [#allocation6], 64
        $region60: #{tpu_custom_call.1} parent=47 // pred_fallthru
          _
        // Predicated region
        $region61: #{tpu_custom_call.1} parent=47 // pred_check
          %p338 = pneg %p111
        $region62: #{tpu_custom_call.1} parent=47 // pred_check_branch
          %340 = sbr.rel (%p338) target = $region64
        $region63: #{tpu_custom_call.1} parent=47 // pred_region
          %342 = dma.done [#allocation9], 16384
        $region64: #{tpu_custom_call.1} parent=47 // pred_fallthru
          _
        // Predicated region
        $region65: #{tpu_custom_call.1} parent=47 // pred_check
          %p343 = pneg %p132
        $region66: #{tpu_custom_call.1} parent=47 // pred_check_branch
          %345 = sbr.rel (%p343) target = $region68
        $region67: #{tpu_custom_call.1} parent=47 // pred_region
          %347 = dma.done [#allocation9], 64
        $region68: #{tpu_custom_call.1} parent=47 // pred_fallthru
          _
        // Predicated region
        $region69: #{tpu_custom_call.1} parent=47 // pred_check
          %p348 = pneg %p153
        $region70: #{tpu_custom_call.1} parent=47 // pred_check_branch
          %350 = sbr.rel (%p348) target = $region72
        $region71: #{tpu_custom_call.1} parent=47 // pred_region
          %352 = dma.done [#allocation12], 4096
        $region72: #{tpu_custom_call.1} parent=47 // pred_fallthru
          _
        %s353 = sand.u32 %s35, 1
        %s354 = scalar_lea.sflag [#allocation3], %s353
        %s355 = sand.u32 %s35, 1
        %s356 = smul.addr %s355, 336
        %s357 = scalar_lea.vmem [#allocation2], %s356
        %p358 = pneg %p48
        %p359 = pneg %p45
        %p360 = pneg %p69
        %p361 = pneg %p66
        %p362 = pneg %p90
        %p363 = pneg %p87
        %p364 = pneg %p111
        %p365 = pneg %p108
        %p366 = pneg %p132
        %p367 = pneg %p129
        %p368 = pneg %p153
        %p369 = pneg %p150
        %p370 = pneg %p174
        %p371 = pneg %p171
        %p372 = pneg %p200
        %p373 = pneg %p197
        %s374 = sand.u32 %s187, 1
        %s375 = scalar_lea.sflag [#allocation4], %s374
        %s376 = sand.u32 %s187, 1
        %s377 = smul.addr %s376, 24
        %s378 = scalar_lea.vmem [#allocation13], %s377
        %s379 = smul.u32 6, %s27
        %s380 = smul.u32 6, %s27
        %v382 = vld [vmem:[%s322] sm:$0xff]
        %v383 = vld [vmem:[%s322 + $0x8] sm:$0xff]
        %v384 = vld [vmem:[%s322 + $0x10] sm:$0xff]
        %v385 = vld [vmem:[%s322 + $0x18] sm:$0xff]
        %v386 = vld [vmem:[%s322 + $0x20] sm:$0xff]
        %v387 = vld [vmem:[%s322 + $0x28] sm:$0xff]
        %v388 = vld [vmem:[%s322 + $0x30] sm:$0xff]
        %v389 = vld [vmem:[%s322 + $0x38] sm:$0xff]
        %v390 = vld [vmem:[%s322 + $0x40] sm:$0xff]
        %v391 = vld [vmem:[%s322 + $0x48] sm:$0xff]
        %v392 = vld [vmem:[%s322 + $0x50] sm:$0xff]
        %v393 = vld [vmem:[%s322 + $0x58] sm:$0xff]
        %v394 = vld [vmem:[%s322 + $0x60] sm:$0xff]
        %v395 = vld [vmem:[%s322 + $0x68] sm:$0xff]
        %v396 = vld [vmem:[%s322 + $0x70] sm:$0xff]
        %v397 = vld [vmem:[%s322 + $0x78] sm:$0xff]
        %v398 = vld [vmem:[%s322 + $0x80] sm:$0xff]
        %v399 = vld [vmem:[%s322 + $0x88] sm:$0xff]
        %v400 = vld [vmem:[%s322 + $0x90] sm:$0xff]
        %v401 = vld [vmem:[%s322 + $0x98] sm:$0xff]
        %v402 = vld [vmem:[%s322 + $0xa0] sm:$0xff]
        %v403 = vld [vmem:[%s322 + $0xa8] sm:$0xff]
        %v404 = vld [vmem:[%s322 + $0xb0] sm:$0xff]
        %v405 = vld [vmem:[%s322 + $0xb8] sm:$0xff]
        %v406 = vld [vmem:[%s322 + $0xc0] sm:$0xff]
        %v407 = vld [vmem:[%s322 + $0xc8] sm:$0xff]
        %v408 = vld [vmem:[%s322 + $0xd0] sm:$0xff]
        %v409 = vld [vmem:[%s322 + $0xd8] sm:$0xff]
        %v410 = vld [vmem:[%s322 + $0xe0] sm:$0xff]
        %v411 = vld [vmem:[%s322 + $0xe8] sm:$0xff]
        %v412 = vld [vmem:[%s322 + $0xf0] sm:$0xff]
        %v413 = vld [vmem:[%s322 + $0xf8] sm:$0xff]
        %v414 = vld [vmem:[%s322 + $0x100] sm:$0xff]
        %v415 = vld [vmem:[%s322 + $0x108] sm:$0xff]
        %v416 = vld [vmem:[%s322 + $0x110] sm:$0xff]
        %v417 = vld [vmem:[%s322 + $0x118] sm:$0xff]
        %v418 = vld [vmem:[%s322 + $0x120] sm:$0xff]
        %v419 = vld [vmem:[%s322 + $0x128] sm:$0xff]
        %v420 = vld [vmem:[%s322 + $0x130] sm:$0xff]
        %v421 = vld [vmem:[%s322 + $0x138] sm:$0xff]
        %v422 = vld [vmem:[%s322 + $0x140] sm:$0xff]
        %v423 = vld [vmem:[%s322 + $0x148] sm:$0xff]
        %v424 = vpack.c.bf16 %v389, %v382
        %v425 = vpack.c.bf16 %v390, %v383
        %v426 = vpack.c.bf16 %v391, %v384
        %v427 = vpack.c.bf16 %v392, %v385
        %v428 = vpack.c.bf16 %v393, %v386
        %v429 = vpack.c.bf16 %v394, %v387
        %v430 = vpack.c.bf16 %v395, %v388
        %v431 = vpack.c.bf16 %v403, %v396
        %v432 = vpack.c.bf16 %v404, %v397
        %v433 = vpack.c.bf16 %v405, %v398
        %v434 = vpack.c.bf16 %v406, %v399
        %v435 = vpack.c.bf16 %v407, %v400
        %v436 = vpack.c.bf16 %v408, %v401
        %v437 = vpack.c.bf16 %v409, %v402
        %v438 = vpack.c.bf16 %v417, %v410
        %v439 = vpack.c.bf16 %v418, %v411
        %v440 = vpack.c.bf16 %v419, %v412
        %v441 = vpack.c.bf16 %v420, %v413
        %v442 = vpack.c.bf16 %v421, %v414
        %v443 = vpack.c.bf16 %v422, %v415
        %v444 = vpack.c.bf16 %v423, %v416
        %v445 = vld [vmem:[#allocation5] sm:$0xff]
        %v446 = vld [vmem:[#allocation5 + $0x8] sm:$0xff]
        %v447 = vld [vmem:[#allocation5 + $0x10] sm:$0xff]
        %v448 = vld [vmem:[#allocation5 + $0x18] sm:$0xff]
        %v449 = vld [vmem:[#allocation5 + $0x20] sm:$0xff]
        %v450 = vld [vmem:[#allocation5 + $0x28] sm:$0xff]
        %v451 = vld [vmem:[#allocation5 + $0x30] sm:$0xff]
        %v452 = vld [vmem:[#allocation5 + $0x38] sm:$0xff]
        %v453 = vld [vmem:[#allocation5 + $0x40] sm:$0xff]
        %v454 = vld [vmem:[#allocation5 + $0x48] sm:$0xff]
        %v455 = vld [vmem:[#allocation5 + $0x50] sm:$0xff]
        %v456 = vld [vmem:[#allocation5 + $0x58] sm:$0xff]
        %v457 = vld [vmem:[#allocation5 + $0x60] sm:$0xff]
        %v458 = vld [vmem:[#allocation5 + $0x68] sm:$0xff]
        %v459 = vld [vmem:[#allocation5 + $0x70] sm:$0xff]
        %v460 = vld [vmem:[#allocation5 + $0x78] sm:$0xff]
        %v461 = vld [vmem:[#allocation5 + $0x80] sm:$0xff]
        %v462 = vld [vmem:[#allocation5 + $0x88] sm:$0xff]
        %v463 = vld [vmem:[#allocation5 + $0x90] sm:$0xff]
        %v464 = vld [vmem:[#allocation5 + $0x98] sm:$0xff]
        %v465 = vld [vmem:[#allocation5 + $0xa0] sm:$0xff]
        %v466 = vld [vmem:[#allocation5 + $0xa8] sm:$0xff]
        %v467 = vld [vmem:[#allocation5 + $0xb0] sm:$0xff]
        %v468 = vld [vmem:[#allocation5 + $0xb8] sm:$0xff]
        %v469 = vld [vmem:[#allocation5 + $0xc0] sm:$0xff]
        %v470 = vld [vmem:[#allocation5 + $0xc8] sm:$0xff]
        %v471 = vld [vmem:[#allocation5 + $0xd0] sm:$0xff]
        %v472 = vld [vmem:[#allocation5 + $0xd8] sm:$0xff]
        %v473 = vld [vmem:[#allocation5 + $0xe0] sm:$0xff]
        %v474 = vld [vmem:[#allocation5 + $0xe8] sm:$0xff]
        %v475 = vld [vmem:[#allocation5 + $0xf0] sm:$0xff]
        %v476 = vld [vmem:[#allocation5 + $0xf8] sm:$0xff]
        %v477 = vld [vmem:[#allocation5 + $0x100] sm:$0xff]
        %v478 = vld [vmem:[#allocation5 + $0x108] sm:$0xff]
        %v479 = vld [vmem:[#allocation5 + $0x110] sm:$0xff]
        %v480 = vld [vmem:[#allocation5 + $0x118] sm:$0xff]
        %v481 = vld [vmem:[#allocation5 + $0x120] sm:$0xff]
        %v482 = vld [vmem:[#allocation5 + $0x128] sm:$0xff]
        %v483 = vld [vmem:[#allocation5 + $0x130] sm:$0xff]
        %v484 = vld [vmem:[#allocation5 + $0x138] sm:$0xff]
        %v485 = vld [vmem:[#allocation5 + $0x140] sm:$0xff]
        %v486 = vld [vmem:[#allocation5 + $0x148] sm:$0xff]
        %v487 = vld [vmem:[#allocation5 + $0x150] sm:$0xff]
        %v488 = vld [vmem:[#allocation5 + $0x158] sm:$0xff]
        %v489 = vld [vmem:[#allocation5 + $0x160] sm:$0xff]
        %v490 = vld [vmem:[#allocation5 + $0x168] sm:$0xff]
        %v491 = vld [vmem:[#allocation5 + $0x170] sm:$0xff]
        %v492 = vld [vmem:[#allocation5 + $0x178] sm:$0xff]
        %v493 = vld [vmem:[#allocation5 + $0x180] sm:$0xff]
        %v494 = vld [vmem:[#allocation5 + $0x188] sm:$0xff]
        %v495 = vld [vmem:[#allocation5 + $0x190] sm:$0xff]
        %v496 = vld [vmem:[#allocation5 + $0x198] sm:$0xff]
        %v497 = vld [vmem:[#allocation5 + $0x1a0] sm:$0xff]
        %v498 = vld [vmem:[#allocation5 + $0x1a8] sm:$0xff]
        %v499 = vld [vmem:[#allocation5 + $0x1b0] sm:$0xff]
        %v500 = vld [vmem:[#allocation5 + $0x1b8] sm:$0xff]
        %v501 = vld [vmem:[#allocation5 + $0x1c0] sm:$0xff]
        %v502 = vld [vmem:[#allocation5 + $0x1c8] sm:$0xff]
        %v503 = vld [vmem:[#allocation5 + $0x1d0] sm:$0xff]
        %v504 = vld [vmem:[#allocation5 + $0x1d8] sm:$0xff]
        %v505 = vld [vmem:[#allocation5 + $0x1e0] sm:$0xff]
        %v506 = vld [vmem:[#allocation5 + $0x1e8] sm:$0xff]
        %v507 = vld [vmem:[#allocation5 + $0x1f0] sm:$0xff]
        %v508 = vld [vmem:[#allocation5 + $0x1f8] sm:$0xff]
        %v509 = vld [vmem:[#allocation5 + $0x200] sm:$0xff]
        %v510 = vld [vmem:[#allocation5 + $0x208] sm:$0xff]
        %v511 = vld [vmem:[#allocation5 + $0x210] sm:$0xff]
        %v512 = vld [vmem:[#allocation5 + $0x218] sm:$0xff]
        %v513 = vld [vmem:[#allocation5 + $0x220] sm:$0xff]
        %v514 = vld [vmem:[#allocation5 + $0x228] sm:$0xff]
        %v515 = vld [vmem:[#allocation5 + $0x230] sm:$0xff]
        %v516 = vld [vmem:[#allocation5 + $0x238] sm:$0xff]
        %v517 = vld [vmem:[#allocation5 + $0x240] sm:$0xff]
        %v518 = vld [vmem:[#allocation5 + $0x248] sm:$0xff]
        %v519 = vld [vmem:[#allocation5 + $0x250] sm:$0xff]
        %v520 = vld [vmem:[#allocation5 + $0x258] sm:$0xff]
        %v521 = vld [vmem:[#allocation5 + $0x260] sm:$0xff]
        %v522 = vld [vmem:[#allocation5 + $0x268] sm:$0xff]
        %v523 = vld [vmem:[#allocation5 + $0x270] sm:$0xff]
        %v524 = vld [vmem:[#allocation5 + $0x278] sm:$0xff]
        %v525 = vld [vmem:[#allocation5 + $0x280] sm:$0xff]
        %v526 = vld [vmem:[#allocation5 + $0x288] sm:$0xff]
        %v527 = vld [vmem:[#allocation5 + $0x290] sm:$0xff]
        %v528 = vld [vmem:[#allocation5 + $0x298] sm:$0xff]
        %v529 = vld [vmem:[#allocation5 + $0x2a0] sm:$0xff]
        %v530 = vld [vmem:[#allocation5 + $0x2a8] sm:$0xff]
        %v531 = vld [vmem:[#allocation5 + $0x2b0] sm:$0xff]
        %v532 = vld [vmem:[#allocation5 + $0x2b8] sm:$0xff]
        %v533 = vld [vmem:[#allocation5 + $0x2c0] sm:$0xff]
        %v534 = vld [vmem:[#allocation5 + $0x2c8] sm:$0xff]
        %v535 = vld [vmem:[#allocation5 + $0x2d0] sm:$0xff]
        %v536 = vld [vmem:[#allocation5 + $0x2d8] sm:$0xff]
        %v537 = vld [vmem:[#allocation5 + $0x2e0] sm:$0xff]
        %v538 = vld [vmem:[#allocation5 + $0x2e8] sm:$0xff]
        %v539 = vld [vmem:[#allocation5 + $0x2f0] sm:$0xff]
        %v540 = vld [vmem:[#allocation5 + $0x2f8] sm:$0xff]
        %v541 = vld [vmem:[#allocation5 + $0x300] sm:$0xff]
        %v542 = vld [vmem:[#allocation5 + $0x308] sm:$0xff]
        %v543 = vld [vmem:[#allocation5 + $0x310] sm:$0xff]
        %v544 = vld [vmem:[#allocation5 + $0x318] sm:$0xff]
        %v545 = vld [vmem:[#allocation5 + $0x320] sm:$0xff]
        %v546 = vld [vmem:[#allocation5 + $0x328] sm:$0xff]
        %v547 = vld [vmem:[#allocation5 + $0x330] sm:$0xff]
        %v548 = vld [vmem:[#allocation5 + $0x338] sm:$0xff]
        %v549 = vld [vmem:[#allocation5 + $0x340] sm:$0xff]
        %v550 = vld [vmem:[#allocation5 + $0x348] sm:$0xff]
        %v551 = vld [vmem:[#allocation5 + $0x350] sm:$0xff]
        %v552 = vld [vmem:[#allocation5 + $0x358] sm:$0xff]
        %v553 = vld [vmem:[#allocation5 + $0x360] sm:$0xff]
        %v554 = vld [vmem:[#allocation5 + $0x368] sm:$0xff]
        %v555 = vld [vmem:[#allocation5 + $0x370] sm:$0xff]
        %v556 = vld [vmem:[#allocation5 + $0x378] sm:$0xff]
        %v557 = vld [vmem:[#allocation5 + $0x380] sm:$0xff]
        %v558 = vld [vmem:[#allocation5 + $0x388] sm:$0xff]
        %v559 = vld [vmem:[#allocation5 + $0x390] sm:$0xff]
        %v560 = vld [vmem:[#allocation5 + $0x398] sm:$0xff]
        %v561 = vld [vmem:[#allocation5 + $0x3a0] sm:$0xff]
        %v562 = vld [vmem:[#allocation5 + $0x3a8] sm:$0xff]
        %v563 = vld [vmem:[#allocation5 + $0x3b0] sm:$0xff]
        %v564 = vld [vmem:[#allocation5 + $0x3b8] sm:$0xff]
        %v565 = vld [vmem:[#allocation5 + $0x3c0] sm:$0xff]
        %v566 = vld [vmem:[#allocation5 + $0x3c8] sm:$0xff]
        %v567 = vld [vmem:[#allocation5 + $0x3d0] sm:$0xff]
        %v568 = vld [vmem:[#allocation5 + $0x3d8] sm:$0xff]
        %v569 = vld [vmem:[#allocation5 + $0x3e0] sm:$0xff]
        %v570 = vld [vmem:[#allocation5 + $0x3e8] sm:$0xff]
        %v571 = vld [vmem:[#allocation5 + $0x3f0] sm:$0xff]
        %v572 = vld [vmem:[#allocation5 + $0x3f8] sm:$0xff]
        %v573 = vld [vmem:[#allocation5 + $0x400] sm:$0xff]
        %v574 = vld [vmem:[#allocation5 + $0x408] sm:$0xff]
        %v575 = vld [vmem:[#allocation5 + $0x410] sm:$0xff]
        %v576 = vld [vmem:[#allocation5 + $0x418] sm:$0xff]
        %v577 = vld [vmem:[#allocation5 + $0x420] sm:$0xff]
        %v578 = vld [vmem:[#allocation5 + $0x428] sm:$0xff]
        %v579 = vld [vmem:[#allocation5 + $0x430] sm:$0xff]
        %v580 = vld [vmem:[#allocation5 + $0x438] sm:$0xff]
        %v581 = vld [vmem:[#allocation5 + $0x440] sm:$0xff]
        %v582 = vld [vmem:[#allocation5 + $0x448] sm:$0xff]
        %v583 = vld [vmem:[#allocation5 + $0x450] sm:$0xff]
        %v584 = vld [vmem:[#allocation5 + $0x458] sm:$0xff]
        %v585 = vld [vmem:[#allocation5 + $0x460] sm:$0xff]
        %v586 = vld [vmem:[#allocation5 + $0x468] sm:$0xff]
        %v587 = vld [vmem:[#allocation5 + $0x470] sm:$0xff]
        %v588 = vld [vmem:[#allocation5 + $0x478] sm:$0xff]
        %v589 = vld [vmem:[#allocation5 + $0x480] sm:$0xff]
        %v590 = vld [vmem:[#allocation5 + $0x488] sm:$0xff]
        %v591 = vld [vmem:[#allocation5 + $0x490] sm:$0xff]
        %v592 = vld [vmem:[#allocation5 + $0x498] sm:$0xff]
        %v593 = vld [vmem:[#allocation5 + $0x4a0] sm:$0xff]
        %v594 = vld [vmem:[#allocation5 + $0x4a8] sm:$0xff]
        %v595 = vld [vmem:[#allocation5 + $0x4b0] sm:$0xff]
        %v596 = vld [vmem:[#allocation5 + $0x4b8] sm:$0xff]
        %v597 = vld [vmem:[#allocation5 + $0x4c0] sm:$0xff]
        %v598 = vld [vmem:[#allocation5 + $0x4c8] sm:$0xff]
        %v599 = vld [vmem:[#allocation5 + $0x4d0] sm:$0xff]
        %v600 = vld [vmem:[#allocation5 + $0x4d8] sm:$0xff]
        %v601 = vld [vmem:[#allocation5 + $0x4e0] sm:$0xff]
        %v602 = vld [vmem:[#allocation5 + $0x4e8] sm:$0xff]
        %v603 = vld [vmem:[#allocation5 + $0x4f0] sm:$0xff]
        %v604 = vld [vmem:[#allocation5 + $0x4f8] sm:$0xff]
        %v605 = vld [vmem:[#allocation5 + $0x500] sm:$0xff]
        %v606 = vld [vmem:[#allocation5 + $0x508] sm:$0xff]
        %v607 = vld [vmem:[#allocation5 + $0x510] sm:$0xff]
        %v608 = vld [vmem:[#allocation5 + $0x518] sm:$0xff]
        %v609 = vld [vmem:[#allocation5 + $0x520] sm:$0xff]
        %v610 = vld [vmem:[#allocation5 + $0x528] sm:$0xff]
        %v611 = vld [vmem:[#allocation5 + $0x530] sm:$0xff]
        %v612 = vld [vmem:[#allocation5 + $0x538] sm:$0xff]
        %v613 = vld [vmem:[#allocation5 + $0x540] sm:$0xff]
        %v614 = vld [vmem:[#allocation5 + $0x548] sm:$0xff]
        %v615 = vld [vmem:[#allocation5 + $0x550] sm:$0xff]
        %v616 = vld [vmem:[#allocation5 + $0x558] sm:$0xff]
        %v617 = vld [vmem:[#allocation5 + $0x560] sm:$0xff]
        %v618 = vld [vmem:[#allocation5 + $0x568] sm:$0xff]
        %v619 = vld [vmem:[#allocation5 + $0x570] sm:$0xff]
        %v620 = vld [vmem:[#allocation5 + $0x578] sm:$0xff]
        %v621 = vld [vmem:[#allocation5 + $0x580] sm:$0xff]
        %v622 = vld [vmem:[#allocation5 + $0x588] sm:$0xff]
        %v623 = vld [vmem:[#allocation5 + $0x590] sm:$0xff]
        %v624 = vld [vmem:[#allocation5 + $0x598] sm:$0xff]
        %v625 = vld [vmem:[#allocation5 + $0x5a0] sm:$0xff]
        %v626 = vld [vmem:[#allocation5 + $0x5a8] sm:$0xff]
        %v627 = vld [vmem:[#allocation5 + $0x5b0] sm:$0xff]
        %v628 = vld [vmem:[#allocation5 + $0x5b8] sm:$0xff]
        %v629 = vld [vmem:[#allocation5 + $0x5c0] sm:$0xff]
        %v630 = vld [vmem:[#allocation5 + $0x5c8] sm:$0xff]
        %v631 = vld [vmem:[#allocation5 + $0x5d0] sm:$0xff]
        %v632 = vld [vmem:[#allocation5 + $0x5d8] sm:$0xff]
        %v633 = vld [vmem:[#allocation5 + $0x5e0] sm:$0xff]
        %v634 = vld [vmem:[#allocation5 + $0x5e8] sm:$0xff]
        %v635 = vld [vmem:[#allocation5 + $0x5f0] sm:$0xff]
        %v636 = vld [vmem:[#allocation5 + $0x5f8] sm:$0xff]
        %v637 = vld [vmem:[#allocation5 + $0x600] sm:$0xff]
        %v638 = vld [vmem:[#allocation5 + $0x608] sm:$0xff]
        %v639 = vld [vmem:[#allocation5 + $0x610] sm:$0xff]
        %v640 = vld [vmem:[#allocation5 + $0x618] sm:$0xff]
        %v641 = vld [vmem:[#allocation7] sm:$0xf]
        %v643 = vperm.slane %v641, 0
        %v644 = vperm.slane %v641, 1
        %v645 = vperm.slane %v641, 2
        %v646 = vperm.slane %v641, 3
        %v847 = vunpack.c.l.b16 %v445
        %v848 = vunpack.c.h.b16 %v445
        %v849 = vunpack.c.l.b16 %v446
        %v850 = vunpack.c.h.b16 %v446
        %v851 = vunpack.c.l.b16 %v447
        %v852 = vunpack.c.h.b16 %v447
        %v853 = vunpack.c.l.b16 %v448
        %v854 = vunpack.c.h.b16 %v448
        %v855 = vunpack.c.l.b16 %v449
        %v856 = vunpack.c.h.b16 %v449
        %v857 = vunpack.c.l.b16 %v450
        %v858 = vunpack.c.h.b16 %v450
        %v859 = vunpack.c.l.b16 %v451
        %v860 = vunpack.c.h.b16 %v451
        %v861 = vunpack.c.l.b16 %v452
        %v862 = vunpack.c.h.b16 %v452
        %v863 = vunpack.c.l.b16 %v453
        %v864 = vunpack.c.h.b16 %v453
        %v865 = vunpack.c.l.b16 %v454
        %v866 = vunpack.c.h.b16 %v454
        %v867 = vunpack.c.l.b16 %v455
        %v868 = vunpack.c.h.b16 %v455
        %v869 = vunpack.c.l.b16 %v456
        %v870 = vunpack.c.h.b16 %v456
        %v871 = vunpack.c.l.b16 %v457
        %v872 = vunpack.c.h.b16 %v457
        %v873 = vunpack.c.l.b16 %v458
        %v874 = vunpack.c.h.b16 %v458
        %v875 = vunpack.c.l.b16 %v459
        %v876 = vunpack.c.h.b16 %v459
        %v877 = vunpack.c.l.b16 %v460
        %v878 = vunpack.c.h.b16 %v460
        %v879 = vunpack.c.l.b16 %v461
        %v880 = vunpack.c.h.b16 %v461
        %v881 = vunpack.c.l.b16 %v462
        %v882 = vunpack.c.h.b16 %v462
        %v883 = vunpack.c.l.b16 %v463
        %v884 = vunpack.c.h.b16 %v463
        %v885 = vunpack.c.l.b16 %v464
        %v886 = vunpack.c.h.b16 %v464
        %v887 = vunpack.c.l.b16 %v465
        %v888 = vunpack.c.h.b16 %v465
        %v889 = vunpack.c.l.b16 %v466
        %v890 = vunpack.c.h.b16 %v466
        %v891 = vunpack.c.l.b16 %v467
        %v892 = vunpack.c.h.b16 %v467
        %v893 = vunpack.c.l.b16 %v468
        %v894 = vunpack.c.h.b16 %v468
        %v895 = vunpack.c.l.b16 %v469
        %v896 = vunpack.c.h.b16 %v469
        %v897 = vunpack.c.l.b16 %v470
        %v898 = vunpack.c.h.b16 %v470
        %v899 = vunpack.c.l.b16 %v471
        %v900 = vunpack.c.h.b16 %v471
        %v901 = vunpack.c.l.b16 %v472
        %v902 = vunpack.c.h.b16 %v472
        %v903 = vunpack.c.l.b16 %v473
        %v904 = vunpack.c.h.b16 %v473
        %v905 = vunpack.c.l.b16 %v474
        %v906 = vunpack.c.h.b16 %v474
        %v907 = vunpack.c.l.b16 %v475
        %v908 = vunpack.c.h.b16 %v475
        %v909 = vunpack.c.l.b16 %v476
        %v910 = vunpack.c.h.b16 %v476
        %v911 = vunpack.c.l.b16 %v477
        %v912 = vunpack.c.h.b16 %v477
        %v913 = vunpack.c.l.b16 %v478
        %v914 = vunpack.c.h.b16 %v478
        %v915 = vunpack.c.l.b16 %v479
        %v916 = vunpack.c.h.b16 %v479
        %v917 = vunpack.c.l.b16 %v480
        %v918 = vunpack.c.h.b16 %v480
        %v919 = vunpack.c.l.b16 %v481
        %v920 = vunpack.c.h.b16 %v481
        %v921 = vunpack.c.l.b16 %v482
        %v922 = vunpack.c.h.b16 %v482
        %v923 = vunpack.c.l.b16 %v483
        %v924 = vunpack.c.h.b16 %v483
        %v925 = vunpack.c.l.b16 %v484
        %v926 = vunpack.c.h.b16 %v484
        %v927 = vunpack.c.l.b16 %v485
        %v928 = vunpack.c.h.b16 %v485
        %v929 = vunpack.c.l.b16 %v486
        %v930 = vunpack.c.h.b16 %v486
        %v931 = vunpack.c.l.b16 %v487
        %v932 = vunpack.c.h.b16 %v487
        %v933 = vunpack.c.l.b16 %v488
        %v934 = vunpack.c.h.b16 %v488
        %v935 = vunpack.c.l.b16 %v489
        %v936 = vunpack.c.h.b16 %v489
        %v937 = vunpack.c.l.b16 %v490
        %v938 = vunpack.c.h.b16 %v490
        %v939 = vunpack.c.l.b16 %v491
        %v940 = vunpack.c.h.b16 %v491
        %v941 = vunpack.c.l.b16 %v492
        %v942 = vunpack.c.h.b16 %v492
        %v943 = vunpack.c.l.b16 %v493
        %v944 = vunpack.c.h.b16 %v493
        %v945 = vunpack.c.l.b16 %v494
        %v946 = vunpack.c.h.b16 %v494
        %v947 = vunpack.c.l.b16 %v495
        %v948 = vunpack.c.h.b16 %v495
        %v949 = vunpack.c.l.b16 %v496
        %v950 = vunpack.c.h.b16 %v496
        %v951 = vunpack.c.l.b16 %v497
        %v952 = vunpack.c.h.b16 %v497
        %v953 = vunpack.c.l.b16 %v498
        %v954 = vunpack.c.h.b16 %v498
        %v955 = vunpack.c.l.b16 %v499
        %v956 = vunpack.c.h.b16 %v499
        %v957 = vunpack.c.l.b16 %v500
        %v958 = vunpack.c.h.b16 %v500
        %v959 = vunpack.c.l.b16 %v501
        %v960 = vunpack.c.h.b16 %v501
        %v961 = vunpack.c.l.b16 %v502
        %v962 = vunpack.c.h.b16 %v502
        %v963 = vunpack.c.l.b16 %v503
        %v964 = vunpack.c.h.b16 %v503
        %v965 = vunpack.c.l.b16 %v504
        %v966 = vunpack.c.h.b16 %v504
        %v967 = vunpack.c.l.b16 %v505
        %v968 = vunpack.c.h.b16 %v505
        %v969 = vunpack.c.l.b16 %v506
        %v970 = vunpack.c.h.b16 %v506
        %v971 = vunpack.c.l.b16 %v507
        %v972 = vunpack.c.h.b16 %v507
        %v973 = vunpack.c.l.b16 %v508
        %v974 = vunpack.c.h.b16 %v508
        %v975 = vunpack.c.l.b16 %v509
        %v976 = vunpack.c.h.b16 %v509
        %v977 = vunpack.c.l.b16 %v510
        %v978 = vunpack.c.h.b16 %v510
        %v979 = vunpack.c.l.b16 %v511
        %v980 = vunpack.c.h.b16 %v511
        %v981 = vunpack.c.l.b16 %v512
        %v982 = vunpack.c.h.b16 %v512
        %v983 = vunpack.c.l.b16 %v513
        %v984 = vunpack.c.h.b16 %v513
        %v985 = vunpack.c.l.b16 %v514
        %v986 = vunpack.c.h.b16 %v514
        %v987 = vunpack.c.l.b16 %v515
        %v988 = vunpack.c.h.b16 %v515
        %v989 = vunpack.c.l.b16 %v516
        %v990 = vunpack.c.h.b16 %v516
        %v991 = vunpack.c.l.b16 %v517
        %v992 = vunpack.c.h.b16 %v517
        %v993 = vunpack.c.l.b16 %v518
        %v994 = vunpack.c.h.b16 %v518
        %v995 = vunpack.c.l.b16 %v519
        %v996 = vunpack.c.h.b16 %v519
        %v997 = vunpack.c.l.b16 %v520
        %v998 = vunpack.c.h.b16 %v520
        %v999 = vunpack.c.l.b16 %v521
        %v1000 = vunpack.c.h.b16 %v521
        %v1001 = vunpack.c.l.b16 %v522
        %v1002 = vunpack.c.h.b16 %v522
        %v1003 = vunpack.c.l.b16 %v523
        %v1004 = vunpack.c.h.b16 %v523
        %v1005 = vunpack.c.l.b16 %v524
        %v1006 = vunpack.c.h.b16 %v524
        %v1007 = vunpack.c.l.b16 %v525
        %v1008 = vunpack.c.h.b16 %v525
        %v1009 = vunpack.c.l.b16 %v526
        %v1010 = vunpack.c.h.b16 %v526
        %v1011 = vunpack.c.l.b16 %v527
        %v1012 = vunpack.c.h.b16 %v527
        %v1013 = vunpack.c.l.b16 %v528
        %v1014 = vunpack.c.h.b16 %v528
        %v1015 = vunpack.c.l.b16 %v529
        %v1016 = vunpack.c.h.b16 %v529
        %v1017 = vunpack.c.l.b16 %v530
        %v1018 = vunpack.c.h.b16 %v530
        %v1019 = vunpack.c.l.b16 %v531
        %v1020 = vunpack.c.h.b16 %v531
        %v1021 = vunpack.c.l.b16 %v532
        %v1022 = vunpack.c.h.b16 %v532
        %v1023 = vunpack.c.l.b16 %v533
        %v1024 = vunpack.c.h.b16 %v533
        %v1025 = vunpack.c.l.b16 %v534
        %v1026 = vunpack.c.h.b16 %v534
        %v1027 = vunpack.c.l.b16 %v535
        %v1028 = vunpack.c.h.b16 %v535
        %v1029 = vunpack.c.l.b16 %v536
        %v1030 = vunpack.c.h.b16 %v536
        %v1031 = vunpack.c.l.b16 %v537
        %v1032 = vunpack.c.h.b16 %v537
        %v1033 = vunpack.c.l.b16 %v538
        %v1034 = vunpack.c.h.b16 %v538
        %v1035 = vunpack.c.l.b16 %v539
        %v1036 = vunpack.c.h.b16 %v539
        %v1037 = vunpack.c.l.b16 %v540
        %v1038 = vunpack.c.h.b16 %v540
        %v1039 = vunpack.c.l.b16 %v541
        %v1040 = vunpack.c.h.b16 %v541
        %v1041 = vunpack.c.l.b16 %v542
        %v1042 = vunpack.c.h.b16 %v542
        %v1043 = vunpack.c.l.b16 %v543
        %v1044 = vunpack.c.h.b16 %v543
        %v1045 = vunpack.c.l.b16 %v544
        %v1046 = vunpack.c.h.b16 %v544
        %v1047 = vunpack.c.l.b16 %v545
        %v1048 = vunpack.c.h.b16 %v545
        %v1049 = vunpack.c.l.b16 %v546
        %v1050 = vunpack.c.h.b16 %v546
        %v1051 = vunpack.c.l.b16 %v547
        %v1052 = vunpack.c.h.b16 %v547
        %v1053 = vunpack.c.l.b16 %v548
        %v1054 = vunpack.c.h.b16 %v548
        %v1055 = vunpack.c.l.b16 %v549
        %v1056 = vunpack.c.h.b16 %v549
        %v1057 = vunpack.c.l.b16 %v550
        %v1058 = vunpack.c.h.b16 %v550
        %v1059 = vunpack.c.l.b16 %v551
        %v1060 = vunpack.c.h.b16 %v551
        %v1061 = vunpack.c.l.b16 %v552
        %v1062 = vunpack.c.h.b16 %v552
        %v1063 = vunpack.c.l.b16 %v553
        %v1064 = vunpack.c.h.b16 %v553
        %v1065 = vunpack.c.l.b16 %v554
        %v1066 = vunpack.c.h.b16 %v554
        %v1067 = vunpack.c.l.b16 %v555
        %v1068 = vunpack.c.h.b16 %v555
        %v1069 = vunpack.c.l.b16 %v556
        %v1070 = vunpack.c.h.b16 %v556
        %v1071 = vunpack.c.l.b16 %v557
        %v1072 = vunpack.c.h.b16 %v557
        %v1073 = vunpack.c.l.b16 %v558
        %v1074 = vunpack.c.h.b16 %v558
        %v1075 = vunpack.c.l.b16 %v559
        %v1076 = vunpack.c.h.b16 %v559
        %v1077 = vunpack.c.l.b16 %v560
        %v1078 = vunpack.c.h.b16 %v560
        %v1079 = vunpack.c.l.b16 %v561
        %v1080 = vunpack.c.h.b16 %v561
        %v1081 = vunpack.c.l.b16 %v562
        %v1082 = vunpack.c.h.b16 %v562
        %v1083 = vunpack.c.l.b16 %v563
        %v1084 = vunpack.c.h.b16 %v563
        %v1085 = vunpack.c.l.b16 %v564
        %v1086 = vunpack.c.h.b16 %v564
        %v1087 = vunpack.c.l.b16 %v565
        %v1088 = vunpack.c.h.b16 %v565
        %v1089 = vunpack.c.l.b16 %v566
        %v1090 = vunpack.c.h.b16 %v566
        %v1091 = vunpack.c.l.b16 %v567
        %v1092 = vunpack.c.h.b16 %v567
        %v1093 = vunpack.c.l.b16 %v568
        %v1094 = vunpack.c.h.b16 %v568
        %v1095 = vunpack.c.l.b16 %v569
        %v1096 = vunpack.c.h.b16 %v569
        %v1097 = vunpack.c.l.b16 %v570
        %v1098 = vunpack.c.h.b16 %v570
        %v1099 = vunpack.c.l.b16 %v571
        %v1100 = vunpack.c.h.b16 %v571
        %v1101 = vunpack.c.l.b16 %v572
        %v1102 = vunpack.c.h.b16 %v572
        %v1103 = vunpack.c.l.b16 %v573
        %v1104 = vunpack.c.h.b16 %v573
        %v1105 = vunpack.c.l.b16 %v574
        %v1106 = vunpack.c.h.b16 %v574
        %v1107 = vunpack.c.l.b16 %v575
        %v1108 = vunpack.c.h.b16 %v575
        %v1109 = vunpack.c.l.b16 %v576
        %v1110 = vunpack.c.h.b16 %v576
        %v1111 = vunpack.c.l.b16 %v577
        %v1112 = vunpack.c.h.b16 %v577
        %v1113 = vunpack.c.l.b16 %v578
        %v1114 = vunpack.c.h.b16 %v578
        %v1115 = vunpack.c.l.b16 %v579
        %v1116 = vunpack.c.h.b16 %v579
        %v1117 = vunpack.c.l.b16 %v580
        %v1118 = vunpack.c.h.b16 %v580
        %v1119 = vunpack.c.l.b16 %v581
        %v1120 = vunpack.c.h.b16 %v581
        %v1121 = vunpack.c.l.b16 %v582
        %v1122 = vunpack.c.h.b16 %v582
        %v1123 = vunpack.c.l.b16 %v583
        %v1124 = vunpack.c.h.b16 %v583
        %v1125 = vunpack.c.l.b16 %v584
        %v1126 = vunpack.c.h.b16 %v584
        %v1127 = vunpack.c.l.b16 %v585
        %v1128 = vunpack.c.h.b16 %v585
        %v1129 = vunpack.c.l.b16 %v586
        %v1130 = vunpack.c.h.b16 %v586
        %v1131 = vunpack.c.l.b16 %v587
        %v1132 = vunpack.c.h.b16 %v587
        %v1133 = vunpack.c.l.b16 %v588
        %v1134 = vunpack.c.h.b16 %v588
        %v1135 = vunpack.c.l.b16 %v589
        %v1136 = vunpack.c.h.b16 %v589
        %v1137 = vunpack.c.l.b16 %v590
        %v1138 = vunpack.c.h.b16 %v590
        %v1139 = vunpack.c.l.b16 %v591
        %v1140 = vunpack.c.h.b16 %v591
        %v1141 = vunpack.c.l.b16 %v592
        %v1142 = vunpack.c.h.b16 %v592
        %v1143 = vunpack.c.l.b16 %v593
        %v1144 = vunpack.c.h.b16 %v593
        %v1145 = vunpack.c.l.b16 %v594
        %v1146 = vunpack.c.h.b16 %v594
        %v1147 = vunpack.c.l.b16 %v595
        %v1148 = vunpack.c.h.b16 %v595
        %v1149 = vunpack.c.l.b16 %v596
        %v1150 = vunpack.c.h.b16 %v596
        %v1151 = vunpack.c.l.b16 %v597
        %v1152 = vunpack.c.h.b16 %v597
        %v1153 = vunpack.c.l.b16 %v598
        %v1154 = vunpack.c.h.b16 %v598
        %v1155 = vunpack.c.l.b16 %v599
        %v1156 = vunpack.c.h.b16 %v599
        %v1157 = vunpack.c.l.b16 %v600
        %v1158 = vunpack.c.h.b16 %v600
        %v1159 = vunpack.c.l.b16 %v601
        %v1160 = vunpack.c.h.b16 %v601
        %v1161 = vunpack.c.l.b16 %v602
        %v1162 = vunpack.c.h.b16 %v602
        %v1163 = vunpack.c.l.b16 %v603
        %v1164 = vunpack.c.h.b16 %v603
        %v1165 = vunpack.c.l.b16 %v604
        %v1166 = vunpack.c.h.b16 %v604
        %v1167 = vunpack.c.l.b16 %v605
        %v1168 = vunpack.c.h.b16 %v605
        %v1169 = vunpack.c.l.b16 %v606
        %v1170 = vunpack.c.h.b16 %v606
        %v1171 = vunpack.c.l.b16 %v607
        %v1172 = vunpack.c.h.b16 %v607
        %v1173 = vunpack.c.l.b16 %v608
        %v1174 = vunpack.c.h.b16 %v608
        %v1175 = vunpack.c.l.b16 %v609
        %v1176 = vunpack.c.h.b16 %v609
        %v1177 = vunpack.c.l.b16 %v610
        %v1178 = vunpack.c.h.b16 %v610
        %v1179 = vunpack.c.l.b16 %v611
        %v1180 = vunpack.c.h.b16 %v611
        %v1181 = vunpack.c.l.b16 %v612
        %v1182 = vunpack.c.h.b16 %v612
        %v1183 = vunpack.c.l.b16 %v613
        %v1184 = vunpack.c.h.b16 %v613
        %v1185 = vunpack.c.l.b16 %v614
        %v1186 = vunpack.c.h.b16 %v614
        %v1187 = vunpack.c.l.b16 %v615
        %v1188 = vunpack.c.h.b16 %v615
        %v1189 = vunpack.c.l.b16 %v616
        %v1190 = vunpack.c.h.b16 %v616
        %v1191 = vunpack.c.l.b16 %v617
        %v1192 = vunpack.c.h.b16 %v617
        %v1193 = vunpack.c.l.b16 %v618
        %v1194 = vunpack.c.h.b16 %v618
        %v1195 = vunpack.c.l.b16 %v619
        %v1196 = vunpack.c.h.b16 %v619
        %v1197 = vunpack.c.l.b16 %v620
        %v1198 = vunpack.c.h.b16 %v620
        %v1199 = vunpack.c.l.b16 %v621
        %v1200 = vunpack.c.h.b16 %v621
        %v1201 = vunpack.c.l.b16 %v622
        %v1202 = vunpack.c.h.b16 %v622
        %v1203 = vunpack.c.l.b16 %v623
        %v1204 = vunpack.c.h.b16 %v623
        %v1205 = vunpack.c.l.b16 %v624
        %v1206 = vunpack.c.h.b16 %v624
        %v1207 = vunpack.c.l.b16 %v625
        %v1208 = vunpack.c.h.b16 %v625
        %v1209 = vunpack.c.l.b16 %v626
        %v1210 = vunpack.c.h.b16 %v626
        %v1211 = vunpack.c.l.b16 %v627
        %v1212 = vunpack.c.h.b16 %v627
        %v1213 = vunpack.c.l.b16 %v628
        %v1214 = vunpack.c.h.b16 %v628
        %v1215 = vunpack.c.l.b16 %v629
        %v1216 = vunpack.c.h.b16 %v629
        %v1217 = vunpack.c.l.b16 %v630
        %v1218 = vunpack.c.h.b16 %v630
        %v1219 = vunpack.c.l.b16 %v631
        %v1220 = vunpack.c.h.b16 %v631
        %v1221 = vunpack.c.l.b16 %v632
        %v1222 = vunpack.c.h.b16 %v632
        %v1223 = vunpack.c.l.b16 %v633
        %v1224 = vunpack.c.h.b16 %v633
        %v1225 = vunpack.c.l.b16 %v634
        %v1226 = vunpack.c.h.b16 %v634
        %v1227 = vunpack.c.l.b16 %v635
        %v1228 = vunpack.c.h.b16 %v635
        %v1229 = vunpack.c.l.b16 %v636
        %v1230 = vunpack.c.h.b16 %v636
        %v1231 = vunpack.c.l.b16 %v637
        %v1232 = vunpack.c.h.b16 %v637
        %v1233 = vunpack.c.l.b16 %v638
        %v1234 = vunpack.c.h.b16 %v638
        %v1235 = vunpack.c.l.b16 %v639
        %v1236 = vunpack.c.h.b16 %v639
        %v1237 = vunpack.c.l.b16 %v640
        %v1238 = vunpack.c.h.b16 %v640
        %v1239 = vpack.c.b16 %v851, %v847
        %v1240 = vpack.c.b16 %v852, %v848
        %v1241 = vpack.c.b16 %v853, %v849
        %v1242 = vpack.c.b16 %v854, %v850
        %v1243 = vpack.c.b16 %v859, %v855
        %v1244 = vpack.c.b16 %v860, %v856
        %v1245 = vpack.c.b16 %v861, %v857
        %v1246 = vpack.c.b16 %v862, %v858
        %v1247 = vpack.c.b16 %v867, %v863
        %v1248 = vpack.c.b16 %v868, %v864
        %v1249 = vpack.c.b16 %v869, %v865
        %v1250 = vpack.c.b16 %v870, %v866
        %v1251 = vpack.c.b16 %v875, %v871
        %v1252 = vpack.c.b16 %v876, %v872
        %v1253 = vpack.c.b16 %v877, %v873
        %v1254 = vpack.c.b16 %v878, %v874
        %v1255 = vpack.c.b16 %v883, %v879
        %v1256 = vpack.c.b16 %v884, %v880
        %v1257 = vpack.c.b16 %v885, %v881
        %v1258 = vpack.c.b16 %v886, %v882
        %v1259 = vpack.c.b16 %v891, %v887
        %v1260 = vpack.c.b16 %v892, %v888
        %v1261 = vpack.c.b16 %v893, %v889
        %v1262 = vpack.c.b16 %v894, %v890
        %v1263 = vpack.c.b16 %v899, %v895
        %v1264 = vpack.c.b16 %v900, %v896
        %v1265 = vpack.c.b16 %v901, %v897
        %v1266 = vpack.c.b16 %v902, %v898
        %v1267 = vpack.c.b16 %v907, %v903
        %v1268 = vpack.c.b16 %v908, %v904
        %v1269 = vpack.c.b16 %v909, %v905
        %v1270 = vpack.c.b16 %v910, %v906
        %v1271 = vpack.c.b16 %v915, %v911
        %v1272 = vpack.c.b16 %v916, %v912
        %v1273 = vpack.c.b16 %v917, %v913
        %v1274 = vpack.c.b16 %v918, %v914
        %v1275 = vpack.c.b16 %v923, %v919
        %v1276 = vpack.c.b16 %v924, %v920
        %v1277 = vpack.c.b16 %v925, %v921
        %v1278 = vpack.c.b16 %v926, %v922
        %v1279 = vpack.c.b16 %v931, %v927
        %v1280 = vpack.c.b16 %v932, %v928
        %v1281 = vpack.c.b16 %v933, %v929
        %v1282 = vpack.c.b16 %v934, %v930
        %v1283 = vpack.c.b16 %v939, %v935
        %v1284 = vpack.c.b16 %v940, %v936
        %v1285 = vpack.c.b16 %v941, %v937
        %v1286 = vpack.c.b16 %v942, %v938
        %v1287 = vpack.c.b16 %v947, %v943
        %v1288 = vpack.c.b16 %v948, %v944
        %v1289 = vpack.c.b16 %v949, %v945
        %v1290 = vpack.c.b16 %v950, %v946
        %v1291 = vpack.c.b16 %v955, %v951
        %v1292 = vpack.c.b16 %v956, %v952
        %v1293 = vpack.c.b16 %v957, %v953
        %v1294 = vpack.c.b16 %v958, %v954
        %v1295 = vpack.c.b16 %v963, %v959
        %v1296 = vpack.c.b16 %v964, %v960
        %v1297 = vpack.c.b16 %v965, %v961
        %v1298 = vpack.c.b16 %v966, %v962
        %v1299 = vpack.c.b16 %v971, %v967
        %v1300 = vpack.c.b16 %v972, %v968
        %v1301 = vpack.c.b16 %v973, %v969
        %v1302 = vpack.c.b16 %v974, %v970
        %v1303 = vpack.c.b16 %v979, %v975
        %v1304 = vpack.c.b16 %v980, %v976
        %v1305 = vpack.c.b16 %v981, %v977
        %v1306 = vpack.c.b16 %v982, %v978
        %v1307 = vpack.c.b16 %v987, %v983
        %v1308 = vpack.c.b16 %v988, %v984
        %v1309 = vpack.c.b16 %v989, %v985
        %v1310 = vpack.c.b16 %v990, %v986
        %v1311 = vpack.c.b16 %v995, %v991
        %v1312 = vpack.c.b16 %v996, %v992
        %v1313 = vpack.c.b16 %v997, %v993
        %v1314 = vpack.c.b16 %v998, %v994
        %v1315 = vpack.c.b16 %v1003, %v999
        %v1316 = vpack.c.b16 %v1004, %v1000
        %v1317 = vpack.c.b16 %v1005, %v1001
        %v1318 = vpack.c.b16 %v1006, %v1002
        %v1319 = vpack.c.b16 %v1011, %v1007
        %v1320 = vpack.c.b16 %v1012, %v1008
        %v1321 = vpack.c.b16 %v1013, %v1009
        %v1322 = vpack.c.b16 %v1014, %v1010
        %v1323 = vpack.c.b16 %v1019, %v1015
        %v1324 = vpack.c.b16 %v1020, %v1016
        %v1325 = vpack.c.b16 %v1021, %v1017
        %v1326 = vpack.c.b16 %v1022, %v1018
        %v1327 = vpack.c.b16 %v1027, %v1023
        %v1328 = vpack.c.b16 %v1028, %v1024
        %v1329 = vpack.c.b16 %v1029, %v1025
        %v1330 = vpack.c.b16 %v1030, %v1026
        %v1331 = vpack.c.b16 %v1035, %v1031
        %v1332 = vpack.c.b16 %v1036, %v1032
        %v1333 = vpack.c.b16 %v1037, %v1033
        %v1334 = vpack.c.b16 %v1038, %v1034
        %v1335 = vpack.c.b16 %v1043, %v1039
        %v1336 = vpack.c.b16 %v1044, %v1040
        %v1337 = vpack.c.b16 %v1045, %v1041
        %v1338 = vpack.c.b16 %v1046, %v1042
        %v1339 = vpack.c.b16 %v1051, %v1047
        %v1340 = vpack.c.b16 %v1052, %v1048
        %v1341 = vpack.c.b16 %v1053, %v1049
        %v1342 = vpack.c.b16 %v1054, %v1050
        %v1343 = vpack.c.b16 %v1059, %v1055
        %v1344 = vpack.c.b16 %v1060, %v1056
        %v1345 = vpack.c.b16 %v1061, %v1057
        %v1346 = vpack.c.b16 %v1062, %v1058
        %v1347 = vpack.c.b16 %v1067, %v1063
        %v1348 = vpack.c.b16 %v1068, %v1064
        %v1349 = vpack.c.b16 %v1069, %v1065
        %v1350 = vpack.c.b16 %v1070, %v1066
        %v1351 = vpack.c.b16 %v1075, %v1071
        %v1352 = vpack.c.b16 %v1076, %v1072
        %v1353 = vpack.c.b16 %v1077, %v1073
        %v1354 = vpack.c.b16 %v1078, %v1074
        %v1355 = vpack.c.b16 %v1083, %v1079
        %v1356 = vpack.c.b16 %v1084, %v1080
        %v1357 = vpack.c.b16 %v1085, %v1081
        %v1358 = vpack.c.b16 %v1086, %v1082
        %v1359 = vpack.c.b16 %v1091, %v1087
        %v1360 = vpack.c.b16 %v1092, %v1088
        %v1361 = vpack.c.b16 %v1093, %v1089
        %v1362 = vpack.c.b16 %v1094, %v1090
        %v1363 = vpack.c.b16 %v1099, %v1095
        %v1364 = vpack.c.b16 %v1100, %v1096
        %v1365 = vpack.c.b16 %v1101, %v1097
        %v1366 = vpack.c.b16 %v1102, %v1098
        %v1367 = vpack.c.b16 %v1107, %v1103
        %v1368 = vpack.c.b16 %v1108, %v1104
        %v1369 = vpack.c.b16 %v1109, %v1105
        %v1370 = vpack.c.b16 %v1110, %v1106
        %v1371 = vpack.c.b16 %v1115, %v1111
        %v1372 = vpack.c.b16 %v1116, %v1112
        %v1373 = vpack.c.b16 %v1117, %v1113
        %v1374 = vpack.c.b16 %v1118, %v1114
        %v1375 = vpack.c.b16 %v1123, %v1119
        %v1376 = vpack.c.b16 %v1124, %v1120
        %v1377 = vpack.c.b16 %v1125, %v1121
        %v1378 = vpack.c.b16 %v1126, %v1122
        %v1379 = vpack.c.b16 %v1131, %v1127
        %v1380 = vpack.c.b16 %v1132, %v1128
        %v1381 = vpack.c.b16 %v1133, %v1129
        %v1382 = vpack.c.b16 %v1134, %v1130
        %v1383 = vpack.c.b16 %v1139, %v1135
        %v1384 = vpack.c.b16 %v1140, %v1136
        %v1385 = vpack.c.b16 %v1141, %v1137
        %v1386 = vpack.c.b16 %v1142, %v1138
        %v1387 = vpack.c.b16 %v1147, %v1143
        %v1388 = vpack.c.b16 %v1148, %v1144
        %v1389 = vpack.c.b16 %v1149, %v1145
        %v1390 = vpack.c.b16 %v1150, %v1146
        %v1391 = vpack.c.b16 %v1155, %v1151
        %v1392 = vpack.c.b16 %v1156, %v1152
        %v1393 = vpack.c.b16 %v1157, %v1153
        %v1394 = vpack.c.b16 %v1158, %v1154
        %v1395 = vpack.c.b16 %v1163, %v1159
        %v1396 = vpack.c.b16 %v1164, %v1160
        %v1397 = vpack.c.b16 %v1165, %v1161
        %v1398 = vpack.c.b16 %v1166, %v1162
        %v1399 = vpack.c.b16 %v1171, %v1167
        %v1400 = vpack.c.b16 %v1172, %v1168
        %v1401 = vpack.c.b16 %v1173, %v1169
        %v1402 = vpack.c.b16 %v1174, %v1170
        %v1403 = vpack.c.b16 %v1179, %v1175
        %v1404 = vpack.c.b16 %v1180, %v1176
        %v1405 = vpack.c.b16 %v1181, %v1177
        %v1406 = vpack.c.b16 %v1182, %v1178
        %v1407 = vpack.c.b16 %v1187, %v1183
        %v1408 = vpack.c.b16 %v1188, %v1184
        %v1409 = vpack.c.b16 %v1189, %v1185
        %v1410 = vpack.c.b16 %v1190, %v1186
        %v1411 = vpack.c.b16 %v1195, %v1191
        %v1412 = vpack.c.b16 %v1196, %v1192
        %v1413 = vpack.c.b16 %v1197, %v1193
        %v1414 = vpack.c.b16 %v1198, %v1194
        %v1415 = vpack.c.b16 %v1203, %v1199
        %v1416 = vpack.c.b16 %v1204, %v1200
        %v1417 = vpack.c.b16 %v1205, %v1201
        %v1418 = vpack.c.b16 %v1206, %v1202
        %v1419 = vpack.c.b16 %v1211, %v1207
        %v1420 = vpack.c.b16 %v1212, %v1208
        %v1421 = vpack.c.b16 %v1213, %v1209
        %v1422 = vpack.c.b16 %v1214, %v1210
        %v1423 = vpack.c.b16 %v1219, %v1215
        %v1424 = vpack.c.b16 %v1220, %v1216
        %v1425 = vpack.c.b16 %v1221, %v1217
        %v1426 = vpack.c.b16 %v1222, %v1218
        %v1427 = vpack.c.b16 %v1227, %v1223
        %v1428 = vpack.c.b16 %v1228, %v1224
        %v1429 = vpack.c.b16 %v1229, %v1225
        %v1430 = vpack.c.b16 %v1230, %v1226
        %v1431 = vpack.c.b16 %v1235, %v1231
        %v1432 = vpack.c.b16 %v1236, %v1232
        %v1433 = vpack.c.b16 %v1237, %v1233
        %v1434 = vpack.c.b16 %v1238, %v1234
        %vm1631 = vcmask 130048
        %v1633 = vsel %vm1631, %v430, 0
        %v1636 = vsel %vm1631, %v437, 0
        %v1639 = vsel %vm1631, %v444, 0
        %1641 = vmatpush.bf16.msra.mxu0 %v1267
        %1642 = vmatpush.bf16.msra.mxu0 %v1263
        %1643 = vmatpush.bf16.msra.mxu0 %v1259
        %1644 = vmatpush.bf16.msra.mxu0 %v1255
        %1645 = vmatpush.bf16.msra.mxu0 %v1251
        %1646 = vmatpush.bf16.msra.mxu0 %v1247
        %1647 = vmatpush.bf16.msra.mxu0 %v1243
        %1648 = vmatpush.bf16.msra.mxu0 %v1239
        %1649 = vmatmul.bf16.gmra.mxu0 %v424
        %v1650 = vpop.f32.mrf.mxu0
        %v1651 = vadd.f32 %v643, %v1650
        %v1652 = vpop.f32.mrf.mxu0
        %v1653 = vadd.f32 %v643, %v1652
        %1654 = vmatmul.bf16.gmra.mxu0 %v431
        %v1655 = vpop.f32.mrf.mxu0
        %v1656 = vadd.f32 %v643, %v1655
        %v1657 = vpop.f32.mrf.mxu0
        %v1658 = vadd.f32 %v643, %v1657
        %1659 = vmatmul.bf16.gmra.mxu0 %v438
        %v1660 = vpop.f32.mrf.mxu0
        %v1661 = vadd.f32 %v643, %v1660
        %v1662 = vpop.f32.mrf.mxu0
        %v1663 = vadd.f32 %v643, %v1662
        %1664 = vdwg.mxu0
        %1665 = vmatpush.bf16.msra.mxu0 %v1299
        %1666 = vmatpush.bf16.msra.mxu0 %v1295
        %1667 = vmatpush.bf16.msra.mxu0 %v1291
        %1668 = vmatpush.bf16.msra.mxu0 %v1287
        %1669 = vmatpush.bf16.msra.mxu0 %v1283
        %1670 = vmatpush.bf16.msra.mxu0 %v1279
        %1671 = vmatpush.bf16.msra.mxu0 %v1275
        %1672 = vmatpush.bf16.msra.mxu0 %v1271
        %1673 = vmatmul.bf16.gmra.mxu0 %v425
        %v1674 = vpop.f32.mrf.mxu0
        %v1675 = vadd.f32 %v1651, %v1674
        %v1676 = vpop.f32.mrf.mxu0
        %v1677 = vadd.f32 %v1653, %v1676
        %1678 = vmatmul.bf16.gmra.mxu0 %v432
        %v1679 = vpop.f32.mrf.mxu0
        %v1680 = vadd.f32 %v1656, %v1679
        %v1681 = vpop.f32.mrf.mxu0
        %v1682 = vadd.f32 %v1658, %v1681
        %1683 = vmatmul.bf16.gmra.mxu0 %v439
        %v1684 = vpop.f32.mrf.mxu0
        %v1685 = vadd.f32 %v1661, %v1684
        %v1686 = vpop.f32.mrf.mxu0
        %v1687 = vadd.f32 %v1663, %v1686
        %1688 = vdwg.mxu0
        %1689 = vmatpush.bf16.msra.mxu0 %v1331
        %1690 = vmatpush.bf16.msra.mxu0 %v1327
        %1691 = vmatpush.bf16.msra.mxu0 %v1323
        %1692 = vmatpush.bf16.msra.mxu0 %v1319
        %1693 = vmatpush.bf16.msra.mxu0 %v1315
        %1694 = vmatpush.bf16.msra.mxu0 %v1311
        %1695 = vmatpush.bf16.msra.mxu0 %v1307
        %1696 = vmatpush.bf16.msra.mxu0 %v1303
        %1697 = vmatmul.bf16.gmra.mxu0 %v426
        %v1698 = vpop.f32.mrf.mxu0
        %v1699 = vadd.f32 %v1675, %v1698
        %v1700 = vpop.f32.mrf.mxu0
        %v1701 = vadd.f32 %v1677, %v1700
        %1702 = vmatmul.bf16.gmra.mxu0 %v433
        %v1703 = vpop.f32.mrf.mxu0
        %v1704 = vadd.f32 %v1680, %v1703
        %v1705 = vpop.f32.mrf.mxu0
        %v1706 = vadd.f32 %v1682, %v1705
        %1707 = vmatmul.bf16.gmra.mxu0 %v440
        %v1708 = vpop.f32.mrf.mxu0
        %v1709 = vadd.f32 %v1685, %v1708
        %v1710 = vpop.f32.mrf.mxu0
        %v1711 = vadd.f32 %v1687, %v1710
        %1712 = vdwg.mxu0
        %1713 = vmatpush.bf16.msra.mxu0 %v1363
        %1714 = vmatpush.bf16.msra.mxu0 %v1359
        %1715 = vmatpush.bf16.msra.mxu0 %v1355
        %1716 = vmatpush.bf16.msra.mxu0 %v1351
        %1717 = vmatpush.bf16.msra.mxu0 %v1347
        %1718 = vmatpush.bf16.msra.mxu0 %v1343
        %1719 = vmatpush.bf16.msra.mxu0 %v1339
        %1720 = vmatpush.bf16.msra.mxu0 %v1335
        %1721 = vmatmul.bf16.gmra.mxu0 %v427
        %v1722 = vpop.f32.mrf.mxu0
        %v1723 = vadd.f32 %v1699, %v1722
        %v1724 = vpop.f32.mrf.mxu0
        %v1725 = vadd.f32 %v1701, %v1724
        %1726 = vmatmul.bf16.gmra.mxu0 %v434
        %v1727 = vpop.f32.mrf.mxu0
        %v1728 = vadd.f32 %v1704, %v1727
        %v1729 = vpop.f32.mrf.mxu0
        %v1730 = vadd.f32 %v1706, %v1729
        %1731 = vmatmul.bf16.gmra.mxu0 %v441
        %v1732 = vpop.f32.mrf.mxu0
        %v1733 = vadd.f32 %v1709, %v1732
        %v1734 = vpop.f32.mrf.mxu0
        %v1735 = vadd.f32 %v1711, %v1734
        %1736 = vdwg.mxu0
        %1737 = vmatpush.bf16.msra.mxu0 %v1395
        %1738 = vmatpush.bf16.msra.mxu0 %v1391
        %1739 = vmatpush.bf16.msra.mxu0 %v1387
        %1740 = vmatpush.bf16.msra.mxu0 %v1383
        %1741 = vmatpush.bf16.msra.mxu0 %v1379
        %1742 = vmatpush.bf16.msra.mxu0 %v1375
        %1743 = vmatpush.bf16.msra.mxu0 %v1371
        %1744 = vmatpush.bf16.msra.mxu0 %v1367
        %1745 = vmatmul.bf16.gmra.mxu0 %v428
        %v1746 = vpop.f32.mrf.mxu0
        %v1747 = vadd.f32 %v1723, %v1746
        %v1748 = vpop.f32.mrf.mxu0
        %v1749 = vadd.f32 %v1725, %v1748
        %1750 = vmatmul.bf16.gmra.mxu0 %v435
        %v1751 = vpop.f32.mrf.mxu0
        %v1752 = vadd.f32 %v1728, %v1751
        %v1753 = vpop.f32.mrf.mxu0
        %v1754 = vadd.f32 %v1730, %v1753
        %1755 = vmatmul.bf16.gmra.mxu0 %v442
        %v1756 = vpop.f32.mrf.mxu0
        %v1757 = vadd.f32 %v1733, %v1756
        %v1758 = vpop.f32.mrf.mxu0
        %v1759 = vadd.f32 %v1735, %v1758
        %1760 = vdwg.mxu0
        %1761 = vmatpush.bf16.msra.mxu0 %v1427
        %1762 = vmatpush.bf16.msra.mxu0 %v1423
        %1763 = vmatpush.bf16.msra.mxu0 %v1419
        %1764 = vmatpush.bf16.msra.mxu0 %v1415
        %1765 = vmatpush.bf16.msra.mxu0 %v1411
        %1766 = vmatpush.bf16.msra.mxu0 %v1407
        %1767 = vmatpush.bf16.msra.mxu0 %v1403
        %1768 = vmatpush.bf16.msra.mxu0 %v1399
        %1769 = vmatmul.bf16.gmra.mxu0 %v429
        %v1770 = vpop.f32.mrf.mxu0
        %v1771 = vadd.f32 %v1747, %v1770
        %v1772 = vpop.f32.mrf.mxu0
        %v1773 = vadd.f32 %v1749, %v1772
        %1774 = vmatmul.bf16.gmra.mxu0 %v436
        %v1775 = vpop.f32.mrf.mxu0
        %v1776 = vadd.f32 %v1752, %v1775
        %v1777 = vpop.f32.mrf.mxu0
        %v1778 = vadd.f32 %v1754, %v1777
        %1779 = vmatmul.bf16.gmra.mxu0 %v443
        %v1780 = vpop.f32.mrf.mxu0
        %v1781 = vadd.f32 %v1757, %v1780
        %v1782 = vpop.f32.mrf.mxu0
        %v1783 = vadd.f32 %v1759, %v1782
        %1784 = vdwg.mxu0
        %1785 = vmatpush.bf16.msra.mxu0 0
        %1786 = vmatpush.bf16.msra.mxu0 0
        %1787 = vmatpush.bf16.msra.mxu0 0
        %1788 = vmatpush.bf16.msra.mxu0 0
        %1789 = vmatpush.bf16.msra.mxu0 0
        %1790 = vmatpush.bf16.msra.mxu0 0
        %1791 = vmatpush.bf16.msra.mxu0 0
        %1792 = vmatpush.bf16.msra.mxu0 %v1431
        %1793 = vmatmul.bf16.gmra.mxu0 %v1633
        %v1794 = vpop.f32.mrf.mxu0
        %v1795 = vadd.f32 %v1771, %v1794
        %v1796 = vpop.f32.mrf.mxu0
        %v1797 = vadd.f32 %v1773, %v1796
        %1798 = vmatmul.bf16.gmra.mxu0 %v1636
        %v1799 = vpop.f32.mrf.mxu0
        %v1800 = vadd.f32 %v1776, %v1799
        %v1801 = vpop.f32.mrf.mxu0
        %v1802 = vadd.f32 %v1778, %v1801
        %1803 = vmatmul.bf16.gmra.mxu0 %v1639
        %v1804 = vpop.f32.mrf.mxu0
        %v1805 = vadd.f32 %v1781, %v1804
        %v1806 = vpop.f32.mrf.mxu0
        %v1807 = vadd.f32 %v1783, %v1806
        %1808 = vdwg.mxu0
        %1809 = vmatpush.bf16.msra.mxu0 %v1268
        %1810 = vmatpush.bf16.msra.mxu0 %v1264
        %1811 = vmatpush.bf16.msra.mxu0 %v1260
        %1812 = vmatpush.bf16.msra.mxu0 %v1256
        %1813 = vmatpush.bf16.msra.mxu0 %v1252
        %1814 = vmatpush.bf16.msra.mxu0 %v1248
        %1815 = vmatpush.bf16.msra.mxu0 %v1244
        %1816 = vmatpush.bf16.msra.mxu0 %v1240
        %1817 = vmatmul.bf16.gmra.mxu0 %v424
        %v1818 = vpop.f32.mrf.mxu0
        %v1819 = vadd.f32 %v644, %v1818
        %v1820 = vpop.f32.mrf.mxu0
        %v1821 = vadd.f32 %v644, %v1820
        %1822 = vmatmul.bf16.gmra.mxu0 %v431
        %v1823 = vpop.f32.mrf.mxu0
        %v1824 = vadd.f32 %v644, %v1823
        %v1825 = vpop.f32.mrf.mxu0
        %v1826 = vadd.f32 %v644, %v1825
        %1827 = vmatmul.bf16.gmra.mxu0 %v438
        %v1828 = vpop.f32.mrf.mxu0
        %v1829 = vadd.f32 %v644, %v1828
        %v1830 = vpop.f32.mrf.mxu0
        %v1831 = vadd.f32 %v644, %v1830
        %1832 = vdwg.mxu0
        %1833 = vmatpush.bf16.msra.mxu0 %v1300
        %1834 = vmatpush.bf16.msra.mxu0 %v1296
        %1835 = vmatpush.bf16.msra.mxu0 %v1292
        %1836 = vmatpush.bf16.msra.mxu0 %v1288
        %1837 = vmatpush.bf16.msra.mxu0 %v1284
        %1838 = vmatpush.bf16.msra.mxu0 %v1280
        %1839 = vmatpush.bf16.msra.mxu0 %v1276
        %1840 = vmatpush.bf16.msra.mxu0 %v1272
        %1841 = vmatmul.bf16.gmra.mxu0 %v425
        %v1842 = vpop.f32.mrf.mxu0
        %v1843 = vadd.f32 %v1819, %v1842
        %v1844 = vpop.f32.mrf.mxu0
        %v1845 = vadd.f32 %v1821, %v1844
        %1846 = vmatmul.bf16.gmra.mxu0 %v432
        %v1847 = vpop.f32.mrf.mxu0
        %v1848 = vadd.f32 %v1824, %v1847
        %v1849 = vpop.f32.mrf.mxu0
        %v1850 = vadd.f32 %v1826, %v1849
        %1851 = vmatmul.bf16.gmra.mxu0 %v439
        %v1852 = vpop.f32.mrf.mxu0
        %v1853 = vadd.f32 %v1829, %v1852
        %v1854 = vpop.f32.mrf.mxu0
        %v1855 = vadd.f32 %v1831, %v1854
        %1856 = vdwg.mxu0
        %1857 = vmatpush.bf16.msra.mxu0 %v1332
        %1858 = vmatpush.bf16.msra.mxu0 %v1328
        %1859 = vmatpush.bf16.msra.mxu0 %v1324
        %1860 = vmatpush.bf16.msra.mxu0 %v1320
        %1861 = vmatpush.bf16.msra.mxu0 %v1316
        %1862 = vmatpush.bf16.msra.mxu0 %v1312
        %1863 = vmatpush.bf16.msra.mxu0 %v1308
        %1864 = vmatpush.bf16.msra.mxu0 %v1304
        %1865 = vmatmul.bf16.gmra.mxu0 %v426
        %v1866 = vpop.f32.mrf.mxu0
        %v1867 = vadd.f32 %v1843, %v1866
        %v1868 = vpop.f32.mrf.mxu0
        %v1869 = vadd.f32 %v1845, %v1868
        %1870 = vmatmul.bf16.gmra.mxu0 %v433
        %v1871 = vpop.f32.mrf.mxu0
        %v1872 = vadd.f32 %v1848, %v1871
        %v1873 = vpop.f32.mrf.mxu0
        %v1874 = vadd.f32 %v1850, %v1873
        %1875 = vmatmul.bf16.gmra.mxu0 %v440
        %v1876 = vpop.f32.mrf.mxu0
        %v1877 = vadd.f32 %v1853, %v1876
        %v1878 = vpop.f32.mrf.mxu0
        %v1879 = vadd.f32 %v1855, %v1878
        %1880 = vdwg.mxu0
        %1881 = vmatpush.bf16.msra.mxu0 %v1364
        %1882 = vmatpush.bf16.msra.mxu0 %v1360
        %1883 = vmatpush.bf16.msra.mxu0 %v1356
        %1884 = vmatpush.bf16.msra.mxu0 %v1352
        %1885 = vmatpush.bf16.msra.mxu0 %v1348
        %1886 = vmatpush.bf16.msra.mxu0 %v1344
        %1887 = vmatpush.bf16.msra.mxu0 %v1340
        %1888 = vmatpush.bf16.msra.mxu0 %v1336
        %1889 = vmatmul.bf16.gmra.mxu0 %v427
        %v1890 = vpop.f32.mrf.mxu0
        %v1891 = vadd.f32 %v1867, %v1890
        %v1892 = vpop.f32.mrf.mxu0
        %v1893 = vadd.f32 %v1869, %v1892
        %1894 = vmatmul.bf16.gmra.mxu0 %v434
        %v1895 = vpop.f32.mrf.mxu0
        %v1896 = vadd.f32 %v1872, %v1895
        %v1897 = vpop.f32.mrf.mxu0
        %v1898 = vadd.f32 %v1874, %v1897
        %1899 = vmatmul.bf16.gmra.mxu0 %v441
        %v1900 = vpop.f32.mrf.mxu0
        %v1901 = vadd.f32 %v1877, %v1900
        %v1902 = vpop.f32.mrf.mxu0
        %v1903 = vadd.f32 %v1879, %v1902
        %1904 = vdwg.mxu0
        %1905 = vmatpush.bf16.msra.mxu0 %v1396
        %1906 = vmatpush.bf16.msra.mxu0 %v1392
        %1907 = vmatpush.bf16.msra.mxu0 %v1388
        %1908 = vmatpush.bf16.msra.mxu0 %v1384
        %1909 = vmatpush.bf16.msra.mxu0 %v1380
        %1910 = vmatpush.bf16.msra.mxu0 %v1376
        %1911 = vmatpush.bf16.msra.mxu0 %v1372
        %1912 = vmatpush.bf16.msra.mxu0 %v1368
        %1913 = vmatmul.bf16.gmra.mxu0 %v428
        %v1914 = vpop.f32.mrf.mxu0
        %v1915 = vadd.f32 %v1891, %v1914
        %v1916 = vpop.f32.mrf.mxu0
        %v1917 = vadd.f32 %v1893, %v1916
        %1918 = vmatmul.bf16.gmra.mxu0 %v435
        %v1919 = vpop.f32.mrf.mxu0
        %v1920 = vadd.f32 %v1896, %v1919
        %v1921 = vpop.f32.mrf.mxu0
        %v1922 = vadd.f32 %v1898, %v1921
        %1923 = vmatmul.bf16.gmra.mxu0 %v442
        %v1924 = vpop.f32.mrf.mxu0
        %v1925 = vadd.f32 %v1901, %v1924
        %v1926 = vpop.f32.mrf.mxu0
        %v1927 = vadd.f32 %v1903, %v1926
        %1928 = vdwg.mxu0
        %1929 = vmatpush.bf16.msra.mxu0 %v1428
        %1930 = vmatpush.bf16.msra.mxu0 %v1424
        %1931 = vmatpush.bf16.msra.mxu0 %v1420
        %1932 = vmatpush.bf16.msra.mxu0 %v1416
        %1933 = vmatpush.bf16.msra.mxu0 %v1412
        %1934 = vmatpush.bf16.msra.mxu0 %v1408
        %1935 = vmatpush.bf16.msra.mxu0 %v1404
        %1936 = vmatpush.bf16.msra.mxu0 %v1400
        %1937 = vmatmul.bf16.gmra.mxu0 %v429
        %v1938 = vpop.f32.mrf.mxu0
        %v1939 = vadd.f32 %v1915, %v1938
        %v1940 = vpop.f32.mrf.mxu0
        %v1941 = vadd.f32 %v1917, %v1940
        %1942 = vmatmul.bf16.gmra.mxu0 %v436
        %v1943 = vpop.f32.mrf.mxu0
        %v1944 = vadd.f32 %v1920, %v1943
        %v1945 = vpop.f32.mrf.mxu0
        %v1946 = vadd.f32 %v1922, %v1945
        %1947 = vmatmul.bf16.gmra.mxu0 %v443
        %v1948 = vpop.f32.mrf.mxu0
        %v1949 = vadd.f32 %v1925, %v1948
        %v1950 = vpop.f32.mrf.mxu0
        %v1951 = vadd.f32 %v1927, %v1950
        %1952 = vdwg.mxu0
        %1953 = vmatpush.bf16.msra.mxu0 0
        %1954 = vmatpush.bf16.msra.mxu0 0
        %1955 = vmatpush.bf16.msra.mxu0 0
        %1956 = vmatpush.bf16.msra.mxu0 0
        %1957 = vmatpush.bf16.msra.mxu0 0
        %1958 = vmatpush.bf16.msra.mxu0 0
        %1959 = vmatpush.bf16.msra.mxu0 0
        %1960 = vmatpush.bf16.msra.mxu0 %v1432
        %1961 = vmatmul.bf16.gmra.mxu0 %v1633
        %v1962 = vpop.f32.mrf.mxu0
        %v1963 = vadd.f32 %v1939, %v1962
        %v1964 = vpop.f32.mrf.mxu0
        %v1965 = vadd.f32 %v1941, %v1964
        %1966 = vmatmul.bf16.gmra.mxu0 %v1636
        %v1967 = vpop.f32.mrf.mxu0
        %v1968 = vadd.f32 %v1944, %v1967
        %v1969 = vpop.f32.mrf.mxu0
        %v1970 = vadd.f32 %v1946, %v1969
        %1971 = vmatmul.bf16.gmra.mxu0 %v1639
        %v1972 = vpop.f32.mrf.mxu0
        %v1973 = vadd.f32 %v1949, %v1972
        %v1974 = vpop.f32.mrf.mxu0
        %v1975 = vadd.f32 %v1951, %v1974
        %1976 = vdwg.mxu0
        %1977 = vmatpush.bf16.msra.mxu0 %v1269
        %1978 = vmatpush.bf16.msra.mxu0 %v1265
        %1979 = vmatpush.bf16.msra.mxu0 %v1261
        %1980 = vmatpush.bf16.msra.mxu0 %v1257
        %1981 = vmatpush.bf16.msra.mxu0 %v1253
        %1982 = vmatpush.bf16.msra.mxu0 %v1249
        %1983 = vmatpush.bf16.msra.mxu0 %v1245
        %1984 = vmatpush.bf16.msra.mxu0 %v1241
        %1985 = vmatmul.bf16.gmra.mxu0 %v424
        %v1986 = vpop.f32.mrf.mxu0
        %v1987 = vadd.f32 %v645, %v1986
        %v1988 = vpop.f32.mrf.mxu0
        %v1989 = vadd.f32 %v645, %v1988
        %1990 = vmatmul.bf16.gmra.mxu0 %v431
        %v1991 = vpop.f32.mrf.mxu0
        %v1992 = vadd.f32 %v645, %v1991
        %v1993 = vpop.f32.mrf.mxu0
        %v1994 = vadd.f32 %v645, %v1993
        %1995 = vmatmul.bf16.gmra.mxu0 %v438
        %v1996 = vpop.f32.mrf.mxu0
        %v1997 = vadd.f32 %v645, %v1996
        %v1998 = vpop.f32.mrf.mxu0
        %v1999 = vadd.f32 %v645, %v1998
        %2000 = vdwg.mxu0
        %2001 = vmatpush.bf16.msra.mxu0 %v1301
        %2002 = vmatpush.bf16.msra.mxu0 %v1297
        %2003 = vmatpush.bf16.msra.mxu0 %v1293
        %2004 = vmatpush.bf16.msra.mxu0 %v1289
        %2005 = vmatpush.bf16.msra.mxu0 %v1285
        %2006 = vmatpush.bf16.msra.mxu0 %v1281
        %2007 = vmatpush.bf16.msra.mxu0 %v1277
        %2008 = vmatpush.bf16.msra.mxu0 %v1273
        %2009 = vmatmul.bf16.gmra.mxu0 %v425
        %v2010 = vpop.f32.mrf.mxu0
        %v2011 = vadd.f32 %v1987, %v2010
        %v2012 = vpop.f32.mrf.mxu0
        %v2013 = vadd.f32 %v1989, %v2012
        %2014 = vmatmul.bf16.gmra.mxu0 %v432
        %v2015 = vpop.f32.mrf.mxu0
        %v2016 = vadd.f32 %v1992, %v2015
        %v2017 = vpop.f32.mrf.mxu0
        %v2018 = vadd.f32 %v1994, %v2017
        %2019 = vmatmul.bf16.gmra.mxu0 %v439
        %v2020 = vpop.f32.mrf.mxu0
        %v2021 = vadd.f32 %v1997, %v2020
        %v2022 = vpop.f32.mrf.mxu0
        %v2023 = vadd.f32 %v1999, %v2022
        %2024 = vdwg.mxu0
        %2025 = vmatpush.bf16.msra.mxu0 %v1333
        %2026 = vmatpush.bf16.msra.mxu0 %v1329
        %2027 = vmatpush.bf16.msra.mxu0 %v1325
        %2028 = vmatpush.bf16.msra.mxu0 %v1321
        %2029 = vmatpush.bf16.msra.mxu0 %v1317
        %2030 = vmatpush.bf16.msra.mxu0 %v1313
        %2031 = vmatpush.bf16.msra.mxu0 %v1309
        %2032 = vmatpush.bf16.msra.mxu0 %v1305
        %2033 = vmatmul.bf16.gmra.mxu0 %v426
        %v2034 = vpop.f32.mrf.mxu0
        %v2035 = vadd.f32 %v2011, %v2034
        %v2036 = vpop.f32.mrf.mxu0
        %v2037 = vadd.f32 %v2013, %v2036
        %2038 = vmatmul.bf16.gmra.mxu0 %v433
        %v2039 = vpop.f32.mrf.mxu0
        %v2040 = vadd.f32 %v2016, %v2039
        %v2041 = vpop.f32.mrf.mxu0
        %v2042 = vadd.f32 %v2018, %v2041
        %2043 = vmatmul.bf16.gmra.mxu0 %v440
        %v2044 = vpop.f32.mrf.mxu0
        %v2045 = vadd.f32 %v2021, %v2044
        %v2046 = vpop.f32.mrf.mxu0
        %v2047 = vadd.f32 %v2023, %v2046
        %2048 = vdwg.mxu0
        %2049 = vmatpush.bf16.msra.mxu0 %v1365
        %2050 = vmatpush.bf16.msra.mxu0 %v1361
        %2051 = vmatpush.bf16.msra.mxu0 %v1357
        %2052 = vmatpush.bf16.msra.mxu0 %v1353
        %2053 = vmatpush.bf16.msra.mxu0 %v1349
        %2054 = vmatpush.bf16.msra.mxu0 %v1345
        %2055 = vmatpush.bf16.msra.mxu0 %v1341
        %2056 = vmatpush.bf16.msra.mxu0 %v1337
        %2057 = vmatmul.bf16.gmra.mxu0 %v427
        %v2058 = vpop.f32.mrf.mxu0
        %v2059 = vadd.f32 %v2035, %v2058
        %v2060 = vpop.f32.mrf.mxu0
        %v2061 = vadd.f32 %v2037, %v2060
        %2062 = vmatmul.bf16.gmra.mxu0 %v434
        %v2063 = vpop.f32.mrf.mxu0
        %v2064 = vadd.f32 %v2040, %v2063
        %v2065 = vpop.f32.mrf.mxu0
        %v2066 = vadd.f32 %v2042, %v2065
        %2067 = vmatmul.bf16.gmra.mxu0 %v441
        %v2068 = vpop.f32.mrf.mxu0
        %v2069 = vadd.f32 %v2045, %v2068
        %v2070 = vpop.f32.mrf.mxu0
        %v2071 = vadd.f32 %v2047, %v2070
        %2072 = vdwg.mxu0
        %2073 = vmatpush.bf16.msra.mxu0 %v1397
        %2074 = vmatpush.bf16.msra.mxu0 %v1393
        %2075 = vmatpush.bf16.msra.mxu0 %v1389
        %2076 = vmatpush.bf16.msra.mxu0 %v1385
        %2077 = vmatpush.bf16.msra.mxu0 %v1381
        %2078 = vmatpush.bf16.msra.mxu0 %v1377
        %2079 = vmatpush.bf16.msra.mxu0 %v1373
        %2080 = vmatpush.bf16.msra.mxu0 %v1369
        %2081 = vmatmul.bf16.gmra.mxu0 %v428
        %v2082 = vpop.f32.mrf.mxu0
        %v2083 = vadd.f32 %v2059, %v2082
        %v2084 = vpop.f32.mrf.mxu0
        %v2085 = vadd.f32 %v2061, %v2084
        %2086 = vmatmul.bf16.gmra.mxu0 %v435
        %v2087 = vpop.f32.mrf.mxu0
        %v2088 = vadd.f32 %v2064, %v2087
        %v2089 = vpop.f32.mrf.mxu0
        %v2090 = vadd.f32 %v2066, %v2089
        %2091 = vmatmul.bf16.gmra.mxu0 %v442
        %v2092 = vpop.f32.mrf.mxu0
        %v2093 = vadd.f32 %v2069, %v2092
        %v2094 = vpop.f32.mrf.mxu0
        %v2095 = vadd.f32 %v2071, %v2094
        %2096 = vdwg.mxu0
        %2097 = vmatpush.bf16.msra.mxu0 %v1429
        %2098 = vmatpush.bf16.msra.mxu0 %v1425
        %2099 = vmatpush.bf16.msra.mxu0 %v1421
        %2100 = vmatpush.bf16.msra.mxu0 %v1417
        %2101 = vmatpush.bf16.msra.mxu0 %v1413
        %2102 = vmatpush.bf16.msra.mxu0 %v1409
        %2103 = vmatpush.bf16.msra.mxu0 %v1405
        %2104 = vmatpush.bf16.msra.mxu0 %v1401
        %2105 = vmatmul.bf16.gmra.mxu0 %v429
        %v2106 = vpop.f32.mrf.mxu0
        %v2107 = vadd.f32 %v2083, %v2106
        %v2108 = vpop.f32.mrf.mxu0
        %v2109 = vadd.f32 %v2085, %v2108
        %2110 = vmatmul.bf16.gmra.mxu0 %v436
        %v2111 = vpop.f32.mrf.mxu0
        %v2112 = vadd.f32 %v2088, %v2111
        %v2113 = vpop.f32.mrf.mxu0
        %v2114 = vadd.f32 %v2090, %v2113
        %2115 = vmatmul.bf16.gmra.mxu0 %v443
        %v2116 = vpop.f32.mrf.mxu0
        %v2117 = vadd.f32 %v2093, %v2116
        %v2118 = vpop.f32.mrf.mxu0
        %v2119 = vadd.f32 %v2095, %v2118
        %2120 = vdwg.mxu0
        %2121 = vmatpush.bf16.msra.mxu0 0
        %2122 = vmatpush.bf16.msra.mxu0 0
        %2123 = vmatpush.bf16.msra.mxu0 0
        %2124 = vmatpush.bf16.msra.mxu0 0
        %2125 = vmatpush.bf16.msra.mxu0 0
        %2126 = vmatpush.bf16.msra.mxu0 0
        %2127 = vmatpush.bf16.msra.mxu0 0
        %2128 = vmatpush.bf16.msra.mxu0 %v1433
        %2129 = vmatmul.bf16.gmra.mxu0 %v1633
        %v2130 = vpop.f32.mrf.mxu0
        %v2131 = vadd.f32 %v2107, %v2130
        %v2132 = vpop.f32.mrf.mxu0
        %v2133 = vadd.f32 %v2109, %v2132
        %2134 = vmatmul.bf16.gmra.mxu0 %v1636
        %v2135 = vpop.f32.mrf.mxu0
        %v2136 = vadd.f32 %v2112, %v2135
        %v2137 = vpop.f32.mrf.mxu0
        %v2138 = vadd.f32 %v2114, %v2137
        %2139 = vmatmul.bf16.gmra.mxu0 %v1639
        %v2140 = vpop.f32.mrf.mxu0
        %v2141 = vadd.f32 %v2117, %v2140
        %v2142 = vpop.f32.mrf.mxu0
        %v2143 = vadd.f32 %v2119, %v2142
        %2144 = vdwg.mxu0
        %2145 = vmatpush.bf16.msra.mxu0 %v1270
        %2146 = vmatpush.bf16.msra.mxu0 %v1266
        %2147 = vmatpush.bf16.msra.mxu0 %v1262
        %2148 = vmatpush.bf16.msra.mxu0 %v1258
        %2149 = vmatpush.bf16.msra.mxu0 %v1254
        %2150 = vmatpush.bf16.msra.mxu0 %v1250
        %2151 = vmatpush.bf16.msra.mxu0 %v1246
        %2152 = vmatpush.bf16.msra.mxu0 %v1242
        %2153 = vmatmul.bf16.gmra.mxu0 %v424
        %v2154 = vpop.f32.mrf.mxu0
        %v2155 = vadd.f32 %v646, %v2154
        %v2156 = vpop.f32.mrf.mxu0
        %v2157 = vadd.f32 %v646, %v2156
        %2158 = vmatmul.bf16.gmra.mxu0 %v431
        %v2159 = vpop.f32.mrf.mxu0
        %v2160 = vadd.f32 %v646, %v2159
        %v2161 = vpop.f32.mrf.mxu0
        %v2162 = vadd.f32 %v646, %v2161
        %2163 = vmatmul.bf16.gmra.mxu0 %v438
        %v2164 = vpop.f32.mrf.mxu0
        %v2165 = vadd.f32 %v646, %v2164
        %v2166 = vpop.f32.mrf.mxu0
        %v2167 = vadd.f32 %v646, %v2166
        %2168 = vdwg.mxu0
        %2169 = vmatpush.bf16.msra.mxu0 %v1302
        %2170 = vmatpush.bf16.msra.mxu0 %v1298
        %2171 = vmatpush.bf16.msra.mxu0 %v1294
        %2172 = vmatpush.bf16.msra.mxu0 %v1290
        %2173 = vmatpush.bf16.msra.mxu0 %v1286
        %2174 = vmatpush.bf16.msra.mxu0 %v1282
        %2175 = vmatpush.bf16.msra.mxu0 %v1278
        %2176 = vmatpush.bf16.msra.mxu0 %v1274
        %2177 = vmatmul.bf16.gmra.mxu0 %v425
        %v2178 = vpop.f32.mrf.mxu0
        %v2179 = vadd.f32 %v2155, %v2178
        %v2180 = vpop.f32.mrf.mxu0
        %v2181 = vadd.f32 %v2157, %v2180
        %2182 = vmatmul.bf16.gmra.mxu0 %v432
        %v2183 = vpop.f32.mrf.mxu0
        %v2184 = vadd.f32 %v2160, %v2183
        %v2185 = vpop.f32.mrf.mxu0
        %v2186 = vadd.f32 %v2162, %v2185
        %2187 = vmatmul.bf16.gmra.mxu0 %v439
        %v2188 = vpop.f32.mrf.mxu0
        %v2189 = vadd.f32 %v2165, %v2188
        %v2190 = vpop.f32.mrf.mxu0
        %v2191 = vadd.f32 %v2167, %v2190
        %2192 = vdwg.mxu0
        %2193 = vmatpush.bf16.msra.mxu0 %v1334
        %2194 = vmatpush.bf16.msra.mxu0 %v1330
        %2195 = vmatpush.bf16.msra.mxu0 %v1326
        %2196 = vmatpush.bf16.msra.mxu0 %v1322
        %2197 = vmatpush.bf16.msra.mxu0 %v1318
        %2198 = vmatpush.bf16.msra.mxu0 %v1314
        %2199 = vmatpush.bf16.msra.mxu0 %v1310
        %2200 = vmatpush.bf16.msra.mxu0 %v1306
        %2201 = vmatmul.bf16.gmra.mxu0 %v426
        %v2202 = vpop.f32.mrf.mxu0
        %v2203 = vadd.f32 %v2179, %v2202
        %v2204 = vpop.f32.mrf.mxu0
        %v2205 = vadd.f32 %v2181, %v2204
        %2206 = vmatmul.bf16.gmra.mxu0 %v433
        %v2207 = vpop.f32.mrf.mxu0
        %v2208 = vadd.f32 %v2184, %v2207
        %v2209 = vpop.f32.mrf.mxu0
        %v2210 = vadd.f32 %v2186, %v2209
        %2211 = vmatmul.bf16.gmra.mxu0 %v440
        %v2212 = vpop.f32.mrf.mxu0
        %v2213 = vadd.f32 %v2189, %v2212
        %v2214 = vpop.f32.mrf.mxu0
        %v2215 = vadd.f32 %v2191, %v2214
        %2216 = vdwg.mxu0
        %2217 = vmatpush.bf16.msra.mxu0 %v1366
        %2218 = vmatpush.bf16.msra.mxu0 %v1362
        %2219 = vmatpush.bf16.msra.mxu0 %v1358
        %2220 = vmatpush.bf16.msra.mxu0 %v1354
        %2221 = vmatpush.bf16.msra.mxu0 %v1350
        %2222 = vmatpush.bf16.msra.mxu0 %v1346
        %2223 = vmatpush.bf16.msra.mxu0 %v1342
        %2224 = vmatpush.bf16.msra.mxu0 %v1338
        %2225 = vmatmul.bf16.gmra.mxu0 %v427
        %v2226 = vpop.f32.mrf.mxu0
        %v2227 = vadd.f32 %v2203, %v2226
        %v2228 = vpop.f32.mrf.mxu0
        %v2229 = vadd.f32 %v2205, %v2228
        %2230 = vmatmul.bf16.gmra.mxu0 %v434
        %v2231 = vpop.f32.mrf.mxu0
        %v2232 = vadd.f32 %v2208, %v2231
        %v2233 = vpop.f32.mrf.mxu0
        %v2234 = vadd.f32 %v2210, %v2233
        %2235 = vmatmul.bf16.gmra.mxu0 %v441
        %v2236 = vpop.f32.mrf.mxu0
        %v2237 = vadd.f32 %v2213, %v2236
        %v2238 = vpop.f32.mrf.mxu0
        %v2239 = vadd.f32 %v2215, %v2238
        %2240 = vdwg.mxu0
        %2241 = vmatpush.bf16.msra.mxu0 %v1398
        %2242 = vmatpush.bf16.msra.mxu0 %v1394
        %2243 = vmatpush.bf16.msra.mxu0 %v1390
        %2244 = vmatpush.bf16.msra.mxu0 %v1386
        %2245 = vmatpush.bf16.msra.mxu0 %v1382
        %2246 = vmatpush.bf16.msra.mxu0 %v1378
        %2247 = vmatpush.bf16.msra.mxu0 %v1374
        %2248 = vmatpush.bf16.msra.mxu0 %v1370
        %2249 = vmatmul.bf16.gmra.mxu0 %v428
        %v2250 = vpop.f32.mrf.mxu0
        %v2251 = vadd.f32 %v2227, %v2250
        %v2252 = vpop.f32.mrf.mxu0
        %v2253 = vadd.f32 %v2229, %v2252
        %2254 = vmatmul.bf16.gmra.mxu0 %v435
        %v2255 = vpop.f32.mrf.mxu0
        %v2256 = vadd.f32 %v2232, %v2255
        %v2257 = vpop.f32.mrf.mxu0
        %v2258 = vadd.f32 %v2234, %v2257
        %2259 = vmatmul.bf16.gmra.mxu0 %v442
        %v2260 = vpop.f32.mrf.mxu0
        %v2261 = vadd.f32 %v2237, %v2260
        %v2262 = vpop.f32.mrf.mxu0
        %v2263 = vadd.f32 %v2239, %v2262
        %2264 = vdwg.mxu0
        %2265 = vmatpush.bf16.msra.mxu0 %v1430
        %2266 = vmatpush.bf16.msra.mxu0 %v1426
        %2267 = vmatpush.bf16.msra.mxu0 %v1422
        %2268 = vmatpush.bf16.msra.mxu0 %v1418
        %2269 = vmatpush.bf16.msra.mxu0 %v1414
        %2270 = vmatpush.bf16.msra.mxu0 %v1410
        %2271 = vmatpush.bf16.msra.mxu0 %v1406
        %2272 = vmatpush.bf16.msra.mxu0 %v1402
        %2273 = vmatmul.bf16.gmra.mxu0 %v429
        %v2274 = vpop.f32.mrf.mxu0
        %v2275 = vadd.f32 %v2251, %v2274
        %v2276 = vpop.f32.mrf.mxu0
        %v2277 = vadd.f32 %v2253, %v2276
        %2278 = vmatmul.bf16.gmra.mxu0 %v436
        %v2279 = vpop.f32.mrf.mxu0
        %v2280 = vadd.f32 %v2256, %v2279
        %v2281 = vpop.f32.mrf.mxu0
        %v2282 = vadd.f32 %v2258, %v2281
        %2283 = vmatmul.bf16.gmra.mxu0 %v443
        %v2284 = vpop.f32.mrf.mxu0
        %v2285 = vadd.f32 %v2261, %v2284
        %v2286 = vpop.f32.mrf.mxu0
        %v2287 = vadd.f32 %v2263, %v2286
        %2288 = vdwg.mxu0
        %2289 = vmatpush.bf16.msra.mxu0 0
        %2290 = vmatpush.bf16.msra.mxu0 0
        %2291 = vmatpush.bf16.msra.mxu0 0
        %2292 = vmatpush.bf16.msra.mxu0 0
        %2293 = vmatpush.bf16.msra.mxu0 0
        %2294 = vmatpush.bf16.msra.mxu0 0
        %2295 = vmatpush.bf16.msra.mxu0 0
        %2296 = vmatpush.bf16.msra.mxu0 %v1434
        %2297 = vmatmul.bf16.gmra.mxu0 %v1633
        %v2298 = vpop.f32.mrf.mxu0
        %v2299 = vadd.f32 %v2275, %v2298
        %v2300 = vpop.f32.mrf.mxu0
        %v2301 = vadd.f32 %v2277, %v2300
        %2302 = vmatmul.bf16.gmra.mxu0 %v1636
        %v2303 = vpop.f32.mrf.mxu0
        %v2304 = vadd.f32 %v2280, %v2303
        %v2305 = vpop.f32.mrf.mxu0
        %v2306 = vadd.f32 %v2282, %v2305
        %2307 = vmatmul.bf16.gmra.mxu0 %v1639
        %v2308 = vpop.f32.mrf.mxu0
        %v2309 = vadd.f32 %v2285, %v2308
        %v2310 = vpop.f32.mrf.mxu0
        %v2311 = vadd.f32 %v2287, %v2310
        %2312 = vdwg.mxu0
        %v2313 = vmax.f32 %v1795, 0.0
        %v2314 = vmax.f32 %v1963, 0.0
        %v2315 = vmax.f32 %v2131, 0.0
        %v2316 = vmax.f32 %v2299, 0.0
        %v2317 = vmax.f32 %v1797, 0.0
        %v2318 = vmax.f32 %v1965, 0.0
        %v2319 = vmax.f32 %v2133, 0.0
        %v2320 = vmax.f32 %v2301, 0.0
        %v2321 = vmax.f32 %v1800, 0.0
        %v2322 = vmax.f32 %v1968, 0.0
        %v2323 = vmax.f32 %v2136, 0.0
        %v2324 = vmax.f32 %v2304, 0.0
        %v2325 = vmax.f32 %v1802, 0.0
        %v2326 = vmax.f32 %v1970, 0.0
        %v2327 = vmax.f32 %v2138, 0.0
        %v2328 = vmax.f32 %v2306, 0.0
        %v2329 = vmax.f32 %v1805, 0.0
        %v2330 = vmax.f32 %v1973, 0.0
        %v2331 = vmax.f32 %v2141, 0.0
        %v2332 = vmax.f32 %v2309, 0.0
        %v2333 = vmax.f32 %v1807, 0.0
        %v2334 = vmax.f32 %v1975, 0.0
        %v2335 = vmax.f32 %v2143, 0.0
        %v2336 = vmax.f32 %v2311, 0.0
        %v2337 = vpack.c.bf16 %v2317, %v2313
        %v2338 = vpack.c.bf16 %v2318, %v2314
        %v2339 = vpack.c.bf16 %v2319, %v2315
        %v2340 = vpack.c.bf16 %v2320, %v2316
        %v2341 = vpack.c.bf16 %v2325, %v2321
        %v2342 = vpack.c.bf16 %v2326, %v2322
        %v2343 = vpack.c.bf16 %v2327, %v2323
        %v2344 = vpack.c.bf16 %v2328, %v2324
        %v2345 = vpack.c.bf16 %v2333, %v2329
        %v2346 = vpack.c.bf16 %v2334, %v2330
        %v2347 = vpack.c.bf16 %v2335, %v2331
        %v2348 = vpack.c.bf16 %v2336, %v2332
        %v2349 = vld [vmem:[#allocation8] sm:$0xff]
        %v2350 = vld [vmem:[#allocation8 + $0x8] sm:$0xff]
        %v2351 = vld [vmem:[#allocation8 + $0x10] sm:$0xff]
        %v2352 = vld [vmem:[#allocation8 + $0x18] sm:$0xff]
        %v2353 = vld [vmem:[#allocation8 + $0x20] sm:$0xff]
        %v2354 = vld [vmem:[#allocation8 + $0x28] sm:$0xff]
        %v2355 = vld [vmem:[#allocation8 + $0x30] sm:$0xff]
        %v2356 = vld [vmem:[#allocation8 + $0x38] sm:$0xff]
        %v2357 = vld [vmem:[#allocation8 + $0x40] sm:$0xff]
        %v2358 = vld [vmem:[#allocation8 + $0x48] sm:$0xff]
        %v2359 = vld [vmem:[#allocation8 + $0x50] sm:$0xff]
        %v2360 = vld [vmem:[#allocation8 + $0x58] sm:$0xff]
        %v2361 = vld [vmem:[#allocation8 + $0x60] sm:$0xff]
        %v2362 = vld [vmem:[#allocation8 + $0x68] sm:$0xff]
        %v2363 = vld [vmem:[#allocation8 + $0x70] sm:$0xff]
        %v2364 = vld [vmem:[#allocation8 + $0x78] sm:$0xff]
        %v2365 = vld [vmem:[#allocation8 + $0x80] sm:$0xff]
        %v2366 = vld [vmem:[#allocation8 + $0x88] sm:$0xff]
        %v2367 = vld [vmem:[#allocation8 + $0x90] sm:$0xff]
        %v2368 = vld [vmem:[#allocation8 + $0x98] sm:$0xff]
        %v2369 = vld [vmem:[#allocation8 + $0xa0] sm:$0xff]
        %v2370 = vld [vmem:[#allocation8 + $0xa8] sm:$0xff]
        %v2371 = vld [vmem:[#allocation8 + $0xb0] sm:$0xff]
        %v2372 = vld [vmem:[#allocation8 + $0xb8] sm:$0xff]
        %v2373 = vld [vmem:[#allocation8 + $0xc0] sm:$0xff]
        %v2374 = vld [vmem:[#allocation8 + $0xc8] sm:$0xff]
        %v2375 = vld [vmem:[#allocation8 + $0xd0] sm:$0xff]
        %v2376 = vld [vmem:[#allocation8 + $0xd8] sm:$0xff]
        %v2377 = vld [vmem:[#allocation8 + $0xe0] sm:$0xff]
        %v2378 = vld [vmem:[#allocation8 + $0xe8] sm:$0xff]
        %v2379 = vld [vmem:[#allocation8 + $0xf0] sm:$0xff]
        %v2380 = vld [vmem:[#allocation8 + $0xf8] sm:$0xff]
        %v2381 = vld [vmem:[#allocation8 + $0x100] sm:$0xff]
        %v2382 = vld [vmem:[#allocation8 + $0x108] sm:$0xff]
        %v2383 = vld [vmem:[#allocation8 + $0x110] sm:$0xff]
        %v2384 = vld [vmem:[#allocation8 + $0x118] sm:$0xff]
        %v2385 = vld [vmem:[#allocation8 + $0x120] sm:$0xff]
        %v2386 = vld [vmem:[#allocation8 + $0x128] sm:$0xff]
        %v2387 = vld [vmem:[#allocation8 + $0x130] sm:$0xff]
        %v2388 = vld [vmem:[#allocation8 + $0x138] sm:$0xff]
        %v2389 = vld [vmem:[#allocation8 + $0x140] sm:$0xff]
        %v2390 = vld [vmem:[#allocation8 + $0x148] sm:$0xff]
        %v2391 = vld [vmem:[#allocation8 + $0x150] sm:$0xff]
        %v2392 = vld [vmem:[#allocation8 + $0x158] sm:$0xff]
        %v2393 = vld [vmem:[#allocation8 + $0x160] sm:$0xff]
        %v2394 = vld [vmem:[#allocation8 + $0x168] sm:$0xff]
        %v2395 = vld [vmem:[#allocation8 + $0x170] sm:$0xff]
        %v2396 = vld [vmem:[#allocation8 + $0x178] sm:$0xff]
        %v2397 = vld [vmem:[#allocation8 + $0x180] sm:$0xff]
        %v2398 = vld [vmem:[#allocation8 + $0x188] sm:$0xff]
        %v2399 = vld [vmem:[#allocation8 + $0x190] sm:$0xff]
        %v2400 = vld [vmem:[#allocation8 + $0x198] sm:$0xff]
        %v2401 = vld [vmem:[#allocation8 + $0x1a0] sm:$0xff]
        %v2402 = vld [vmem:[#allocation8 + $0x1a8] sm:$0xff]
        %v2403 = vld [vmem:[#allocation8 + $0x1b0] sm:$0xff]
        %v2404 = vld [vmem:[#allocation8 + $0x1b8] sm:$0xff]
        %v2405 = vld [vmem:[#allocation8 + $0x1c0] sm:$0xff]
        %v2406 = vld [vmem:[#allocation8 + $0x1c8] sm:$0xff]
        %v2407 = vld [vmem:[#allocation8 + $0x1d0] sm:$0xff]
        %v2408 = vld [vmem:[#allocation8 + $0x1d8] sm:$0xff]
        %v2409 = vld [vmem:[#allocation8 + $0x1e0] sm:$0xff]
        %v2410 = vld [vmem:[#allocation8 + $0x1e8] sm:$0xff]
        %v2411 = vld [vmem:[#allocation8 + $0x1f0] sm:$0xff]
        %v2412 = vld [vmem:[#allocation8 + $0x1f8] sm:$0xff]
        %v2413 = vld [vmem:[#allocation8 + $0x200] sm:$0xff]
        %v2414 = vld [vmem:[#allocation8 + $0x208] sm:$0xff]
        %v2415 = vld [vmem:[#allocation8 + $0x210] sm:$0xff]
        %v2416 = vld [vmem:[#allocation8 + $0x218] sm:$0xff]
        %v2417 = vld [vmem:[#allocation8 + $0x220] sm:$0xff]
        %v2418 = vld [vmem:[#allocation8 + $0x228] sm:$0xff]
        %v2419 = vld [vmem:[#allocation8 + $0x230] sm:$0xff]
        %v2420 = vld [vmem:[#allocation8 + $0x238] sm:$0xff]
        %v2421 = vld [vmem:[#allocation8 + $0x240] sm:$0xff]
        %v2422 = vld [vmem:[#allocation8 + $0x248] sm:$0xff]
        %v2423 = vld [vmem:[#allocation8 + $0x250] sm:$0xff]
        %v2424 = vld [vmem:[#allocation8 + $0x258] sm:$0xff]
        %v2425 = vld [vmem:[#allocation8 + $0x260] sm:$0xff]
        %v2426 = vld [vmem:[#allocation8 + $0x268] sm:$0xff]
        %v2427 = vld [vmem:[#allocation8 + $0x270] sm:$0xff]
        %v2428 = vld [vmem:[#allocation8 + $0x278] sm:$0xff]
        %v2429 = vld [vmem:[#allocation8 + $0x280] sm:$0xff]
        %v2430 = vld [vmem:[#allocation8 + $0x288] sm:$0xff]
        %v2431 = vld [vmem:[#allocation8 + $0x290] sm:$0xff]
        %v2432 = vld [vmem:[#allocation8 + $0x298] sm:$0xff]
        %v2433 = vld [vmem:[#allocation8 + $0x2a0] sm:$0xff]
        %v2434 = vld [vmem:[#allocation8 + $0x2a8] sm:$0xff]
        %v2435 = vld [vmem:[#allocation8 + $0x2b0] sm:$0xff]
        %v2436 = vld [vmem:[#allocation8 + $0x2b8] sm:$0xff]
        %v2437 = vld [vmem:[#allocation8 + $0x2c0] sm:$0xff]
        %v2438 = vld [vmem:[#allocation8 + $0x2c8] sm:$0xff]
        %v2439 = vld [vmem:[#allocation8 + $0x2d0] sm:$0xff]
        %v2440 = vld [vmem:[#allocation8 + $0x2d8] sm:$0xff]
        %v2441 = vld [vmem:[#allocation8 + $0x2e0] sm:$0xff]
        %v2442 = vld [vmem:[#allocation8 + $0x2e8] sm:$0xff]
        %v2443 = vld [vmem:[#allocation8 + $0x2f0] sm:$0xff]
        %v2444 = vld [vmem:[#allocation8 + $0x2f8] sm:$0xff]
        %v2445 = vld [vmem:[#allocation8 + $0x300] sm:$0xff]
        %v2446 = vld [vmem:[#allocation8 + $0x308] sm:$0xff]
        %v2447 = vld [vmem:[#allocation8 + $0x310] sm:$0xff]
        %v2448 = vld [vmem:[#allocation8 + $0x318] sm:$0xff]
        %v2449 = vld [vmem:[#allocation8 + $0x320] sm:$0xff]
        %v2450 = vld [vmem:[#allocation8 + $0x328] sm:$0xff]
        %v2451 = vld [vmem:[#allocation8 + $0x330] sm:$0xff]
        %v2452 = vld [vmem:[#allocation8 + $0x338] sm:$0xff]
        %v2453 = vld [vmem:[#allocation8 + $0x340] sm:$0xff]
        %v2454 = vld [vmem:[#allocation8 + $0x348] sm:$0xff]
        %v2455 = vld [vmem:[#allocation8 + $0x350] sm:$0xff]
        %v2456 = vld [vmem:[#allocation8 + $0x358] sm:$0xff]
        %v2457 = vld [vmem:[#allocation8 + $0x360] sm:$0xff]
        %v2458 = vld [vmem:[#allocation8 + $0x368] sm:$0xff]
        %v2459 = vld [vmem:[#allocation8 + $0x370] sm:$0xff]
        %v2460 = vld [vmem:[#allocation8 + $0x378] sm:$0xff]
        %v2461 = vld [vmem:[#allocation8 + $0x380] sm:$0xff]
        %v2462 = vld [vmem:[#allocation8 + $0x388] sm:$0xff]
        %v2463 = vld [vmem:[#allocation8 + $0x390] sm:$0xff]
        %v2464 = vld [vmem:[#allocation8 + $0x398] sm:$0xff]
        %v2465 = vld [vmem:[#allocation8 + $0x3a0] sm:$0xff]
        %v2466 = vld [vmem:[#allocation8 + $0x3a8] sm:$0xff]
        %v2467 = vld [vmem:[#allocation8 + $0x3b0] sm:$0xff]
        %v2468 = vld [vmem:[#allocation8 + $0x3b8] sm:$0xff]
        %v2469 = vld [vmem:[#allocation8 + $0x3c0] sm:$0xff]
        %v2470 = vld [vmem:[#allocation8 + $0x3c8] sm:$0xff]
        %v2471 = vld [vmem:[#allocation8 + $0x3d0] sm:$0xff]
        %v2472 = vld [vmem:[#allocation8 + $0x3d8] sm:$0xff]
        %v2473 = vld [vmem:[#allocation8 + $0x3e0] sm:$0xff]
        %v2474 = vld [vmem:[#allocation8 + $0x3e8] sm:$0xff]
        %v2475 = vld [vmem:[#allocation8 + $0x3f0] sm:$0xff]
        %v2476 = vld [vmem:[#allocation8 + $0x3f8] sm:$0xff]
        %v2477 = vld [vmem:[#allocation10] sm:$0xf]
        %v2479 = vperm.slane %v2477, 0
        %v2480 = vperm.slane %v2477, 1
        %v2481 = vperm.slane %v2477, 2
        %v2482 = vperm.slane %v2477, 3
        %v2615 = vunpack.c.l.b16 %v2349
        %v2616 = vunpack.c.h.b16 %v2349
        %v2617 = vunpack.c.l.b16 %v2350
        %v2618 = vunpack.c.h.b16 %v2350
        %v2619 = vunpack.c.l.b16 %v2351
        %v2620 = vunpack.c.h.b16 %v2351
        %v2621 = vunpack.c.l.b16 %v2352
        %v2622 = vunpack.c.h.b16 %v2352
        %v2623 = vunpack.c.l.b16 %v2353
        %v2624 = vunpack.c.h.b16 %v2353
        %v2625 = vunpack.c.l.b16 %v2354
        %v2626 = vunpack.c.h.b16 %v2354
        %v2627 = vunpack.c.l.b16 %v2355
        %v2628 = vunpack.c.h.b16 %v2355
        %v2629 = vunpack.c.l.b16 %v2356
        %v2630 = vunpack.c.h.b16 %v2356
        %v2631 = vunpack.c.l.b16 %v2357
        %v2632 = vunpack.c.h.b16 %v2357
        %v2633 = vunpack.c.l.b16 %v2358
        %v2634 = vunpack.c.h.b16 %v2358
        %v2635 = vunpack.c.l.b16 %v2359
        %v2636 = vunpack.c.h.b16 %v2359
        %v2637 = vunpack.c.l.b16 %v2360
        %v2638 = vunpack.c.h.b16 %v2360
        %v2639 = vunpack.c.l.b16 %v2361
        %v2640 = vunpack.c.h.b16 %v2361
        %v2641 = vunpack.c.l.b16 %v2362
        %v2642 = vunpack.c.h.b16 %v2362
        %v2643 = vunpack.c.l.b16 %v2363
        %v2644 = vunpack.c.h.b16 %v2363
        %v2645 = vunpack.c.l.b16 %v2364
        %v2646 = vunpack.c.h.b16 %v2364
        %v2647 = vunpack.c.l.b16 %v2365
        %v2648 = vunpack.c.h.b16 %v2365
        %v2649 = vunpack.c.l.b16 %v2366
        %v2650 = vunpack.c.h.b16 %v2366
        %v2651 = vunpack.c.l.b16 %v2367
        %v2652 = vunpack.c.h.b16 %v2367
        %v2653 = vunpack.c.l.b16 %v2368
        %v2654 = vunpack.c.h.b16 %v2368
        %v2655 = vunpack.c.l.b16 %v2369
        %v2656 = vunpack.c.h.b16 %v2369
        %v2657 = vunpack.c.l.b16 %v2370
        %v2658 = vunpack.c.h.b16 %v2370
        %v2659 = vunpack.c.l.b16 %v2371
        %v2660 = vunpack.c.h.b16 %v2371
        %v2661 = vunpack.c.l.b16 %v2372
        %v2662 = vunpack.c.h.b16 %v2372
        %v2663 = vunpack.c.l.b16 %v2373
        %v2664 = vunpack.c.h.b16 %v2373
        %v2665 = vunpack.c.l.b16 %v2374
        %v2666 = vunpack.c.h.b16 %v2374
        %v2667 = vunpack.c.l.b16 %v2375
        %v2668 = vunpack.c.h.b16 %v2375
        %v2669 = vunpack.c.l.b16 %v2376
        %v2670 = vunpack.c.h.b16 %v2376
        %v2671 = vunpack.c.l.b16 %v2377
        %v2672 = vunpack.c.h.b16 %v2377
        %v2673 = vunpack.c.l.b16 %v2378
        %v2674 = vunpack.c.h.b16 %v2378
        %v2675 = vunpack.c.l.b16 %v2379
        %v2676 = vunpack.c.h.b16 %v2379
        %v2677 = vunpack.c.l.b16 %v2380
        %v2678 = vunpack.c.h.b16 %v2380
        %v2679 = vunpack.c.l.b16 %v2381
        %v2680 = vunpack.c.h.b16 %v2381
        %v2681 = vunpack.c.l.b16 %v2382
        %v2682 = vunpack.c.h.b16 %v2382
        %v2683 = vunpack.c.l.b16 %v2383
        %v2684 = vunpack.c.h.b16 %v2383
        %v2685 = vunpack.c.l.b16 %v2384
        %v2686 = vunpack.c.h.b16 %v2384
        %v2687 = vunpack.c.l.b16 %v2385
        %v2688 = vunpack.c.h.b16 %v2385
        %v2689 = vunpack.c.l.b16 %v2386
        %v2690 = vunpack.c.h.b16 %v2386
        %v2691 = vunpack.c.l.b16 %v2387
        %v2692 = vunpack.c.h.b16 %v2387
        %v2693 = vunpack.c.l.b16 %v2388
        %v2694 = vunpack.c.h.b16 %v2388
        %v2695 = vunpack.c.l.b16 %v2389
        %v2696 = vunpack.c.h.b16 %v2389
        %v2697 = vunpack.c.l.b16 %v2390
        %v2698 = vunpack.c.h.b16 %v2390
        %v2699 = vunpack.c.l.b16 %v2391
        %v2700 = vunpack.c.h.b16 %v2391
        %v2701 = vunpack.c.l.b16 %v2392
        %v2702 = vunpack.c.h.b16 %v2392
        %v2703 = vunpack.c.l.b16 %v2393
        %v2704 = vunpack.c.h.b16 %v2393
        %v2705 = vunpack.c.l.b16 %v2394
        %v2706 = vunpack.c.h.b16 %v2394
        %v2707 = vunpack.c.l.b16 %v2395
        %v2708 = vunpack.c.h.b16 %v2395
        %v2709 = vunpack.c.l.b16 %v2396
        %v2710 = vunpack.c.h.b16 %v2396
        %v2711 = vunpack.c.l.b16 %v2397
        %v2712 = vunpack.c.h.b16 %v2397
        %v2713 = vunpack.c.l.b16 %v2398
        %v2714 = vunpack.c.h.b16 %v2398
        %v2715 = vunpack.c.l.b16 %v2399
        %v2716 = vunpack.c.h.b16 %v2399
        %v2717 = vunpack.c.l.b16 %v2400
        %v2718 = vunpack.c.h.b16 %v2400
        %v2719 = vunpack.c.l.b16 %v2401
        %v2720 = vunpack.c.h.b16 %v2401
        %v2721 = vunpack.c.l.b16 %v2402
        %v2722 = vunpack.c.h.b16 %v2402
        %v2723 = vunpack.c.l.b16 %v2403
        %v2724 = vunpack.c.h.b16 %v2403
        %v2725 = vunpack.c.l.b16 %v2404
        %v2726 = vunpack.c.h.b16 %v2404
        %v2727 = vunpack.c.l.b16 %v2405
        %v2728 = vunpack.c.h.b16 %v2405
        %v2729 = vunpack.c.l.b16 %v2406
        %v2730 = vunpack.c.h.b16 %v2406
        %v2731 = vunpack.c.l.b16 %v2407
        %v2732 = vunpack.c.h.b16 %v2407
        %v2733 = vunpack.c.l.b16 %v2408
        %v2734 = vunpack.c.h.b16 %v2408
        %v2735 = vunpack.c.l.b16 %v2409
        %v2736 = vunpack.c.h.b16 %v2409
        %v2737 = vunpack.c.l.b16 %v2410
        %v2738 = vunpack.c.h.b16 %v2410
        %v2739 = vunpack.c.l.b16 %v2411
        %v2740 = vunpack.c.h.b16 %v2411
        %v2741 = vunpack.c.l.b16 %v2412
        %v2742 = vunpack.c.h.b16 %v2412
        %v2743 = vunpack.c.l.b16 %v2413
        %v2744 = vunpack.c.h.b16 %v2413
        %v2745 = vunpack.c.l.b16 %v2414
        %v2746 = vunpack.c.h.b16 %v2414
        %v2747 = vunpack.c.l.b16 %v2415
        %v2748 = vunpack.c.h.b16 %v2415
        %v2749 = vunpack.c.l.b16 %v2416
        %v2750 = vunpack.c.h.b16 %v2416
        %v2751 = vunpack.c.l.b16 %v2417
        %v2752 = vunpack.c.h.b16 %v2417
        %v2753 = vunpack.c.l.b16 %v2418
        %v2754 = vunpack.c.h.b16 %v2418
        %v2755 = vunpack.c.l.b16 %v2419
        %v2756 = vunpack.c.h.b16 %v2419
        %v2757 = vunpack.c.l.b16 %v2420
        %v2758 = vunpack.c.h.b16 %v2420
        %v2759 = vunpack.c.l.b16 %v2421
        %v2760 = vunpack.c.h.b16 %v2421
        %v2761 = vunpack.c.l.b16 %v2422
        %v2762 = vunpack.c.h.b16 %v2422
        %v2763 = vunpack.c.l.b16 %v2423
        %v2764 = vunpack.c.h.b16 %v2423
        %v2765 = vunpack.c.l.b16 %v2424
        %v2766 = vunpack.c.h.b16 %v2424
        %v2767 = vunpack.c.l.b16 %v2425
        %v2768 = vunpack.c.h.b16 %v2425
        %v2769 = vunpack.c.l.b16 %v2426
        %v2770 = vunpack.c.h.b16 %v2426
        %v2771 = vunpack.c.l.b16 %v2427
        %v2772 = vunpack.c.h.b16 %v2427
        %v2773 = vunpack.c.l.b16 %v2428
        %v2774 = vunpack.c.h.b16 %v2428
        %v2775 = vunpack.c.l.b16 %v2429
        %v2776 = vunpack.c.h.b16 %v2429
        %v2777 = vunpack.c.l.b16 %v2430
        %v2778 = vunpack.c.h.b16 %v2430
        %v2779 = vunpack.c.l.b16 %v2431
        %v2780 = vunpack.c.h.b16 %v2431
        %v2781 = vunpack.c.l.b16 %v2432
        %v2782 = vunpack.c.h.b16 %v2432
        %v2783 = vunpack.c.l.b16 %v2433
        %v2784 = vunpack.c.h.b16 %v2433
        %v2785 = vunpack.c.l.b16 %v2434
        %v2786 = vunpack.c.h.b16 %v2434
        %v2787 = vunpack.c.l.b16 %v2435
        %v2788 = vunpack.c.h.b16 %v2435
        %v2789 = vunpack.c.l.b16 %v2436
        %v2790 = vunpack.c.h.b16 %v2436
        %v2791 = vunpack.c.l.b16 %v2437
        %v2792 = vunpack.c.h.b16 %v2437
        %v2793 = vunpack.c.l.b16 %v2438
        %v2794 = vunpack.c.h.b16 %v2438
        %v2795 = vunpack.c.l.b16 %v2439
        %v2796 = vunpack.c.h.b16 %v2439
        %v2797 = vunpack.c.l.b16 %v2440
        %v2798 = vunpack.c.h.b16 %v2440
        %v2799 = vunpack.c.l.b16 %v2441
        %v2800 = vunpack.c.h.b16 %v2441
        %v2801 = vunpack.c.l.b16 %v2442
        %v2802 = vunpack.c.h.b16 %v2442
        %v2803 = vunpack.c.l.b16 %v2443
        %v2804 = vunpack.c.h.b16 %v2443
        %v2805 = vunpack.c.l.b16 %v2444
        %v2806 = vunpack.c.h.b16 %v2444
        %v2807 = vunpack.c.l.b16 %v2445
        %v2808 = vunpack.c.h.b16 %v2445
        %v2809 = vunpack.c.l.b16 %v2446
        %v2810 = vunpack.c.h.b16 %v2446
        %v2811 = vunpack.c.l.b16 %v2447
        %v2812 = vunpack.c.h.b16 %v2447
        %v2813 = vunpack.c.l.b16 %v2448
        %v2814 = vunpack.c.h.b16 %v2448
        %v2815 = vunpack.c.l.b16 %v2449
        %v2816 = vunpack.c.h.b16 %v2449
        %v2817 = vunpack.c.l.b16 %v2450
        %v2818 = vunpack.c.h.b16 %v2450
        %v2819 = vunpack.c.l.b16 %v2451
        %v2820 = vunpack.c.h.b16 %v2451
        %v2821 = vunpack.c.l.b16 %v2452
        %v2822 = vunpack.c.h.b16 %v2452
        %v2823 = vunpack.c.l.b16 %v2453
        %v2824 = vunpack.c.h.b16 %v2453
        %v2825 = vunpack.c.l.b16 %v2454
        %v2826 = vunpack.c.h.b16 %v2454
        %v2827 = vunpack.c.l.b16 %v2455
        %v2828 = vunpack.c.h.b16 %v2455
        %v2829 = vunpack.c.l.b16 %v2456
        %v2830 = vunpack.c.h.b16 %v2456
        %v2831 = vunpack.c.l.b16 %v2457
        %v2832 = vunpack.c.h.b16 %v2457
        %v2833 = vunpack.c.l.b16 %v2458
        %v2834 = vunpack.c.h.b16 %v2458
        %v2835 = vunpack.c.l.b16 %v2459
        %v2836 = vunpack.c.h.b16 %v2459
        %v2837 = vunpack.c.l.b16 %v2460
        %v2838 = vunpack.c.h.b16 %v2460
        %v2839 = vunpack.c.l.b16 %v2461
        %v2840 = vunpack.c.h.b16 %v2461
        %v2841 = vunpack.c.l.b16 %v2462
        %v2842 = vunpack.c.h.b16 %v2462
        %v2843 = vunpack.c.l.b16 %v2463
        %v2844 = vunpack.c.h.b16 %v2463
        %v2845 = vunpack.c.l.b16 %v2464
        %v2846 = vunpack.c.h.b16 %v2464
        %v2847 = vunpack.c.l.b16 %v2465
        %v2848 = vunpack.c.h.b16 %v2465
        %v2849 = vunpack.c.l.b16 %v2466
        %v2850 = vunpack.c.h.b16 %v2466
        %v2851 = vunpack.c.l.b16 %v2467
        %v2852 = vunpack.c.h.b16 %v2467
        %v2853 = vunpack.c.l.b16 %v2468
        %v2854 = vunpack.c.h.b16 %v2468
        %v2855 = vunpack.c.l.b16 %v2469
        %v2856 = vunpack.c.h.b16 %v2469
        %v2857 = vunpack.c.l.b16 %v2470
        %v2858 = vunpack.c.h.b16 %v2470
        %v2859 = vunpack.c.l.b16 %v2471
        %v2860 = vunpack.c.h.b16 %v2471
        %v2861 = vunpack.c.l.b16 %v2472
        %v2862 = vunpack.c.h.b16 %v2472
        %v2863 = vunpack.c.l.b16 %v2473
        %v2864 = vunpack.c.h.b16 %v2473
        %v2865 = vunpack.c.l.b16 %v2474
        %v2866 = vunpack.c.h.b16 %v2474
        %v2867 = vunpack.c.l.b16 %v2475
        %v2868 = vunpack.c.h.b16 %v2475
        %v2869 = vunpack.c.l.b16 %v2476
        %v2870 = vunpack.c.h.b16 %v2476
        %v2871 = vpack.c.b16 %v2619, %v2615
        %v2872 = vpack.c.b16 %v2620, %v2616
        %v2873 = vpack.c.b16 %v2621, %v2617
        %v2874 = vpack.c.b16 %v2622, %v2618
        %v2875 = vpack.c.b16 %v2627, %v2623
        %v2876 = vpack.c.b16 %v2628, %v2624
        %v2877 = vpack.c.b16 %v2629, %v2625
        %v2878 = vpack.c.b16 %v2630, %v2626
        %v2879 = vpack.c.b16 %v2635, %v2631
        %v2880 = vpack.c.b16 %v2636, %v2632
        %v2881 = vpack.c.b16 %v2637, %v2633
        %v2882 = vpack.c.b16 %v2638, %v2634
        %v2883 = vpack.c.b16 %v2643, %v2639
        %v2884 = vpack.c.b16 %v2644, %v2640
        %v2885 = vpack.c.b16 %v2645, %v2641
        %v2886 = vpack.c.b16 %v2646, %v2642
        %v2887 = vpack.c.b16 %v2651, %v2647
        %v2888 = vpack.c.b16 %v2652, %v2648
        %v2889 = vpack.c.b16 %v2653, %v2649
        %v2890 = vpack.c.b16 %v2654, %v2650
        %v2891 = vpack.c.b16 %v2659, %v2655
        %v2892 = vpack.c.b16 %v2660, %v2656
        %v2893 = vpack.c.b16 %v2661, %v2657
        %v2894 = vpack.c.b16 %v2662, %v2658
        %v2895 = vpack.c.b16 %v2667, %v2663
        %v2896 = vpack.c.b16 %v2668, %v2664
        %v2897 = vpack.c.b16 %v2669, %v2665
        %v2898 = vpack.c.b16 %v2670, %v2666
        %v2899 = vpack.c.b16 %v2675, %v2671
        %v2900 = vpack.c.b16 %v2676, %v2672
        %v2901 = vpack.c.b16 %v2677, %v2673
        %v2902 = vpack.c.b16 %v2678, %v2674
        %v2903 = vpack.c.b16 %v2683, %v2679
        %v2904 = vpack.c.b16 %v2684, %v2680
        %v2905 = vpack.c.b16 %v2685, %v2681
        %v2906 = vpack.c.b16 %v2686, %v2682
        %v2907 = vpack.c.b16 %v2691, %v2687
        %v2908 = vpack.c.b16 %v2692, %v2688
        %v2909 = vpack.c.b16 %v2693, %v2689
        %v2910 = vpack.c.b16 %v2694, %v2690
        %v2911 = vpack.c.b16 %v2699, %v2695
        %v2912 = vpack.c.b16 %v2700, %v2696
        %v2913 = vpack.c.b16 %v2701, %v2697
        %v2914 = vpack.c.b16 %v2702, %v2698
        %v2915 = vpack.c.b16 %v2707, %v2703
        %v2916 = vpack.c.b16 %v2708, %v2704
        %v2917 = vpack.c.b16 %v2709, %v2705
        %v2918 = vpack.c.b16 %v2710, %v2706
        %v2919 = vpack.c.b16 %v2715, %v2711
        %v2920 = vpack.c.b16 %v2716, %v2712
        %v2921 = vpack.c.b16 %v2717, %v2713
        %v2922 = vpack.c.b16 %v2718, %v2714
        %v2923 = vpack.c.b16 %v2723, %v2719
        %v2924 = vpack.c.b16 %v2724, %v2720
        %v2925 = vpack.c.b16 %v2725, %v2721
        %v2926 = vpack.c.b16 %v2726, %v2722
        %v2927 = vpack.c.b16 %v2731, %v2727
        %v2928 = vpack.c.b16 %v2732, %v2728
        %v2929 = vpack.c.b16 %v2733, %v2729
        %v2930 = vpack.c.b16 %v2734, %v2730
        %v2931 = vpack.c.b16 %v2739, %v2735
        %v2932 = vpack.c.b16 %v2740, %v2736
        %v2933 = vpack.c.b16 %v2741, %v2737
        %v2934 = vpack.c.b16 %v2742, %v2738
        %v2935 = vpack.c.b16 %v2747, %v2743
        %v2936 = vpack.c.b16 %v2748, %v2744
        %v2937 = vpack.c.b16 %v2749, %v2745
        %v2938 = vpack.c.b16 %v2750, %v2746
        %v2939 = vpack.c.b16 %v2755, %v2751
        %v2940 = vpack.c.b16 %v2756, %v2752
        %v2941 = vpack.c.b16 %v2757, %v2753
        %v2942 = vpack.c.b16 %v2758, %v2754
        %v2943 = vpack.c.b16 %v2763, %v2759
        %v2944 = vpack.c.b16 %v2764, %v2760
        %v2945 = vpack.c.b16 %v2765, %v2761
        %v2946 = vpack.c.b16 %v2766, %v2762
        %v2947 = vpack.c.b16 %v2771, %v2767
        %v2948 = vpack.c.b16 %v2772, %v2768
        %v2949 = vpack.c.b16 %v2773, %v2769
        %v2950 = vpack.c.b16 %v2774, %v2770
        %v2951 = vpack.c.b16 %v2779, %v2775
        %v2952 = vpack.c.b16 %v2780, %v2776
        %v2953 = vpack.c.b16 %v2781, %v2777
        %v2954 = vpack.c.b16 %v2782, %v2778
        %v2955 = vpack.c.b16 %v2787, %v2783
        %v2956 = vpack.c.b16 %v2788, %v2784
        %v2957 = vpack.c.b16 %v2789, %v2785
        %v2958 = vpack.c.b16 %v2790, %v2786
        %v2959 = vpack.c.b16 %v2795, %v2791
        %v2960 = vpack.c.b16 %v2796, %v2792
        %v2961 = vpack.c.b16 %v2797, %v2793
        %v2962 = vpack.c.b16 %v2798, %v2794
        %v2963 = vpack.c.b16 %v2803, %v2799
        %v2964 = vpack.c.b16 %v2804, %v2800
        %v2965 = vpack.c.b16 %v2805, %v2801
        %v2966 = vpack.c.b16 %v2806, %v2802
        %v2967 = vpack.c.b16 %v2811, %v2807
        %v2968 = vpack.c.b16 %v2812, %v2808
        %v2969 = vpack.c.b16 %v2813, %v2809
        %v2970 = vpack.c.b16 %v2814, %v2810
        %v2971 = vpack.c.b16 %v2819, %v2815
        %v2972 = vpack.c.b16 %v2820, %v2816
        %v2973 = vpack.c.b16 %v2821, %v2817
        %v2974 = vpack.c.b16 %v2822, %v2818
        %v2975 = vpack.c.b16 %v2827, %v2823
        %v2976 = vpack.c.b16 %v2828, %v2824
        %v2977 = vpack.c.b16 %v2829, %v2825
        %v2978 = vpack.c.b16 %v2830, %v2826
        %v2979 = vpack.c.b16 %v2835, %v2831
        %v2980 = vpack.c.b16 %v2836, %v2832
        %v2981 = vpack.c.b16 %v2837, %v2833
        %v2982 = vpack.c.b16 %v2838, %v2834
        %v2983 = vpack.c.b16 %v2843, %v2839
        %v2984 = vpack.c.b16 %v2844, %v2840
        %v2985 = vpack.c.b16 %v2845, %v2841
        %v2986 = vpack.c.b16 %v2846, %v2842
        %v2987 = vpack.c.b16 %v2851, %v2847
        %v2988 = vpack.c.b16 %v2852, %v2848
        %v2989 = vpack.c.b16 %v2853, %v2849
        %v2990 = vpack.c.b16 %v2854, %v2850
        %v2991 = vpack.c.b16 %v2859, %v2855
        %v2992 = vpack.c.b16 %v2860, %v2856
        %v2993 = vpack.c.b16 %v2861, %v2857
        %v2994 = vpack.c.b16 %v2862, %v2858
        %v2995 = vpack.c.b16 %v2867, %v2863
        %v2996 = vpack.c.b16 %v2868, %v2864
        %v2997 = vpack.c.b16 %v2869, %v2865
        %v2998 = vpack.c.b16 %v2870, %v2866
        %3127 = vmatpush.bf16.msra.mxu0 %v2899
        %3128 = vmatpush.bf16.msra.mxu0 %v2895
        %3129 = vmatpush.bf16.msra.mxu0 %v2891
        %3130 = vmatpush.bf16.msra.mxu0 %v2887
        %3131 = vmatpush.bf16.msra.mxu0 %v2883
        %3132 = vmatpush.bf16.msra.mxu0 %v2879
        %3133 = vmatpush.bf16.msra.mxu0 %v2875
        %3134 = vmatpush.bf16.msra.mxu0 %v2871
        %3135 = vmatmul.bf16.gmra.mxu0 %v2337
        %v3136 = vpop.f32.mrf.mxu0
        %v3137 = vadd.f32 %v2479, %v3136
        %v3138 = vpop.f32.mrf.mxu0
        %v3139 = vadd.f32 %v2479, %v3138
        %3140 = vmatmul.bf16.gmra.mxu0 %v2341
        %v3141 = vpop.f32.mrf.mxu0
        %v3142 = vadd.f32 %v2479, %v3141
        %v3143 = vpop.f32.mrf.mxu0
        %v3144 = vadd.f32 %v2479, %v3143
        %3145 = vmatmul.bf16.gmra.mxu0 %v2345
        %v3146 = vpop.f32.mrf.mxu0
        %v3147 = vadd.f32 %v2479, %v3146
        %v3148 = vpop.f32.mrf.mxu0
        %v3149 = vadd.f32 %v2479, %v3148
        %3150 = vdwg.mxu0
        %3151 = vmatpush.bf16.msra.mxu0 %v2931
        %3152 = vmatpush.bf16.msra.mxu0 %v2927
        %3153 = vmatpush.bf16.msra.mxu0 %v2923
        %3154 = vmatpush.bf16.msra.mxu0 %v2919
        %3155 = vmatpush.bf16.msra.mxu0 %v2915
        %3156 = vmatpush.bf16.msra.mxu0 %v2911
        %3157 = vmatpush.bf16.msra.mxu0 %v2907
        %3158 = vmatpush.bf16.msra.mxu0 %v2903
        %3159 = vmatmul.bf16.gmra.mxu0 %v2338
        %v3160 = vpop.f32.mrf.mxu0
        %v3161 = vadd.f32 %v3137, %v3160
        %v3162 = vpop.f32.mrf.mxu0
        %v3163 = vadd.f32 %v3139, %v3162
        %3164 = vmatmul.bf16.gmra.mxu0 %v2342
        %v3165 = vpop.f32.mrf.mxu0
        %v3166 = vadd.f32 %v3142, %v3165
        %v3167 = vpop.f32.mrf.mxu0
        %v3168 = vadd.f32 %v3144, %v3167
        %3169 = vmatmul.bf16.gmra.mxu0 %v2346
        %v3170 = vpop.f32.mrf.mxu0
        %v3171 = vadd.f32 %v3147, %v3170
        %v3172 = vpop.f32.mrf.mxu0
        %v3173 = vadd.f32 %v3149, %v3172
        %3174 = vdwg.mxu0
        %3175 = vmatpush.bf16.msra.mxu0 %v2963
        %3176 = vmatpush.bf16.msra.mxu0 %v2959
        %3177 = vmatpush.bf16.msra.mxu0 %v2955
        %3178 = vmatpush.bf16.msra.mxu0 %v2951
        %3179 = vmatpush.bf16.msra.mxu0 %v2947
        %3180 = vmatpush.bf16.msra.mxu0 %v2943
        %3181 = vmatpush.bf16.msra.mxu0 %v2939
        %3182 = vmatpush.bf16.msra.mxu0 %v2935
        %3183 = vmatmul.bf16.gmra.mxu0 %v2339
        %v3184 = vpop.f32.mrf.mxu0
        %v3185 = vadd.f32 %v3161, %v3184
        %v3186 = vpop.f32.mrf.mxu0
        %v3187 = vadd.f32 %v3163, %v3186
        %3188 = vmatmul.bf16.gmra.mxu0 %v2343
        %v3189 = vpop.f32.mrf.mxu0
        %v3190 = vadd.f32 %v3166, %v3189
        %v3191 = vpop.f32.mrf.mxu0
        %v3192 = vadd.f32 %v3168, %v3191
        %3193 = vmatmul.bf16.gmra.mxu0 %v2347
        %v3194 = vpop.f32.mrf.mxu0
        %v3195 = vadd.f32 %v3171, %v3194
        %v3196 = vpop.f32.mrf.mxu0
        %v3197 = vadd.f32 %v3173, %v3196
        %3198 = vdwg.mxu0
        %3199 = vmatpush.bf16.msra.mxu0 %v2995
        %3200 = vmatpush.bf16.msra.mxu0 %v2991
        %3201 = vmatpush.bf16.msra.mxu0 %v2987
        %3202 = vmatpush.bf16.msra.mxu0 %v2983
        %3203 = vmatpush.bf16.msra.mxu0 %v2979
        %3204 = vmatpush.bf16.msra.mxu0 %v2975
        %3205 = vmatpush.bf16.msra.mxu0 %v2971
        %3206 = vmatpush.bf16.msra.mxu0 %v2967
        %3207 = vmatmul.bf16.gmra.mxu0 %v2340
        %v3208 = vpop.f32.mrf.mxu0
        %v3209 = vadd.f32 %v3185, %v3208
        %v3210 = vpop.f32.mrf.mxu0
        %v3211 = vadd.f32 %v3187, %v3210
        %3212 = vmatmul.bf16.gmra.mxu0 %v2344
        %v3213 = vpop.f32.mrf.mxu0
        %v3214 = vadd.f32 %v3190, %v3213
        %v3215 = vpop.f32.mrf.mxu0
        %v3216 = vadd.f32 %v3192, %v3215
        %3217 = vmatmul.bf16.gmra.mxu0 %v2348
        %v3218 = vpop.f32.mrf.mxu0
        %v3219 = vadd.f32 %v3195, %v3218
        %v3220 = vpop.f32.mrf.mxu0
        %v3221 = vadd.f32 %v3197, %v3220
        %3222 = vdwg.mxu0
        %3223 = vmatpush.bf16.msra.mxu0 %v2900
        %3224 = vmatpush.bf16.msra.mxu0 %v2896
        %3225 = vmatpush.bf16.msra.mxu0 %v2892
        %3226 = vmatpush.bf16.msra.mxu0 %v2888
        %3227 = vmatpush.bf16.msra.mxu0 %v2884
        %3228 = vmatpush.bf16.msra.mxu0 %v2880
        %3229 = vmatpush.bf16.msra.mxu0 %v2876
        %3230 = vmatpush.bf16.msra.mxu0 %v2872
        %3231 = vmatmul.bf16.gmra.mxu0 %v2337
        %v3232 = vpop.f32.mrf.mxu0
        %v3233 = vadd.f32 %v2480, %v3232
        %v3234 = vpop.f32.mrf.mxu0
        %v3235 = vadd.f32 %v2480, %v3234
        %3236 = vmatmul.bf16.gmra.mxu0 %v2341
        %v3237 = vpop.f32.mrf.mxu0
        %v3238 = vadd.f32 %v2480, %v3237
        %v3239 = vpop.f32.mrf.mxu0
        %v3240 = vadd.f32 %v2480, %v3239
        %3241 = vmatmul.bf16.gmra.mxu0 %v2345
        %v3242 = vpop.f32.mrf.mxu0
        %v3243 = vadd.f32 %v2480, %v3242
        %v3244 = vpop.f32.mrf.mxu0
        %v3245 = vadd.f32 %v2480, %v3244
        %3246 = vdwg.mxu0
        %3247 = vmatpush.bf16.msra.mxu0 %v2932
        %3248 = vmatpush.bf16.msra.mxu0 %v2928
        %3249 = vmatpush.bf16.msra.mxu0 %v2924
        %3250 = vmatpush.bf16.msra.mxu0 %v2920
        %3251 = vmatpush.bf16.msra.mxu0 %v2916
        %3252 = vmatpush.bf16.msra.mxu0 %v2912
        %3253 = vmatpush.bf16.msra.mxu0 %v2908
        %3254 = vmatpush.bf16.msra.mxu0 %v2904
        %3255 = vmatmul.bf16.gmra.mxu0 %v2338
        %v3256 = vpop.f32.mrf.mxu0
        %v3257 = vadd.f32 %v3233, %v3256
        %v3258 = vpop.f32.mrf.mxu0
        %v3259 = vadd.f32 %v3235, %v3258
        %3260 = vmatmul.bf16.gmra.mxu0 %v2342
        %v3261 = vpop.f32.mrf.mxu0
        %v3262 = vadd.f32 %v3238, %v3261
        %v3263 = vpop.f32.mrf.mxu0
        %v3264 = vadd.f32 %v3240, %v3263
        %3265 = vmatmul.bf16.gmra.mxu0 %v2346
        %v3266 = vpop.f32.mrf.mxu0
        %v3267 = vadd.f32 %v3243, %v3266
        %v3268 = vpop.f32.mrf.mxu0
        %v3269 = vadd.f32 %v3245, %v3268
        %3270 = vdwg.mxu0
        %3271 = vmatpush.bf16.msra.mxu0 %v2964
        %3272 = vmatpush.bf16.msra.mxu0 %v2960
        %3273 = vmatpush.bf16.msra.mxu0 %v2956
        %3274 = vmatpush.bf16.msra.mxu0 %v2952
        %3275 = vmatpush.bf16.msra.mxu0 %v2948
        %3276 = vmatpush.bf16.msra.mxu0 %v2944
        %3277 = vmatpush.bf16.msra.mxu0 %v2940
        %3278 = vmatpush.bf16.msra.mxu0 %v2936
        %3279 = vmatmul.bf16.gmra.mxu0 %v2339
        %v3280 = vpop.f32.mrf.mxu0
        %v3281 = vadd.f32 %v3257, %v3280
        %v3282 = vpop.f32.mrf.mxu0
        %v3283 = vadd.f32 %v3259, %v3282
        %3284 = vmatmul.bf16.gmra.mxu0 %v2343
        %v3285 = vpop.f32.mrf.mxu0
        %v3286 = vadd.f32 %v3262, %v3285
        %v3287 = vpop.f32.mrf.mxu0
        %v3288 = vadd.f32 %v3264, %v3287
        %3289 = vmatmul.bf16.gmra.mxu0 %v2347
        %v3290 = vpop.f32.mrf.mxu0
        %v3291 = vadd.f32 %v3267, %v3290
        %v3292 = vpop.f32.mrf.mxu0
        %v3293 = vadd.f32 %v3269, %v3292
        %3294 = vdwg.mxu0
        %3295 = vmatpush.bf16.msra.mxu0 %v2996
        %3296 = vmatpush.bf16.msra.mxu0 %v2992
        %3297 = vmatpush.bf16.msra.mxu0 %v2988
        %3298 = vmatpush.bf16.msra.mxu0 %v2984
        %3299 = vmatpush.bf16.msra.mxu0 %v2980
        %3300 = vmatpush.bf16.msra.mxu0 %v2976
        %3301 = vmatpush.bf16.msra.mxu0 %v2972
        %3302 = vmatpush.bf16.msra.mxu0 %v2968
        %3303 = vmatmul.bf16.gmra.mxu0 %v2340
        %v3304 = vpop.f32.mrf.mxu0
        %v3305 = vadd.f32 %v3281, %v3304
        %v3306 = vpop.f32.mrf.mxu0
        %v3307 = vadd.f32 %v3283, %v3306
        %3308 = vmatmul.bf16.gmra.mxu0 %v2344
        %v3309 = vpop.f32.mrf.mxu0
        %v3310 = vadd.f32 %v3286, %v3309
        %v3311 = vpop.f32.mrf.mxu0
        %v3312 = vadd.f32 %v3288, %v3311
        %3313 = vmatmul.bf16.gmra.mxu0 %v2348
        %v3314 = vpop.f32.mrf.mxu0
        %v3315 = vadd.f32 %v3291, %v3314
        %v3316 = vpop.f32.mrf.mxu0
        %v3317 = vadd.f32 %v3293, %v3316
        %3318 = vdwg.mxu0
        %3319 = vmatpush.bf16.msra.mxu0 %v2901
        %3320 = vmatpush.bf16.msra.mxu0 %v2897
        %3321 = vmatpush.bf16.msra.mxu0 %v2893
        %3322 = vmatpush.bf16.msra.mxu0 %v2889
        %3323 = vmatpush.bf16.msra.mxu0 %v2885
        %3324 = vmatpush.bf16.msra.mxu0 %v2881
        %3325 = vmatpush.bf16.msra.mxu0 %v2877
        %3326 = vmatpush.bf16.msra.mxu0 %v2873
        %3327 = vmatmul.bf16.gmra.mxu0 %v2337
        %v3328 = vpop.f32.mrf.mxu0
        %v3329 = vadd.f32 %v2481, %v3328
        %v3330 = vpop.f32.mrf.mxu0
        %v3331 = vadd.f32 %v2481, %v3330
        %3332 = vmatmul.bf16.gmra.mxu0 %v2341
        %v3333 = vpop.f32.mrf.mxu0
        %v3334 = vadd.f32 %v2481, %v3333
        %v3335 = vpop.f32.mrf.mxu0
        %v3336 = vadd.f32 %v2481, %v3335
        %3337 = vmatmul.bf16.gmra.mxu0 %v2345
        %v3338 = vpop.f32.mrf.mxu0
        %v3339 = vadd.f32 %v2481, %v3338
        %v3340 = vpop.f32.mrf.mxu0
        %v3341 = vadd.f32 %v2481, %v3340
        %3342 = vdwg.mxu0
        %3343 = vmatpush.bf16.msra.mxu0 %v2933
        %3344 = vmatpush.bf16.msra.mxu0 %v2929
        %3345 = vmatpush.bf16.msra.mxu0 %v2925
        %3346 = vmatpush.bf16.msra.mxu0 %v2921
        %3347 = vmatpush.bf16.msra.mxu0 %v2917
        %3348 = vmatpush.bf16.msra.mxu0 %v2913
        %3349 = vmatpush.bf16.msra.mxu0 %v2909
        %3350 = vmatpush.bf16.msra.mxu0 %v2905
        %3351 = vmatmul.bf16.gmra.mxu0 %v2338
        %v3352 = vpop.f32.mrf.mxu0
        %v3353 = vadd.f32 %v3329, %v3352
        %v3354 = vpop.f32.mrf.mxu0
        %v3355 = vadd.f32 %v3331, %v3354
        %3356 = vmatmul.bf16.gmra.mxu0 %v2342
        %v3357 = vpop.f32.mrf.mxu0
        %v3358 = vadd.f32 %v3334, %v3357
        %v3359 = vpop.f32.mrf.mxu0
        %v3360 = vadd.f32 %v3336, %v3359
        %3361 = vmatmul.bf16.gmra.mxu0 %v2346
        %v3362 = vpop.f32.mrf.mxu0
        %v3363 = vadd.f32 %v3339, %v3362
        %v3364 = vpop.f32.mrf.mxu0
        %v3365 = vadd.f32 %v3341, %v3364
        %3366 = vdwg.mxu0
        %3367 = vmatpush.bf16.msra.mxu0 %v2965
        %3368 = vmatpush.bf16.msra.mxu0 %v2961
        %3369 = vmatpush.bf16.msra.mxu0 %v2957
        %3370 = vmatpush.bf16.msra.mxu0 %v2953
        %3371 = vmatpush.bf16.msra.mxu0 %v2949
        %3372 = vmatpush.bf16.msra.mxu0 %v2945
        %3373 = vmatpush.bf16.msra.mxu0 %v2941
        %3374 = vmatpush.bf16.msra.mxu0 %v2937
        %3375 = vmatmul.bf16.gmra.mxu0 %v2339
        %v3376 = vpop.f32.mrf.mxu0
        %v3377 = vadd.f32 %v3353, %v3376
        %v3378 = vpop.f32.mrf.mxu0
        %v3379 = vadd.f32 %v3355, %v3378
        %3380 = vmatmul.bf16.gmra.mxu0 %v2343
        %v3381 = vpop.f32.mrf.mxu0
        %v3382 = vadd.f32 %v3358, %v3381
        %v3383 = vpop.f32.mrf.mxu0
        %v3384 = vadd.f32 %v3360, %v3383
        %3385 = vmatmul.bf16.gmra.mxu0 %v2347
        %v3386 = vpop.f32.mrf.mxu0
        %v3387 = vadd.f32 %v3363, %v3386
        %v3388 = vpop.f32.mrf.mxu0
        %v3389 = vadd.f32 %v3365, %v3388
        %3390 = vdwg.mxu0
        %3391 = vmatpush.bf16.msra.mxu0 %v2997
        %3392 = vmatpush.bf16.msra.mxu0 %v2993
        %3393 = vmatpush.bf16.msra.mxu0 %v2989
        %3394 = vmatpush.bf16.msra.mxu0 %v2985
        %3395 = vmatpush.bf16.msra.mxu0 %v2981
        %3396 = vmatpush.bf16.msra.mxu0 %v2977
        %3397 = vmatpush.bf16.msra.mxu0 %v2973
        %3398 = vmatpush.bf16.msra.mxu0 %v2969
        %3399 = vmatmul.bf16.gmra.mxu0 %v2340
        %v3400 = vpop.f32.mrf.mxu0
        %v3401 = vadd.f32 %v3377, %v3400
        %v3402 = vpop.f32.mrf.mxu0
        %v3403 = vadd.f32 %v3379, %v3402
        %3404 = vmatmul.bf16.gmra.mxu0 %v2344
        %v3405 = vpop.f32.mrf.mxu0
        %v3406 = vadd.f32 %v3382, %v3405
        %v3407 = vpop.f32.mrf.mxu0
        %v3408 = vadd.f32 %v3384, %v3407
        %3409 = vmatmul.bf16.gmra.mxu0 %v2348
        %v3410 = vpop.f32.mrf.mxu0
        %v3411 = vadd.f32 %v3387, %v3410
        %v3412 = vpop.f32.mrf.mxu0
        %v3413 = vadd.f32 %v3389, %v3412
        %3414 = vdwg.mxu0
        %3415 = vmatpush.bf16.msra.mxu0 %v2902
        %3416 = vmatpush.bf16.msra.mxu0 %v2898
        %3417 = vmatpush.bf16.msra.mxu0 %v2894
        %3418 = vmatpush.bf16.msra.mxu0 %v2890
        %3419 = vmatpush.bf16.msra.mxu0 %v2886
        %3420 = vmatpush.bf16.msra.mxu0 %v2882
        %3421 = vmatpush.bf16.msra.mxu0 %v2878
        %3422 = vmatpush.bf16.msra.mxu0 %v2874
        %3423 = vmatmul.bf16.gmra.mxu0 %v2337
        %v3424 = vpop.f32.mrf.mxu0
        %v3425 = vadd.f32 %v2482, %v3424
        %v3426 = vpop.f32.mrf.mxu0
        %v3427 = vadd.f32 %v2482, %v3426
        %3428 = vmatmul.bf16.gmra.mxu0 %v2341
        %v3429 = vpop.f32.mrf.mxu0
        %v3430 = vadd.f32 %v2482, %v3429
        %v3431 = vpop.f32.mrf.mxu0
        %v3432 = vadd.f32 %v2482, %v3431
        %3433 = vmatmul.bf16.gmra.mxu0 %v2345
        %v3434 = vpop.f32.mrf.mxu0
        %v3435 = vadd.f32 %v2482, %v3434
        %v3436 = vpop.f32.mrf.mxu0
        %v3437 = vadd.f32 %v2482, %v3436
        %3438 = vdwg.mxu0
        %3439 = vmatpush.bf16.msra.mxu0 %v2934
        %3440 = vmatpush.bf16.msra.mxu0 %v2930
        %3441 = vmatpush.bf16.msra.mxu0 %v2926
        %3442 = vmatpush.bf16.msra.mxu0 %v2922
        %3443 = vmatpush.bf16.msra.mxu0 %v2918
        %3444 = vmatpush.bf16.msra.mxu0 %v2914
        %3445 = vmatpush.bf16.msra.mxu0 %v2910
        %3446 = vmatpush.bf16.msra.mxu0 %v2906
        %3447 = vmatmul.bf16.gmra.mxu0 %v2338
        %v3448 = vpop.f32.mrf.mxu0
        %v3449 = vadd.f32 %v3425, %v3448
        %v3450 = vpop.f32.mrf.mxu0
        %v3451 = vadd.f32 %v3427, %v3450
        %3452 = vmatmul.bf16.gmra.mxu0 %v2342
        %v3453 = vpop.f32.mrf.mxu0
        %v3454 = vadd.f32 %v3430, %v3453
        %v3455 = vpop.f32.mrf.mxu0
        %v3456 = vadd.f32 %v3432, %v3455
        %3457 = vmatmul.bf16.gmra.mxu0 %v2346
        %v3458 = vpop.f32.mrf.mxu0
        %v3459 = vadd.f32 %v3435, %v3458
        %v3460 = vpop.f32.mrf.mxu0
        %v3461 = vadd.f32 %v3437, %v3460
        %3462 = vdwg.mxu0
        %3463 = vmatpush.bf16.msra.mxu0 %v2966
        %3464 = vmatpush.bf16.msra.mxu0 %v2962
        %3465 = vmatpush.bf16.msra.mxu0 %v2958
        %3466 = vmatpush.bf16.msra.mxu0 %v2954
        %3467 = vmatpush.bf16.msra.mxu0 %v2950
        %3468 = vmatpush.bf16.msra.mxu0 %v2946
        %3469 = vmatpush.bf16.msra.mxu0 %v2942
        %3470 = vmatpush.bf16.msra.mxu0 %v2938
        %3471 = vmatmul.bf16.gmra.mxu0 %v2339
        %v3472 = vpop.f32.mrf.mxu0
        %v3473 = vadd.f32 %v3449, %v3472
        %v3474 = vpop.f32.mrf.mxu0
        %v3475 = vadd.f32 %v3451, %v3474
        %3476 = vmatmul.bf16.gmra.mxu0 %v2343
        %v3477 = vpop.f32.mrf.mxu0
        %v3478 = vadd.f32 %v3454, %v3477
        %v3479 = vpop.f32.mrf.mxu0
        %v3480 = vadd.f32 %v3456, %v3479
        %3481 = vmatmul.bf16.gmra.mxu0 %v2347
        %v3482 = vpop.f32.mrf.mxu0
        %v3483 = vadd.f32 %v3459, %v3482
        %v3484 = vpop.f32.mrf.mxu0
        %v3485 = vadd.f32 %v3461, %v3484
        %3486 = vdwg.mxu0
        %3487 = vmatpush.bf16.msra.mxu0 %v2998
        %3488 = vmatpush.bf16.msra.mxu0 %v2994
        %3489 = vmatpush.bf16.msra.mxu0 %v2990
        %3490 = vmatpush.bf16.msra.mxu0 %v2986
        %3491 = vmatpush.bf16.msra.mxu0 %v2982
        %3492 = vmatpush.bf16.msra.mxu0 %v2978
        %3493 = vmatpush.bf16.msra.mxu0 %v2974
        %3494 = vmatpush.bf16.msra.mxu0 %v2970
        %3495 = vmatmul.bf16.gmra.mxu0 %v2340
        %v3496 = vpop.f32.mrf.mxu0
        %v3497 = vadd.f32 %v3473, %v3496
        %v3498 = vpop.f32.mrf.mxu0
        %v3499 = vadd.f32 %v3475, %v3498
        %3500 = vmatmul.bf16.gmra.mxu0 %v2344
        %v3501 = vpop.f32.mrf.mxu0
        %v3502 = vadd.f32 %v3478, %v3501
        %v3503 = vpop.f32.mrf.mxu0
        %v3504 = vadd.f32 %v3480, %v3503
        %3505 = vmatmul.bf16.gmra.mxu0 %v2348
        %v3506 = vpop.f32.mrf.mxu0
        %v3507 = vadd.f32 %v3483, %v3506
        %v3508 = vpop.f32.mrf.mxu0
        %v3509 = vadd.f32 %v3485, %v3508
        %3510 = vdwg.mxu0
        %v3511 = vmax.f32 %v3209, 0.0
        %v3512 = vmax.f32 %v3305, 0.0
        %v3513 = vmax.f32 %v3401, 0.0
        %v3514 = vmax.f32 %v3497, 0.0
        %v3515 = vmax.f32 %v3211, 0.0
        %v3516 = vmax.f32 %v3307, 0.0
        %v3517 = vmax.f32 %v3403, 0.0
        %v3518 = vmax.f32 %v3499, 0.0
        %v3519 = vmax.f32 %v3214, 0.0
        %v3520 = vmax.f32 %v3310, 0.0
        %v3521 = vmax.f32 %v3406, 0.0
        %v3522 = vmax.f32 %v3502, 0.0
        %v3523 = vmax.f32 %v3216, 0.0
        %v3524 = vmax.f32 %v3312, 0.0
        %v3525 = vmax.f32 %v3408, 0.0
        %v3526 = vmax.f32 %v3504, 0.0
        %v3527 = vmax.f32 %v3219, 0.0
        %v3528 = vmax.f32 %v3315, 0.0
        %v3529 = vmax.f32 %v3411, 0.0
        %v3530 = vmax.f32 %v3507, 0.0
        %v3531 = vmax.f32 %v3221, 0.0
        %v3532 = vmax.f32 %v3317, 0.0
        %v3533 = vmax.f32 %v3413, 0.0
        %v3534 = vmax.f32 %v3509, 0.0
        %v3535 = vpack.c.bf16 %v3515, %v3511
        %v3536 = vpack.c.bf16 %v3516, %v3512
        %v3537 = vpack.c.bf16 %v3517, %v3513
        %v3538 = vpack.c.bf16 %v3518, %v3514
        %v3539 = vpack.c.bf16 %v3523, %v3519
        %v3540 = vpack.c.bf16 %v3524, %v3520
        %v3541 = vpack.c.bf16 %v3525, %v3521
        %v3542 = vpack.c.bf16 %v3526, %v3522
        %v3543 = vpack.c.bf16 %v3531, %v3527
        %v3544 = vpack.c.bf16 %v3532, %v3528
        %v3545 = vpack.c.bf16 %v3533, %v3529
        %v3546 = vpack.c.bf16 %v3534, %v3530
        %v3547 = vld [vmem:[#allocation11] sm:$0xf]
        %v3548 = vld [vmem:[#allocation11 + $0x4] sm:$0xf]
        %v3549 = vld [vmem:[#allocation11 + $0x8] sm:$0xf]
        %v3550 = vld [vmem:[#allocation11 + $0xc] sm:$0xf]
        %v3551 = vld [vmem:[#allocation11 + $0x10] sm:$0xf]
        %v3552 = vld [vmem:[#allocation11 + $0x14] sm:$0xf]
        %v3553 = vld [vmem:[#allocation11 + $0x18] sm:$0xf]
        %v3554 = vld [vmem:[#allocation11 + $0x1c] sm:$0xf]
        %v3555 = vld [vmem:[#allocation11 + $0x20] sm:$0xf]
        %v3556 = vld [vmem:[#allocation11 + $0x24] sm:$0xf]
        %v3557 = vld [vmem:[#allocation11 + $0x28] sm:$0xf]
        %v3558 = vld [vmem:[#allocation11 + $0x2c] sm:$0xf]
        %v3559 = vld [vmem:[#allocation11 + $0x30] sm:$0xf]
        %v3560 = vld [vmem:[#allocation11 + $0x34] sm:$0xf]
        %v3561 = vld [vmem:[#allocation11 + $0x38] sm:$0xf]
        %v3562 = vld [vmem:[#allocation11 + $0x3c] sm:$0xf]
        %v3563 = vld [vmem:[#allocation11 + $0x40] sm:$0xf]
        %v3564 = vld [vmem:[#allocation11 + $0x44] sm:$0xf]
        %v3565 = vld [vmem:[#allocation11 + $0x48] sm:$0xf]
        %v3566 = vld [vmem:[#allocation11 + $0x4c] sm:$0xf]
        %v3567 = vld [vmem:[#allocation11 + $0x50] sm:$0xf]
        %v3568 = vld [vmem:[#allocation11 + $0x54] sm:$0xf]
        %v3569 = vld [vmem:[#allocation11 + $0x58] sm:$0xf]
        %v3570 = vld [vmem:[#allocation11 + $0x5c] sm:$0xf]
        %v3571 = vld [vmem:[#allocation11 + $0x60] sm:$0xf]
        %v3572 = vld [vmem:[#allocation11 + $0x64] sm:$0xf]
        %v3573 = vld [vmem:[#allocation11 + $0x68] sm:$0xf]
        %v3574 = vld [vmem:[#allocation11 + $0x6c] sm:$0xf]
        %v3575 = vld [vmem:[#allocation11 + $0x70] sm:$0xf]
        %v3576 = vld [vmem:[#allocation11 + $0x74] sm:$0xf]
        %v3577 = vld [vmem:[#allocation11 + $0x78] sm:$0xf]
        %v3578 = vld [vmem:[#allocation11 + $0x7c] sm:$0xf]
        %v3579 = vld [vmem:[#allocation11 + $0x80] sm:$0xf]
        %v3580 = vld [vmem:[#allocation11 + $0x84] sm:$0xf]
        %v3581 = vld [vmem:[#allocation11 + $0x88] sm:$0xf]
        %v3582 = vld [vmem:[#allocation11 + $0x8c] sm:$0xf]
        %v3583 = vld [vmem:[#allocation11 + $0x90] sm:$0xf]
        %v3584 = vld [vmem:[#allocation11 + $0x94] sm:$0xf]
        %v3585 = vld [vmem:[#allocation11 + $0x98] sm:$0xf]
        %v3586 = vld [vmem:[#allocation11 + $0x9c] sm:$0xf]
        %v3587 = vld [vmem:[#allocation11 + $0xa0] sm:$0xf]
        %v3588 = vld [vmem:[#allocation11 + $0xa4] sm:$0xf]
        %v3589 = vld [vmem:[#allocation11 + $0xa8] sm:$0xf]
        %v3590 = vld [vmem:[#allocation11 + $0xac] sm:$0xf]
        %v3591 = vld [vmem:[#allocation11 + $0xb0] sm:$0xf]
        %v3592 = vld [vmem:[#allocation11 + $0xb4] sm:$0xf]
        %v3593 = vld [vmem:[#allocation11 + $0xb8] sm:$0xf]
        %v3594 = vld [vmem:[#allocation11 + $0xbc] sm:$0xf]
        %v3595 = vld [vmem:[#allocation11 + $0xc0] sm:$0xf]
        %v3596 = vld [vmem:[#allocation11 + $0xc4] sm:$0xf]
        %v3597 = vld [vmem:[#allocation11 + $0xc8] sm:$0xf]
        %v3598 = vld [vmem:[#allocation11 + $0xcc] sm:$0xf]
        %v3599 = vld [vmem:[#allocation11 + $0xd0] sm:$0xf]
        %v3600 = vld [vmem:[#allocation11 + $0xd4] sm:$0xf]
        %v3601 = vld [vmem:[#allocation11 + $0xd8] sm:$0xf]
        %v3602 = vld [vmem:[#allocation11 + $0xdc] sm:$0xf]
        %v3603 = vld [vmem:[#allocation11 + $0xe0] sm:$0xf]
        %v3604 = vld [vmem:[#allocation11 + $0xe4] sm:$0xf]
        %v3605 = vld [vmem:[#allocation11 + $0xe8] sm:$0xf]
        %v3606 = vld [vmem:[#allocation11 + $0xec] sm:$0xf]
        %v3607 = vld [vmem:[#allocation11 + $0xf0] sm:$0xf]
        %v3608 = vld [vmem:[#allocation11 + $0xf4] sm:$0xf]
        %v3609 = vld [vmem:[#allocation11 + $0xf8] sm:$0xf]
        %v3610 = vld [vmem:[#allocation11 + $0xfc] sm:$0xf]
        %v3611 = vld [vmem:[%s6] sm:$0x1]
        %v3613 = vperm.slane %v3611, 0
        %v3679 = vunpack.c.l.b16 %v3547
        %v3680 = vunpack.c.l.b16 %v3548
        %v3681 = vunpack.c.l.b16 %v3549
        %v3682 = vunpack.c.l.b16 %v3550
        %v3683 = vunpack.c.l.b16 %v3551
        %v3684 = vunpack.c.l.b16 %v3552
        %v3685 = vunpack.c.l.b16 %v3553
        %v3686 = vunpack.c.l.b16 %v3554
        %v3687 = vunpack.c.l.b16 %v3555
        %v3688 = vunpack.c.l.b16 %v3556
        %v3689 = vunpack.c.l.b16 %v3557
        %v3690 = vunpack.c.l.b16 %v3558
        %v3691 = vunpack.c.l.b16 %v3559
        %v3692 = vunpack.c.l.b16 %v3560
        %v3693 = vunpack.c.l.b16 %v3561
        %v3694 = vunpack.c.l.b16 %v3562
        %v3695 = vunpack.c.l.b16 %v3563
        %v3696 = vunpack.c.l.b16 %v3564
        %v3697 = vunpack.c.l.b16 %v3565
        %v3698 = vunpack.c.l.b16 %v3566
        %v3699 = vunpack.c.l.b16 %v3567
        %v3700 = vunpack.c.l.b16 %v3568
        %v3701 = vunpack.c.l.b16 %v3569
        %v3702 = vunpack.c.l.b16 %v3570
        %v3703 = vunpack.c.l.b16 %v3571
        %v3704 = vunpack.c.l.b16 %v3572
        %v3705 = vunpack.c.l.b16 %v3573
        %v3706 = vunpack.c.l.b16 %v3574
        %v3707 = vunpack.c.l.b16 %v3575
        %v3708 = vunpack.c.l.b16 %v3576
        %v3709 = vunpack.c.l.b16 %v3577
        %v3710 = vunpack.c.l.b16 %v3578
        %v3711 = vunpack.c.l.b16 %v3579
        %v3712 = vunpack.c.l.b16 %v3580
        %v3713 = vunpack.c.l.b16 %v3581
        %v3714 = vunpack.c.l.b16 %v3582
        %v3715 = vunpack.c.l.b16 %v3583
        %v3716 = vunpack.c.l.b16 %v3584
        %v3717 = vunpack.c.l.b16 %v3585
        %v3718 = vunpack.c.l.b16 %v3586
        %v3719 = vunpack.c.l.b16 %v3587
        %v3720 = vunpack.c.l.b16 %v3588
        %v3721 = vunpack.c.l.b16 %v3589
        %v3722 = vunpack.c.l.b16 %v3590
        %v3723 = vunpack.c.l.b16 %v3591
        %v3724 = vunpack.c.l.b16 %v3592
        %v3725 = vunpack.c.l.b16 %v3593
        %v3726 = vunpack.c.l.b16 %v3594
        %v3727 = vunpack.c.l.b16 %v3595
        %v3728 = vunpack.c.l.b16 %v3596
        %v3729 = vunpack.c.l.b16 %v3597
        %v3730 = vunpack.c.l.b16 %v3598
        %v3731 = vunpack.c.l.b16 %v3599
        %v3732 = vunpack.c.l.b16 %v3600
        %v3733 = vunpack.c.l.b16 %v3601
        %v3734 = vunpack.c.l.b16 %v3602
        %v3735 = vunpack.c.l.b16 %v3603
        %v3736 = vunpack.c.l.b16 %v3604
        %v3737 = vunpack.c.l.b16 %v3605
        %v3738 = vunpack.c.l.b16 %v3606
        %v3739 = vunpack.c.l.b16 %v3607
        %v3740 = vunpack.c.l.b16 %v3608
        %v3741 = vunpack.c.l.b16 %v3609
        %v3742 = vunpack.c.l.b16 %v3610
        %v3743 = vpack.c.b16 %v3680, %v3679
        %v3744 = vpack.c.b16 %v3682, %v3681
        %v3745 = vpack.c.b16 %v3684, %v3683
        %v3746 = vpack.c.b16 %v3686, %v3685
        %v3747 = vpack.c.b16 %v3688, %v3687
        %v3748 = vpack.c.b16 %v3690, %v3689
        %v3749 = vpack.c.b16 %v3692, %v3691
        %v3750 = vpack.c.b16 %v3694, %v3693
        %v3751 = vpack.c.b16 %v3696, %v3695
        %v3752 = vpack.c.b16 %v3698, %v3697
        %v3753 = vpack.c.b16 %v3700, %v3699
        %v3754 = vpack.c.b16 %v3702, %v3701
        %v3755 = vpack.c.b16 %v3704, %v3703
        %v3756 = vpack.c.b16 %v3706, %v3705
        %v3757 = vpack.c.b16 %v3708, %v3707
        %v3758 = vpack.c.b16 %v3710, %v3709
        %v3759 = vpack.c.b16 %v3712, %v3711
        %v3760 = vpack.c.b16 %v3714, %v3713
        %v3761 = vpack.c.b16 %v3716, %v3715
        %v3762 = vpack.c.b16 %v3718, %v3717
        %v3763 = vpack.c.b16 %v3720, %v3719
        %v3764 = vpack.c.b16 %v3722, %v3721
        %v3765 = vpack.c.b16 %v3724, %v3723
        %v3766 = vpack.c.b16 %v3726, %v3725
        %v3767 = vpack.c.b16 %v3728, %v3727
        %v3768 = vpack.c.b16 %v3730, %v3729
        %v3769 = vpack.c.b16 %v3732, %v3731
        %v3770 = vpack.c.b16 %v3734, %v3733
        %v3771 = vpack.c.b16 %v3736, %v3735
        %v3772 = vpack.c.b16 %v3738, %v3737
        %v3773 = vpack.c.b16 %v3740, %v3739
        %v3774 = vpack.c.b16 %v3742, %v3741
        %3807 = vmatpush.bf16.msra.mxu0 %v3750
        %3808 = vmatpush.bf16.msra.mxu0 %v3749
        %3809 = vmatpush.bf16.msra.mxu0 %v3748
        %3810 = vmatpush.bf16.msra.mxu0 %v3747
        %3811 = vmatpush.bf16.msra.mxu0 %v3746
        %3812 = vmatpush.bf16.msra.mxu0 %v3745
        %3813 = vmatpush.bf16.msra.mxu0 %v3744
        %3814 = vmatpush.bf16.msra.mxu0 %v3743
        %3815 = vmatmul.bf16.gmra.mxu0 %v3535
        %v3816 = vpop.f32.mrf.mxu0
        %v3817 = vadd.f32 %v3613, %v3816
        %v3818 = vpop.f32.mrf.mxu0
        %v3819 = vadd.f32 %v3613, %v3818
        %3820 = vmatmul.bf16.gmra.mxu0 %v3539
        %v3821 = vpop.f32.mrf.mxu0
        %v3822 = vadd.f32 %v3613, %v3821
        %v3823 = vpop.f32.mrf.mxu0
        %v3824 = vadd.f32 %v3613, %v3823
        %3825 = vmatmul.bf16.gmra.mxu0 %v3543
        %v3826 = vpop.f32.mrf.mxu0
        %v3827 = vadd.f32 %v3613, %v3826
        %v3828 = vpop.f32.mrf.mxu0
        %v3829 = vadd.f32 %v3613, %v3828
        %3830 = vdwg.mxu0
        %3831 = vmatpush.bf16.msra.mxu0 %v3758
        %3832 = vmatpush.bf16.msra.mxu0 %v3757
        %3833 = vmatpush.bf16.msra.mxu0 %v3756
        %3834 = vmatpush.bf16.msra.mxu0 %v3755
        %3835 = vmatpush.bf16.msra.mxu0 %v3754
        %3836 = vmatpush.bf16.msra.mxu0 %v3753
        %3837 = vmatpush.bf16.msra.mxu0 %v3752
        %3838 = vmatpush.bf16.msra.mxu0 %v3751
        %3839 = vmatmul.bf16.gmra.mxu0 %v3536
        %v3840 = vpop.f32.mrf.mxu0
        %v3841 = vadd.f32 %v3817, %v3840
        %v3842 = vpop.f32.mrf.mxu0
        %v3843 = vadd.f32 %v3819, %v3842
        %3844 = vmatmul.bf16.gmra.mxu0 %v3540
        %v3845 = vpop.f32.mrf.mxu0
        %v3846 = vadd.f32 %v3822, %v3845
        %v3847 = vpop.f32.mrf.mxu0
        %v3848 = vadd.f32 %v3824, %v3847
        %3849 = vmatmul.bf16.gmra.mxu0 %v3544
        %v3850 = vpop.f32.mrf.mxu0
        %v3851 = vadd.f32 %v3827, %v3850
        %v3852 = vpop.f32.mrf.mxu0
        %v3853 = vadd.f32 %v3829, %v3852
        %3854 = vdwg.mxu0
        %3855 = vmatpush.bf16.msra.mxu0 %v3766
        %3856 = vmatpush.bf16.msra.mxu0 %v3765
        %3857 = vmatpush.bf16.msra.mxu0 %v3764
        %3858 = vmatpush.bf16.msra.mxu0 %v3763
        %3859 = vmatpush.bf16.msra.mxu0 %v3762
        %3860 = vmatpush.bf16.msra.mxu0 %v3761
        %3861 = vmatpush.bf16.msra.mxu0 %v3760
        %3862 = vmatpush.bf16.msra.mxu0 %v3759
        %3863 = vmatmul.bf16.gmra.mxu0 %v3537
        %v3864 = vpop.f32.mrf.mxu0
        %v3865 = vadd.f32 %v3841, %v3864
        %v3866 = vpop.f32.mrf.mxu0
        %v3867 = vadd.f32 %v3843, %v3866
        %3868 = vmatmul.bf16.gmra.mxu0 %v3541
        %v3869 = vpop.f32.mrf.mxu0
        %v3870 = vadd.f32 %v3846, %v3869
        %v3871 = vpop.f32.mrf.mxu0
        %v3872 = vadd.f32 %v3848, %v3871
        %3873 = vmatmul.bf16.gmra.mxu0 %v3545
        %v3874 = vpop.f32.mrf.mxu0
        %v3875 = vadd.f32 %v3851, %v3874
        %v3876 = vpop.f32.mrf.mxu0
        %v3877 = vadd.f32 %v3853, %v3876
        %3878 = vdwg.mxu0
        %3879 = vmatpush.bf16.msra.mxu0 %v3774
        %3880 = vmatpush.bf16.msra.mxu0 %v3773
        %3881 = vmatpush.bf16.msra.mxu0 %v3772
        %3882 = vmatpush.bf16.msra.mxu0 %v3771
        %3883 = vmatpush.bf16.msra.mxu0 %v3770
        %3884 = vmatpush.bf16.msra.mxu0 %v3769
        %3885 = vmatpush.bf16.msra.mxu0 %v3768
        %3886 = vmatpush.bf16.msra.mxu0 %v3767
        %3887 = vmatmul.bf16.gmra.mxu0 %v3538
        %v3888 = vpop.f32.mrf.mxu0
        %v3889 = vadd.f32 %v3865, %v3888
        %v3890 = vpop.f32.mrf.mxu0
        %v3891 = vadd.f32 %v3867, %v3890
        %3892 = vmatmul.bf16.gmra.mxu0 %v3542
        %v3893 = vpop.f32.mrf.mxu0
        %v3894 = vadd.f32 %v3870, %v3893
        %v3895 = vpop.f32.mrf.mxu0
        %v3896 = vadd.f32 %v3872, %v3895
        %3897 = vmatmul.bf16.gmra.mxu0 %v3546
        %v3898 = vpop.f32.mrf.mxu0
        %v3899 = vadd.f32 %v3875, %v3898
        %v3900 = vpop.f32.mrf.mxu0
        %v3901 = vadd.f32 %v3877, %v3900
        %3902 = vdwg.mxu0
        %v3903 = vpack.c.bf16 %v3889, %v3889
        %v3904 = vpack.c.bf16 %v3891, %v3891
        %v3905 = vpack.c.bf16 %v3894, %v3894
        %v3906 = vpack.c.bf16 %v3896, %v3896
        %v3907 = vpack.c.bf16 %v3899, %v3899
        %v3908 = vpack.c.bf16 %v3901, %v3901
        %3909 = vst [vmem:[%s378] sm:$0xf] %v3903
        %3910 = vst [vmem:[%s378 + $0x4] sm:$0xf] %v3904
        %3911 = vst [vmem:[%s378 + $0x8] sm:$0xf] %v3905
        %3912 = vst [vmem:[%s378 + $0xc] sm:$0xf] %v3906
        %3913 = vst [vmem:[%s378 + $0x10] sm:$0xf] %v3907
        %3914 = vst [vmem:[%s378 + $0x14] sm:$0xf] %v3908
        %s3915 = sand.u32 %s187, 1
        %s3916 = scalar_lea.sflag [#allocation4], %s3915
        %s3917 = sand.u32 %s187, 1
        %s3918 = smul.addr %s3917, 24
        %s3919 = scalar_lea.vmem [#allocation13], %s3918
        // Predicated region
        $region73: #{tpu_custom_call.1} parent=47 // pred_check
          %p3920 = pneg %p197
        $region74: #{tpu_custom_call.1} parent=47 // pred_check_branch
          %3922 = sbr.rel (%p3920) target = $region76
        $region75: #{tpu_custom_call.1} parent=47 // pred_region
          %s3923 = smul.u32 6, %s27
          %3925 = vsyncadd %s3916, 0
          %s3926 = smul.addr %s3923, 4
          %s3927 = scalar_lea.hbm %s7, %s3926
          %s3928 = sshll.u32 %s3919, 4
          %s3929 = int_to_ptr.vmem [resolvable:$true] %s3928
          %s3930 = sshll.u32 %s3927, 4
          %s3931 = int_to_ptr.hbm [resolvable:$true] %s3930
          %3936 = dma.vmem_to_hbm [thread:$0]  %s3929, 384, %s3931, %s3916, 64, 64, 4
        $region76: #{tpu_custom_call.1} parent=47 // pred_fallthru
          _
      $region48: #{tpu_custom_call.1} parent=5 // pred_fallthru
        _
      %p3937 = scmp.le.s32.totalorder 2, %s22
      // Predicated region
      $region77: #{tpu_custom_call.1} parent=5 // pred_check
        %p3938 = pneg %p3937
      $region78: #{tpu_custom_call.1} parent=5 // pred_check_branch
        %3940 = sbr.rel (%p3938) target = $region80
      $region79: #{tpu_custom_call.1} parent=5 // pred_region
        %s3941 = ssub.s32 %s22, 2
        // Predicated region
        $region81: #{tpu_custom_call.1} parent=79 // pred_check
          %p3942 = pneg %p203
        $region82: #{tpu_custom_call.1} parent=79 // pred_check_branch
          %3944 = sbr.rel (%p3942) target = $region84
        $region83: #{tpu_custom_call.1} parent=79 // pred_region
          %s3945 = sand.u32 %s188, 1
          %s3946 = scalar_lea.sflag [#allocation4], %s3945
          %s3947 = sand.u32 %s188, 1
          %s3948 = smul.addr %s3947, 24
          %s3949 = scalar_lea.vmem [#allocation13], %s3948
          %3951 = dma.done %s3946, 384
        $region84: #{tpu_custom_call.1} parent=79 // pred_fallthru
          _
      $region80: #{tpu_custom_call.1} parent=5 // pred_fallthru
        _
    $region6: #{tpu_custom_call.1} parent=1 // loop_footer
      %s26 = sadd.s32 1, %s22
    $region7: #{tpu_custom_call.1} parent=1 // loop_footer_branch
      %21 = sbr.rel target = $region3
    $region8: #{tpu_custom_call.1} parent=1 // loop_exit
      _
    %3952 = vsyncpa [#allocation3], 1
    %s3953 = scalar_lea.sflag [#allocation3], 1
    %3954 = vsyncpa %s3953, 1
    %3955 = vsyncpa [#allocation6], 1
    %3956 = vsyncpa [#allocation9], 1
    %3957 = vsyncpa [#allocation12], 1
    %3958 = vsyncpa [#allocation4], 1
    %s3959 = scalar_lea.sflag [#allocation4], 1
    %3960 = vsyncpa %s3959, 1

</llo_original>
